<compile_context>
chip_gen: v6e
topology: v6e:2x2x1
jax: 0.10.0
libtpu: 0.0.40
codegen_flags: <defaults>
</compile_context>

<pallas_src>
import jax
import jax.numpy as jnp
from jax.experimental import pallas as pl
from jax.experimental.pallas import tpu as pltpu


# ----------------------------------------------------------------------------
# In-kernel building blocks (operate on values; weights read from refs)
# ----------------------------------------------------------------------------
def _conv1d_same_stride1(x, w_ref, b_ref, *, relu):
    """'same'-padded stride-1 conv on a (T, Cin) value via K shifted MXU matmuls.

    w_ref: (K, Cin, Cout), b_ref: (1, Cout)."""
    T, Cin = x.shape
    K, _, Cout = w_ref.shape
    pad = (K - 1) // 2
    z = jnp.zeros((pad, Cin), jnp.float32)
    xp = jnp.concatenate([z, x, z], axis=0)                 # (T + 2*pad, Cin)
    acc = jnp.zeros((T, Cout), jnp.float32)
    for k in range(K):                                      # static unroll
        acc = acc + jnp.dot(xp[k:k + T, :], w_ref[k],
                            preferred_element_type=jnp.float32)
    acc = acc + b_ref[...]
    if relu:
        acc = jnp.maximum(acc, 0.0)
    return acc


def _make_fused_kernel(config):
    """Build the whole-forward kernel body, closed over the static config."""
    n_res = config["conv"]["n_layers"]
    n_vq = config["VQ"]["n_layers"]
    n_sse = max(n_vq, 1)
    heads = config["att"]["heads"]
    app_order = config["app_order"]

    def kernel(*refs):
        it = iter(refs)
        p_ref = next(it)                    # (1, T0, K0*Cin) init-conv patches
        w0_ref = next(it)                   # (K0*Cin, C)
        b0_ref = next(it)                   # (1, C)
        res_refs = [(next(it), next(it), next(it), next(it)) for _ in range(n_res)]
        vq_refs = [(next(it), next(it)) for _ in range(n_vq)]
        wh_ref = next(it)                   # (heads, C, H)
        bh_ref = next(it)                   # (heads, 1, H)
        wo_ref = next(it)                   # (heads, H, C)
        bo_ref = next(it)                   # (heads, 1, C)
        out_ref = next(it)                  # (1, 1, heads*C)
        sse_ref = next(it)                  # (1, 1, n_sse)

        # ---- init conv (single MXU matmul on tiny host-built patches) -------
        x = (jnp.dot(p_ref[0], w0_ref[...], preferred_element_type=jnp.float32)
             + b0_ref[...])                                  # (T0, C)

        # ---- res_conv / VQ stages in app_order, all on-chip ------------------
        c = v = 0
        sses = []
        for flag in app_order:
            if flag:
                cb_ref, cbt_ref = vq_refs[v]
                cb = cb_ref[...]                             # (N, D)
                cbt = cbt_ref[...]                           # (D, N)
                T, _ = x.shape
                N = cb.shape[0]
                # squared L2 distance via MXU: ||x||^2 + ||c||^2 - 2 x.c
                x2 = jnp.sum(x * x, axis=1, keepdims=True)            # (T, 1)
                c2 = jnp.sum(cbt * cbt, axis=0, keepdims=True)        # (1, N)
                xc = jnp.dot(x, cbt, preferred_element_type=jnp.float32)
                dist = x2 + c2 - 2.0 * xc                             # (T, N)
                idx = jnp.argmin(dist, axis=1, keepdims=True)         # (T, 1)
                onehot = (idx == jax.lax.broadcasted_iota(jnp.int32, (T, N), 1)
                          ).astype(jnp.float32)
                q = jnp.dot(onehot, cb, preferred_element_type=jnp.float32)
                d = x - q
                sses.append(jnp.sum(d * d))                  # per-batch SSE
                x = q                                        # straight-through
                v += 1
            else:
                w1_ref, b1_ref, w2_ref, b2_ref = res_refs[c]
                h = _conv1d_same_stride1(x, w1_ref, b1_ref, relu=True)
                h = _conv1d_same_stride1(h, w2_ref, b2_ref, relu=False)
                x = jnp.maximum(h + x, 0.0)                  # identity residual
                c += 1

        # ---- multi-head attention + F.normalize(p=2, dim=1) -----------------
        T, C = x.shape
        head_outs = []
        for hidx in range(heads):
            hh = jnp.tanh(jnp.dot(x, wh_ref[hidx],
                                  preferred_element_type=jnp.float32)
                          + bh_ref[hidx])                    # (T, H)
            s = (jnp.dot(hh, wo_ref[hidx], preferred_element_type=jnp.float32)
                 + bo_ref[hidx])                             # (T, C)
            s = s - jnp.max(s, axis=0, keepdims=True)        # softmax over time
            e = jnp.exp(s)
            alpha = e / jnp.sum(e, axis=0, keepdims=True)
            head_outs.append(jnp.sum(alpha * x, axis=0, keepdims=True))  # (1, C)
        att = head_outs[0] if heads == 1 else jnp.concatenate(head_outs, axis=1)
        nrm = jnp.sqrt(jnp.sum(att * att))
        out = att / jnp.maximum(nrm, 1e-12)                  # F.normalize eps
        out_ref[...] = out.reshape(1, 1, heads * C)

        if n_vq == 0:
            sse_ref[...] = jnp.zeros((1, 1, n_sse), jnp.float32)
        elif n_vq == 1:
            sse_ref[...] = sses[0].reshape(1, 1, 1)
        else:
            vec = jnp.concatenate([s.reshape(1, 1) for s in sses], axis=1)
            sse_ref[...] = vec.reshape(1, 1, n_sse)

    return kernel


# ----------------------------------------------------------------------------
# Wrapper: parameter layout prep + single pallas_call
# ----------------------------------------------------------------------------
def forward(params, config, x_ncl, l=None):
    """conv_VQ_encoder.forward. `l` (lengths) is unused by the reference forward."""
    del l
    B, Cin, T = x_ncl.shape
    ci = config["conv_init"]
    K0, s0, p0 = ci["kernel_size"], ci["stride"], ci["padding"]
    C = ci["out_channels"]
    T0 = (T + 2 * p0 - K0) // s0 + 1

    for s in config["conv"]["stride"]:
        assert s == 1, "in-kernel res_conv assumes stride 1 (identity residual)"
    for ic, oc in zip(config["conv"]["in_channels"], config["conv"]["out_channels"]):
        assert ic == oc, "identity residual requires in_ch == out_ch"

    # channels-last; tiny host im2col ONLY for the strided init conv (Cin=4).
    x = jnp.transpose(x_ncl, (0, 2, 1))                      # (B, T, Cin)
    xp = jnp.pad(x, ((0, 0), (p0, p0), (0, 0)))              # (B, T+2p, Cin)
    patches = jnp.concatenate(
        [xp[:, k:k + s0 * T0:s0, :] for k in range(K0)], axis=2)  # (B, T0, K0*Cin)

    w0 = jnp.transpose(params["conv_init"]["w"], (2, 1, 0)).reshape(K0 * Cin, C)
    b0 = params["conv_init"]["b"].reshape(1, C)

    flat_inputs = [patches, w0, b0]
    in_specs = [
        pl.BlockSpec((1, T0, K0 * Cin), lambda b: (b, 0, 0)),
        pl.BlockSpec((K0 * Cin, C), lambda b: (0, 0)),
        pl.BlockSpec((1, C), lambda b: (0, 0)),
    ]

    for rp in params["res"]:
        w1 = jnp.transpose(rp["w1"], (2, 1, 0))              # (K, Cin, Cout)
        w2 = jnp.transpose(rp["w2"], (2, 1, 0))
        b1 = rp["b1"].reshape(1, -1)
        b2 = rp["b2"].reshape(1, -1)
        flat_inputs += [w1, b1, w2, b2]
        in_specs += [
            pl.BlockSpec(w1.shape, lambda b: (0, 0, 0)),
            pl.BlockSpec(b1.shape, lambda b: (0, 0)),
            pl.BlockSpec(w2.shape, lambda b: (0, 0, 0)),
            pl.BlockSpec(b2.shape, lambda b: (0, 0)),
        ]

    for cb in params["vq"]:
        cbt = cb.T                                           # (D, N)
        flat_inputs += [cb, cbt]
        in_specs += [
            pl.BlockSpec(cb.shape, lambda b: (0, 0)),
            pl.BlockSpec(cbt.shape, lambda b: (0, 0)),
        ]

    att = params["att"]
    wh = jnp.stack([h["wh"] for h in att])                   # (heads, C, H)
    bh = jnp.stack([h["bh"].reshape(1, -1) for h in att])    # (heads, 1, H)
    wo = jnp.stack([h["wo"] for h in att])                   # (heads, H, C)
    bo = jnp.stack([h["bo"].reshape(1, -1) for h in att])    # (heads, 1, C)
    flat_inputs += [wh, bh, wo, bo]
    in_specs += [
        pl.BlockSpec(wh.shape, lambda b: (0, 0, 0)),
        pl.BlockSpec(bh.shape, lambda b: (0, 0, 0)),
        pl.BlockSpec(wo.shape, lambda b: (0, 0, 0)),
        pl.BlockSpec(bo.shape, lambda b: (0, 0, 0)),
    ]

    heads = config["att"]["heads"]
    n_vq = config["VQ"]["n_layers"]
    n_sse = max(n_vq, 1)

    out, sse = pl.pallas_call(
        _make_fused_kernel(config),
        out_shape=(jax.ShapeDtypeStruct((B, 1, heads * C), jnp.float32),
                   jax.ShapeDtypeStruct((B, 1, n_sse), jnp.float32)),
        grid=(B,),
        in_specs=in_specs,
        out_specs=(pl.BlockSpec((1, 1, heads * C), lambda b: (b, 0, 0)),
                   pl.BlockSpec((1, 1, n_sse), lambda b: (b, 0, 0))),
        compiler_params=pltpu.CompilerParams(dimension_semantics=("parallel",)),
    )(*flat_inputs)

    emb = jnp.squeeze(out, axis=1)                           # (B, heads*C)

    # VQ commitment loss: 0.25 * MSE over (B, T, D) elements, summed over layers.
    vq_loss = jnp.float32(0.0)
    for j in range(n_vq):
        Dj = config["VQ"]["emb_dim"][j]
        vq_loss = vq_loss + 0.25 * jnp.sum(sse[:, 0, j]) / (B * T0 * Dj)
    return emb, vq_loss


# ----------------------------------------------------------------------------
# Deterministic parameter initialization (synthetic, not a checkpoint load)
# ----------------------------------------------------------------------------
def init_params(config, key):
    keys = iter(jax.random.split(key, 64))
    nk = lambda: next(keys)
    params = {}
    ci = config["conv_init"]
    params["conv_init"] = {
        "w": 0.1 * jax.random.normal(nk(), (ci["out_channels"], ci["in_channels"],
                                            ci["kernel_size"]), jnp.float32),
        "b": 0.01 * jax.random.normal(nk(), (ci["out_channels"],), jnp.float32),
    }
    conv = config["conv"]
    params["res"] = []
    for i in range(conv["n_layers"]):
        ic, oc, ks = conv["in_channels"][i], conv["out_channels"][i], conv["kernel_size"][i]
        params["res"].append({
            "w1": 0.1 * jax.random.normal(nk(), (oc, ic, ks), jnp.float32),
            "b1": 0.01 * jax.random.normal(nk(), (oc,), jnp.float32),
            "w2": 0.1 * jax.random.normal(nk(), (oc, oc, ks), jnp.float32),
            "b2": 0.01 * jax.random.normal(nk(), (oc,), jnp.float32),
        })
    vq = config["VQ"]
    params["vq"] = [jax.random.normal(nk(), (vq["n_embs"][i], vq["emb_dim"][i]), jnp.float32)
                    for i in range(vq["n_layers"])]
    att = config["att"]
    params["att"] = []
    for _ in range(att["heads"]):
        params["att"].append({
            "wh": 0.1 * jax.random.normal(nk(), (att["in_size"], att["hidden_size"]), jnp.float32),
            "bh": 0.01 * jax.random.normal(nk(), (att["hidden_size"],), jnp.float32),
            "wo": 0.1 * jax.random.normal(nk(), (att["hidden_size"], att["in_size"]), jnp.float32),
            "bo": 0.01 * jax.random.normal(nk(), (att["in_size"],), jnp.float32),
        })
    return params


if __name__ == "__main__":
    config = {
        "conv_init": {"in_channels": 4, "out_channels": 32, "kernel_size": 5,
                      "stride": 2, "padding": 2},
        "conv": {"n_layers": 2, "in_channels": [32, 32], "out_channels": [32, 32],
                 "kernel_size": [3, 3], "stride": [1, 1]},
        "VQ": {"n_layers": 1, "n_embs": [64], "emb_dim": [32]},
        "att": {"in_size": 32, "hidden_size": 16, "heads": 2},
        "app_order": [0, 1, 0],     # res_conv, VQ, res_conv
        "max_len": 32,
    }
    key = jax.random.PRNGKey(0)
    kp, kx = jax.random.split(key)
    params = init_params(config, kp)

    B, Cin, T = 2, config["conv_init"]["in_channels"], 32
    x = jax.random.normal(kx, (B, Cin, T), jnp.float32)      # NCL, like the PyTorch module
    l = jnp.full((B,), T, jnp.int32)                          # lengths (unused by forward)

    out, vq_loss = forward(params, config, x, l)
    jax.block_until_ready((out, vq_loss))
    assert out.shape == (B, config["att"]["heads"] * config["att"]["in_size"])
    assert bool(jnp.all(jnp.isfinite(out)))
    assert bool(jnp.isfinite(vq_loss))
    print("KERNEL_OK")
</pallas_src>

<mosaic_0001>
module attributes {stable_mosaic.version = 11 : i64} {
  func.func @kernel(%arg0: i32, %arg1: memref<1x16x20xf32, #tpu.memory_space<vmem>>, %arg2: memref<20x32xf32, #tpu.memory_space<vmem>>, %arg3: memref<1x32xf32, #tpu.memory_space<vmem>>, %arg4: memref<3x32x32xf32, #tpu.memory_space<vmem>>, %arg5: memref<1x32xf32, #tpu.memory_space<vmem>>, %arg6: memref<3x32x32xf32, #tpu.memory_space<vmem>>, %arg7: memref<1x32xf32, #tpu.memory_space<vmem>>, %arg8: memref<3x32x32xf32, #tpu.memory_space<vmem>>, %arg9: memref<1x32xf32, #tpu.memory_space<vmem>>, %arg10: memref<3x32x32xf32, #tpu.memory_space<vmem>>, %arg11: memref<1x32xf32, #tpu.memory_space<vmem>>, %arg12: memref<64x32xf32, #tpu.memory_space<vmem>>, %arg13: memref<32x64xf32, #tpu.memory_space<vmem>>, %arg14: memref<2x32x16xf32, #tpu.memory_space<vmem>>, %arg15: memref<2x1x16xf32, #tpu.memory_space<vmem>>, %arg16: memref<2x16x32xf32, #tpu.memory_space<vmem>>, %arg17: memref<2x1x32xf32, #tpu.memory_space<vmem>>, %arg18: memref<1x1x64xf32, #tpu.memory_space<vmem>>, %arg19: memref<1x1x1xf32, #tpu.memory_space<vmem>>) attributes {dimension_semantics = [#tpu.dimension_semantics<parallel>], iteration_bounds = array<i64: 2>, scalar_prefetch = 0 : i64, scratch_operands = 0 : i64, tpu.core_type = #tpu.core_type<tc>, window_params = [{transform_indices = @transform_0, window_bounds = array<i64: 1, 16, 20>}, {pipeline_mode = #tpu.pipeline_mode<synchronous>, transform_indices = @transform_1, window_bounds = array<i64: 20, 32>}, {pipeline_mode = #tpu.pipeline_mode<synchronous>, transform_indices = @transform_2, window_bounds = array<i64: 1, 32>}, {pipeline_mode = #tpu.pipeline_mode<synchronous>, transform_indices = @transform_3, window_bounds = array<i64: 3, 32, 32>}, {pipeline_mode = #tpu.pipeline_mode<synchronous>, transform_indices = @transform_4, window_bounds = array<i64: 1, 32>}, {pipeline_mode = #tpu.pipeline_mode<synchronous>, transform_indices = @transform_5, window_bounds = array<i64: 3, 32, 32>}, {pipeline_mode = #tpu.pipeline_mode<synchronous>, transform_indices = @transform_6, window_bounds = array<i64: 1, 32>}, {pipeline_mode = #tpu.pipeline_mode<synchronous>, transform_indices = @transform_7, window_bounds = array<i64: 3, 32, 32>}, {pipeline_mode = #tpu.pipeline_mode<synchronous>, transform_indices = @transform_8, window_bounds = array<i64: 1, 32>}, {pipeline_mode = #tpu.pipeline_mode<synchronous>, transform_indices = @transform_9, window_bounds = array<i64: 3, 32, 32>}, {pipeline_mode = #tpu.pipeline_mode<synchronous>, transform_indices = @transform_10, window_bounds = array<i64: 1, 32>}, {pipeline_mode = #tpu.pipeline_mode<synchronous>, transform_indices = @transform_11, window_bounds = array<i64: 64, 32>}, {pipeline_mode = #tpu.pipeline_mode<synchronous>, transform_indices = @transform_12, window_bounds = array<i64: 32, 64>}, {pipeline_mode = #tpu.pipeline_mode<synchronous>, transform_indices = @transform_13, window_bounds = array<i64: 2, 32, 16>}, {pipeline_mode = #tpu.pipeline_mode<synchronous>, transform_indices = @transform_14, window_bounds = array<i64: 2, 1, 16>}, {pipeline_mode = #tpu.pipeline_mode<synchronous>, transform_indices = @transform_15, window_bounds = array<i64: 2, 16, 32>}, {pipeline_mode = #tpu.pipeline_mode<synchronous>, transform_indices = @transform_16, window_bounds = array<i64: 2, 1, 32>}, {transform_indices = @transform_17, window_bounds = array<i64: 1, 1, 64>}, {transform_indices = @transform_18, window_bounds = array<i64: 1, 1, 1>}]} {
    %c0 = arith.constant 0 : index
    %c0_0 = arith.constant 0 : index
    %c0_1 = arith.constant 0 : index
    %0 = vector.load %arg1[%c0, %c0_0, %c0_1] : memref<1x16x20xf32, #tpu.memory_space<vmem>>, vector<1x16x20xf32>
    %1 = vector.shape_cast %0 : vector<1x16x20xf32> to vector<16x20xf32>
    %c0_2 = arith.constant 0 : index
    %c0_3 = arith.constant 0 : index
    %2 = vector.load %arg2[%c0_2, %c0_3] : memref<20x32xf32, #tpu.memory_space<vmem>>, vector<20x32xf32>
    %cst = arith.constant dense<0.000000e+00> : vector<16x32xf32>
    %3 = tpu.matmul %1, %2, %cst {dimension_numbers = #tpu.dot_dimension_numbers<[1], [0], [0], [1], [0, 0, 1, 1], [], []>} : vector<16x20xf32>, vector<20x32xf32>, vector<16x32xf32> -> vector<16x32xf32>
    %c0_4 = arith.constant 0 : index
    %c0_5 = arith.constant 0 : index
    %4 = vector.load %arg3[%c0_4, %c0_5] : memref<1x32xf32, #tpu.memory_space<vmem>>, vector<1x32xf32>
    %5 = vector.broadcast %4 : vector<1x32xf32> to vector<16x32xf32>
    %6 = arith.addf %3, %5 : vector<16x32xf32>
    %cst_6 = arith.constant 0.000000e+00 : f32
    %7 = vector.broadcast %cst_6 : f32 to vector<1x32xf32>
    %8 = tpu.concatenate %7, %6, %7 in 0 : vector<1x32xf32>, vector<16x32xf32>, vector<1x32xf32> -> vector<18x32xf32>
    %cst_7 = arith.constant 0.000000e+00 : f32
    %9 = vector.broadcast %cst_7 : f32 to vector<16x32xf32>
    %10 = vector.extract_strided_slice %8 {offsets = [0, 0], sizes = [16, 32], strides = [1, 1]} : vector<18x32xf32> to vector<16x32xf32>
    %c0_8 = arith.constant 0 : index
    %c0_9 = arith.constant 0 : index
    %c0_10 = arith.constant 0 : index
    %11 = vector.load %arg4[%c0_8, %c0_9, %c0_10] : memref<3x32x32xf32, #tpu.memory_space<vmem>>, vector<1x32x32xf32>
    %12 = vector.shape_cast %11 : vector<1x32x32xf32> to vector<32x32xf32>
    %cst_11 = arith.constant dense<0.000000e+00> : vector<16x32xf32>
    %13 = tpu.matmul %10, %12, %cst_11 {dimension_numbers = #tpu.dot_dimension_numbers<[1], [0], [0], [1], [0, 0, 1, 1], [], []>} : vector<16x32xf32>, vector<32x32xf32>, vector<16x32xf32> -> vector<16x32xf32>
    %14 = arith.addf %9, %13 : vector<16x32xf32>
    %15 = vector.extract_strided_slice %8 {offsets = [1, 0], sizes = [16, 32], strides = [1, 1]} : vector<18x32xf32> to vector<16x32xf32>
    %c1 = arith.constant 1 : index
    %c0_12 = arith.constant 0 : index
    %c0_13 = arith.constant 0 : index
    %16 = vector.load %arg4[%c1, %c0_12, %c0_13] : memref<3x32x32xf32, #tpu.memory_space<vmem>>, vector<1x32x32xf32>
    %17 = vector.shape_cast %16 : vector<1x32x32xf32> to vector<32x32xf32>
    %cst_14 = arith.constant dense<0.000000e+00> : vector<16x32xf32>
    %18 = tpu.matmul %15, %17, %cst_14 {dimension_numbers = #tpu.dot_dimension_numbers<[1], [0], [0], [1], [0, 0, 1, 1], [], []>} : vector<16x32xf32>, vector<32x32xf32>, vector<16x32xf32> -> vector<16x32xf32>
    %19 = arith.addf %14, %18 : vector<16x32xf32>
    %20 = vector.extract_strided_slice %8 {offsets = [2, 0], sizes = [16, 32], strides = [1, 1]} : vector<18x32xf32> to vector<16x32xf32>
    %c2 = arith.constant 2 : index
    %c0_15 = arith.constant 0 : index
    %c0_16 = arith.constant 0 : index
    %21 = vector.load %arg4[%c2, %c0_15, %c0_16] : memref<3x32x32xf32, #tpu.memory_space<vmem>>, vector<1x32x32xf32>
    %22 = vector.shape_cast %21 : vector<1x32x32xf32> to vector<32x32xf32>
    %cst_17 = arith.constant dense<0.000000e+00> : vector<16x32xf32>
    %23 = tpu.matmul %20, %22, %cst_17 {dimension_numbers = #tpu.dot_dimension_numbers<[1], [0], [0], [1], [0, 0, 1, 1], [], []>} : vector<16x32xf32>, vector<32x32xf32>, vector<16x32xf32> -> vector<16x32xf32>
    %24 = arith.addf %19, %23 : vector<16x32xf32>
    %c0_18 = arith.constant 0 : index
    %c0_19 = arith.constant 0 : index
    %25 = vector.load %arg5[%c0_18, %c0_19] : memref<1x32xf32, #tpu.memory_space<vmem>>, vector<1x32xf32>
    %26 = vector.broadcast %25 : vector<1x32xf32> to vector<16x32xf32>
    %27 = arith.addf %24, %26 : vector<16x32xf32>
    %cst_20 = arith.constant 0.000000e+00 : f32
    %28 = vector.broadcast %cst_20 : f32 to vector<16x32xf32>
    %29 = arith.maximumf %27, %28 : vector<16x32xf32>
    %cst_21 = arith.constant 0.000000e+00 : f32
    %30 = vector.broadcast %cst_21 : f32 to vector<1x32xf32>
    %31 = tpu.concatenate %30, %29, %30 in 0 : vector<1x32xf32>, vector<16x32xf32>, vector<1x32xf32> -> vector<18x32xf32>
    %cst_22 = arith.constant 0.000000e+00 : f32
    %32 = vector.broadcast %cst_22 : f32 to vector<16x32xf32>
    %33 = vector.extract_strided_slice %31 {offsets = [0, 0], sizes = [16, 32], strides = [1, 1]} : vector<18x32xf32> to vector<16x32xf32>
    %c0_23 = arith.constant 0 : index
    %c0_24 = arith.constant 0 : index
    %c0_25 = arith.constant 0 : index
    %34 = vector.load %arg6[%c0_23, %c0_24, %c0_25] : memref<3x32x32xf32, #tpu.memory_space<vmem>>, vector<1x32x32xf32>
    %35 = vector.shape_cast %34 : vector<1x32x32xf32> to vector<32x32xf32>
    %cst_26 = arith.constant dense<0.000000e+00> : vector<16x32xf32>
    %36 = tpu.matmul %33, %35, %cst_26 {dimension_numbers = #tpu.dot_dimension_numbers<[1], [0], [0], [1], [0, 0, 1, 1], [], []>} : vector<16x32xf32>, vector<32x32xf32>, vector<16x32xf32> -> vector<16x32xf32>
    %37 = arith.addf %32, %36 : vector<16x32xf32>
    %38 = vector.extract_strided_slice %31 {offsets = [1, 0], sizes = [16, 32], strides = [1, 1]} : vector<18x32xf32> to vector<16x32xf32>
    %c1_27 = arith.constant 1 : index
    %c0_28 = arith.constant 0 : index
    %c0_29 = arith.constant 0 : index
    %39 = vector.load %arg6[%c1_27, %c0_28, %c0_29] : memref<3x32x32xf32, #tpu.memory_space<vmem>>, vector<1x32x32xf32>
    %40 = vector.shape_cast %39 : vector<1x32x32xf32> to vector<32x32xf32>
    %cst_30 = arith.constant dense<0.000000e+00> : vector<16x32xf32>
    %41 = tpu.matmul %38, %40, %cst_30 {dimension_numbers = #tpu.dot_dimension_numbers<[1], [0], [0], [1], [0, 0, 1, 1], [], []>} : vector<16x32xf32>, vector<32x32xf32>, vector<16x32xf32> -> vector<16x32xf32>
    %42 = arith.addf %37, %41 : vector<16x32xf32>
    %43 = vector.extract_strided_slice %31 {offsets = [2, 0], sizes = [16, 32], strides = [1, 1]} : vector<18x32xf32> to vector<16x32xf32>
    %c2_31 = arith.constant 2 : index
    %c0_32 = arith.constant 0 : index
    %c0_33 = arith.constant 0 : index
    %44 = vector.load %arg6[%c2_31, %c0_32, %c0_33] : memref<3x32x32xf32, #tpu.memory_space<vmem>>, vector<1x32x32xf32>
    %45 = vector.shape_cast %44 : vector<1x32x32xf32> to vector<32x32xf32>
    %cst_34 = arith.constant dense<0.000000e+00> : vector<16x32xf32>
    %46 = tpu.matmul %43, %45, %cst_34 {dimension_numbers = #tpu.dot_dimension_numbers<[1], [0], [0], [1], [0, 0, 1, 1], [], []>} : vector<16x32xf32>, vector<32x32xf32>, vector<16x32xf32> -> vector<16x32xf32>
    %47 = arith.addf %42, %46 : vector<16x32xf32>
    %c0_35 = arith.constant 0 : index
    %c0_36 = arith.constant 0 : index
    %48 = vector.load %arg7[%c0_35, %c0_36] : memref<1x32xf32, #tpu.memory_space<vmem>>, vector<1x32xf32>
    %49 = vector.broadcast %48 : vector<1x32xf32> to vector<16x32xf32>
    %50 = arith.addf %47, %49 : vector<16x32xf32>
    %51 = arith.addf %50, %6 : vector<16x32xf32>
    %cst_37 = arith.constant 0.000000e+00 : f32
    %52 = vector.broadcast %cst_37 : f32 to vector<16x32xf32>
    %53 = arith.maximumf %51, %52 : vector<16x32xf32>
    %c0_38 = arith.constant 0 : index
    %c0_39 = arith.constant 0 : index
    %54 = vector.load %arg12[%c0_38, %c0_39] : memref<64x32xf32, #tpu.memory_space<vmem>>, vector<64x32xf32>
    %c0_40 = arith.constant 0 : index
    %c0_41 = arith.constant 0 : index
    %55 = vector.load %arg13[%c0_40, %c0_41] : memref<32x64xf32, #tpu.memory_space<vmem>>, vector<32x64xf32>
    %56 = arith.mulf %53, %53 : vector<16x32xf32>
    %cst_42 = arith.constant dense<0.000000e+00> : vector<16xf32>
    %57 = vector.multi_reduction <add>, %56, %cst_42 [1] : vector<16x32xf32> to vector<16xf32>
    %58 = vector.shape_cast %57 : vector<16xf32> to vector<16x1xf32>
    %59 = arith.mulf %55, %55 : vector<32x64xf32>
    %cst_43 = arith.constant dense<0.000000e+00> : vector<64xf32>
    %60 = vector.multi_reduction <add>, %59, %cst_43 [0] : vector<32x64xf32> to vector<64xf32>
    %61 = vector.shape_cast %60 : vector<64xf32> to vector<1x64xf32>
    %cst_44 = arith.constant dense<0.000000e+00> : vector<16x64xf32>
    %62 = tpu.matmul %53, %55, %cst_44 {dimension_numbers = #tpu.dot_dimension_numbers<[1], [0], [0], [1], [0, 0, 1, 1], [], []>} : vector<16x32xf32>, vector<32x64xf32>, vector<16x64xf32> -> vector<16x64xf32>
    %63 = vector.broadcast %58 : vector<16x1xf32> to vector<16x64xf32>
    %64 = vector.broadcast %61 : vector<1x64xf32> to vector<16x64xf32>
    %65 = arith.addf %63, %64 : vector<16x64xf32>
    %cst_45 = arith.constant 2.000000e+00 : f32
    %66 = vector.broadcast %cst_45 : f32 to vector<16x64xf32>
    %67 = arith.mulf %66, %62 : vector<16x64xf32>
    %68 = arith.subf %65, %67 : vector<16x64xf32>
    %69 = tpu.reduce_index %68 {axis = 1 : i32, kind = #tpu.reduction_kind<arg_min>} : vector<16x64xf32> -> vector<16xi32>
    %70 = vector.shape_cast %69 : vector<16xi32> to vector<16x1xi32>
    %71 = tpu.iota {dimensions = array<i32: 1>} : vector<16x64xi32>
    %72 = vector.broadcast %70 : vector<16x1xi32> to vector<16x64xi32>
    %73 = arith.cmpi eq, %72, %71 : vector<16x64xi32>
    %74 = arith.extui %73 : vector<16x64xi1> to vector<16x64xi32>
    %75 = arith.sitofp %74 : vector<16x64xi32> to vector<16x64xf32>
    %cst_46 = arith.constant dense<0.000000e+00> : vector<16x32xf32>
    %76 = tpu.matmul %75, %54, %cst_46 {dimension_numbers = #tpu.dot_dimension_numbers<[1], [0], [0], [1], [0, 0, 1, 1], [], []>} : vector<16x64xf32>, vector<64x32xf32>, vector<16x32xf32> -> vector<16x32xf32>
    %77 = arith.subf %53, %76 : vector<16x32xf32>
    %78 = arith.mulf %77, %77 : vector<16x32xf32>
    %79 = vector.shape_cast %78 : vector<16x32xf32> to vector<1x16x32xf32>
    %cst_47 = arith.constant dense<0.000000e+00> : vector<1xf32>
    %80 = vector.multi_reduction <add>, %79, %cst_47 [1, 2] : vector<1x16x32xf32> to vector<1xf32>
    %81 = vector.shape_cast %80 : vector<1xf32> to vector<1x1x1xf32>
    %82 = vector.extract %81[0, 0, 0] : f32 from vector<1x1x1xf32>
    %cst_48 = arith.constant 0.000000e+00 : f32
    %83 = vector.broadcast %cst_48 : f32 to vector<1x32xf32>
    %84 = tpu.concatenate %83, %76, %83 in 0 : vector<1x32xf32>, vector<16x32xf32>, vector<1x32xf32> -> vector<18x32xf32>
    %cst_49 = arith.constant 0.000000e+00 : f32
    %85 = vector.broadcast %cst_49 : f32 to vector<16x32xf32>
    %86 = vector.extract_strided_slice %84 {offsets = [0, 0], sizes = [16, 32], strides = [1, 1]} : vector<18x32xf32> to vector<16x32xf32>
    %c0_50 = arith.constant 0 : index
    %c0_51 = arith.constant 0 : index
    %c0_52 = arith.constant 0 : index
    %87 = vector.load %arg8[%c0_50, %c0_51, %c0_52] : memref<3x32x32xf32, #tpu.memory_space<vmem>>, vector<1x32x32xf32>
    %88 = vector.shape_cast %87 : vector<1x32x32xf32> to vector<32x32xf32>
    %cst_53 = arith.constant dense<0.000000e+00> : vector<16x32xf32>
    %89 = tpu.matmul %86, %88, %cst_53 {dimension_numbers = #tpu.dot_dimension_numbers<[1], [0], [0], [1], [0, 0, 1, 1], [], []>} : vector<16x32xf32>, vector<32x32xf32>, vector<16x32xf32> -> vector<16x32xf32>
    %90 = arith.addf %85, %89 : vector<16x32xf32>
    %91 = vector.extract_strided_slice %84 {offsets = [1, 0], sizes = [16, 32], strides = [1, 1]} : vector<18x32xf32> to vector<16x32xf32>
    %c1_54 = arith.constant 1 : index
    %c0_55 = arith.constant 0 : index
    %c0_56 = arith.constant 0 : index
    %92 = vector.load %arg8[%c1_54, %c0_55, %c0_56] : memref<3x32x32xf32, #tpu.memory_space<vmem>>, vector<1x32x32xf32>
    %93 = vector.shape_cast %92 : vector<1x32x32xf32> to vector<32x32xf32>
    %cst_57 = arith.constant dense<0.000000e+00> : vector<16x32xf32>
    %94 = tpu.matmul %91, %93, %cst_57 {dimension_numbers = #tpu.dot_dimension_numbers<[1], [0], [0], [1], [0, 0, 1, 1], [], []>} : vector<16x32xf32>, vector<32x32xf32>, vector<16x32xf32> -> vector<16x32xf32>
    %95 = arith.addf %90, %94 : vector<16x32xf32>
    %96 = vector.extract_strided_slice %84 {offsets = [2, 0], sizes = [16, 32], strides = [1, 1]} : vector<18x32xf32> to vector<16x32xf32>
    %c2_58 = arith.constant 2 : index
    %c0_59 = arith.constant 0 : index
    %c0_60 = arith.constant 0 : index
    %97 = vector.load %arg8[%c2_58, %c0_59, %c0_60] : memref<3x32x32xf32, #tpu.memory_space<vmem>>, vector<1x32x32xf32>
    %98 = vector.shape_cast %97 : vector<1x32x32xf32> to vector<32x32xf32>
    %cst_61 = arith.constant dense<0.000000e+00> : vector<16x32xf32>
    %99 = tpu.matmul %96, %98, %cst_61 {dimension_numbers = #tpu.dot_dimension_numbers<[1], [0], [0], [1], [0, 0, 1, 1], [], []>} : vector<16x32xf32>, vector<32x32xf32>, vector<16x32xf32> -> vector<16x32xf32>
    %100 = arith.addf %95, %99 : vector<16x32xf32>
    %c0_62 = arith.constant 0 : index
    %c0_63 = arith.constant 0 : index
    %101 = vector.load %arg9[%c0_62, %c0_63] : memref<1x32xf32, #tpu.memory_space<vmem>>, vector<1x32xf32>
    %102 = vector.broadcast %101 : vector<1x32xf32> to vector<16x32xf32>
    %103 = arith.addf %100, %102 : vector<16x32xf32>
    %cst_64 = arith.constant 0.000000e+00 : f32
    %104 = vector.broadcast %cst_64 : f32 to vector<16x32xf32>
    %105 = arith.maximumf %103, %104 : vector<16x32xf32>
    %cst_65 = arith.constant 0.000000e+00 : f32
    %106 = vector.broadcast %cst_65 : f32 to vector<1x32xf32>
    %107 = tpu.concatenate %106, %105, %106 in 0 : vector<1x32xf32>, vector<16x32xf32>, vector<1x32xf32> -> vector<18x32xf32>
    %cst_66 = arith.constant 0.000000e+00 : f32
    %108 = vector.broadcast %cst_66 : f32 to vector<16x32xf32>
    %109 = vector.extract_strided_slice %107 {offsets = [0, 0], sizes = [16, 32], strides = [1, 1]} : vector<18x32xf32> to vector<16x32xf32>
    %c0_67 = arith.constant 0 : index
    %c0_68 = arith.constant 0 : index
    %c0_69 = arith.constant 0 : index
    %110 = vector.load %arg10[%c0_67, %c0_68, %c0_69] : memref<3x32x32xf32, #tpu.memory_space<vmem>>, vector<1x32x32xf32>
    %111 = vector.shape_cast %110 : vector<1x32x32xf32> to vector<32x32xf32>
    %cst_70 = arith.constant dense<0.000000e+00> : vector<16x32xf32>
    %112 = tpu.matmul %109, %111, %cst_70 {dimension_numbers = #tpu.dot_dimension_numbers<[1], [0], [0], [1], [0, 0, 1, 1], [], []>} : vector<16x32xf32>, vector<32x32xf32>, vector<16x32xf32> -> vector<16x32xf32>
    %113 = arith.addf %108, %112 : vector<16x32xf32>
    %114 = vector.extract_strided_slice %107 {offsets = [1, 0], sizes = [16, 32], strides = [1, 1]} : vector<18x32xf32> to vector<16x32xf32>
    %c1_71 = arith.constant 1 : index
    %c0_72 = arith.constant 0 : index
    %c0_73 = arith.constant 0 : index
    %115 = vector.load %arg10[%c1_71, %c0_72, %c0_73] : memref<3x32x32xf32, #tpu.memory_space<vmem>>, vector<1x32x32xf32>
    %116 = vector.shape_cast %115 : vector<1x32x32xf32> to vector<32x32xf32>
    %cst_74 = arith.constant dense<0.000000e+00> : vector<16x32xf32>
    %117 = tpu.matmul %114, %116, %cst_74 {dimension_numbers = #tpu.dot_dimension_numbers<[1], [0], [0], [1], [0, 0, 1, 1], [], []>} : vector<16x32xf32>, vector<32x32xf32>, vector<16x32xf32> -> vector<16x32xf32>
    %118 = arith.addf %113, %117 : vector<16x32xf32>
    %119 = vector.extract_strided_slice %107 {offsets = [2, 0], sizes = [16, 32], strides = [1, 1]} : vector<18x32xf32> to vector<16x32xf32>
    %c2_75 = arith.constant 2 : index
    %c0_76 = arith.constant 0 : index
    %c0_77 = arith.constant 0 : index
    %120 = vector.load %arg10[%c2_75, %c0_76, %c0_77] : memref<3x32x32xf32, #tpu.memory_space<vmem>>, vector<1x32x32xf32>
    %121 = vector.shape_cast %120 : vector<1x32x32xf32> to vector<32x32xf32>
    %cst_78 = arith.constant dense<0.000000e+00> : vector<16x32xf32>
    %122 = tpu.matmul %119, %121, %cst_78 {dimension_numbers = #tpu.dot_dimension_numbers<[1], [0], [0], [1], [0, 0, 1, 1], [], []>} : vector<16x32xf32>, vector<32x32xf32>, vector<16x32xf32> -> vector<16x32xf32>
    %123 = arith.addf %118, %122 : vector<16x32xf32>
    %c0_79 = arith.constant 0 : index
    %c0_80 = arith.constant 0 : index
    %124 = vector.load %arg11[%c0_79, %c0_80] : memref<1x32xf32, #tpu.memory_space<vmem>>, vector<1x32xf32>
    %125 = vector.broadcast %124 : vector<1x32xf32> to vector<16x32xf32>
    %126 = arith.addf %123, %125 : vector<16x32xf32>
    %127 = arith.addf %126, %76 : vector<16x32xf32>
    %cst_81 = arith.constant 0.000000e+00 : f32
    %128 = vector.broadcast %cst_81 : f32 to vector<16x32xf32>
    %129 = arith.maximumf %127, %128 : vector<16x32xf32>
    %c0_82 = arith.constant 0 : index
    %c0_83 = arith.constant 0 : index
    %c0_84 = arith.constant 0 : index
    %130 = vector.load %arg14[%c0_82, %c0_83, %c0_84] : memref<2x32x16xf32, #tpu.memory_space<vmem>>, vector<1x32x16xf32>
    %131 = vector.shape_cast %130 : vector<1x32x16xf32> to vector<32x16xf32>
    %cst_85 = arith.constant dense<0.000000e+00> : vector<16x16xf32>
    %132 = tpu.matmul %129, %131, %cst_85 {dimension_numbers = #tpu.dot_dimension_numbers<[1], [0], [0], [1], [0, 0, 1, 1], [], []>} : vector<16x32xf32>, vector<32x16xf32>, vector<16x16xf32> -> vector<16x16xf32>
    %c0_86 = arith.constant 0 : index
    %c0_87 = arith.constant 0 : index
    %c0_88 = arith.constant 0 : index
    %133 = vector.load %arg15[%c0_86, %c0_87, %c0_88] : memref<2x1x16xf32, #tpu.memory_space<vmem>>, vector<1x1x16xf32>
    %134 = vector.shape_cast %133 : vector<1x1x16xf32> to vector<1x16xf32>
    %135 = vector.broadcast %134 : vector<1x16xf32> to vector<16x16xf32>
    %136 = arith.addf %132, %135 : vector<16x16xf32>
    %137 = math.tanh %136 : vector<16x16xf32>
    %c0_89 = arith.constant 0 : index
    %c0_90 = arith.constant 0 : index
    %c0_91 = arith.constant 0 : index
    %138 = vector.load %arg16[%c0_89, %c0_90, %c0_91] : memref<2x16x32xf32, #tpu.memory_space<vmem>>, vector<1x16x32xf32>
    %139 = vector.shape_cast %138 : vector<1x16x32xf32> to vector<16x32xf32>
    %cst_92 = arith.constant dense<0.000000e+00> : vector<16x32xf32>
    %140 = tpu.matmul %137, %139, %cst_92 {dimension_numbers = #tpu.dot_dimension_numbers<[1], [0], [0], [1], [0, 0, 1, 1], [], []>} : vector<16x16xf32>, vector<16x32xf32>, vector<16x32xf32> -> vector<16x32xf32>
    %c0_93 = arith.constant 0 : index
    %c0_94 = arith.constant 0 : index
    %c0_95 = arith.constant 0 : index
    %141 = vector.load %arg17[%c0_93, %c0_94, %c0_95] : memref<2x1x32xf32, #tpu.memory_space<vmem>>, vector<1x1x32xf32>
    %142 = vector.shape_cast %141 : vector<1x1x32xf32> to vector<1x32xf32>
    %143 = vector.broadcast %142 : vector<1x32xf32> to vector<16x32xf32>
    %144 = arith.addf %140, %143 : vector<16x32xf32>
    %cst_96 = arith.constant dense<0xFF800000> : vector<32xf32>
    %145 = vector.multi_reduction <maximumf>, %144, %cst_96 [0] : vector<16x32xf32> to vector<32xf32>
    %146 = vector.shape_cast %145 : vector<32xf32> to vector<1x32xf32>
    %147 = vector.broadcast %146 : vector<1x32xf32> to vector<16x32xf32>
    %148 = arith.subf %144, %147 : vector<16x32xf32>
    %149 = math.exp %148 : vector<16x32xf32>
    %cst_97 = arith.constant dense<0.000000e+00> : vector<32xf32>
    %150 = vector.multi_reduction <add>, %149, %cst_97 [0] : vector<16x32xf32> to vector<32xf32>
    %151 = vector.shape_cast %150 : vector<32xf32> to vector<1x32xf32>
    %152 = vector.broadcast %151 : vector<1x32xf32> to vector<16x32xf32>
    %153 = arith.divf %149, %152 : vector<16x32xf32>
    %154 = arith.mulf %153, %129 : vector<16x32xf32>
    %cst_98 = arith.constant dense<0.000000e+00> : vector<32xf32>
    %155 = vector.multi_reduction <add>, %154, %cst_98 [0] : vector<16x32xf32> to vector<32xf32>
    %156 = vector.shape_cast %155 : vector<32xf32> to vector<1x32xf32>
    %c1_99 = arith.constant 1 : index
    %c0_100 = arith.constant 0 : index
    %c0_101 = arith.constant 0 : index
    %157 = vector.load %arg14[%c1_99, %c0_100, %c0_101] : memref<2x32x16xf32, #tpu.memory_space<vmem>>, vector<1x32x16xf32>
    %158 = vector.shape_cast %157 : vector<1x32x16xf32> to vector<32x16xf32>
    %cst_102 = arith.constant dense<0.000000e+00> : vector<16x16xf32>
    %159 = tpu.matmul %129, %158, %cst_102 {dimension_numbers = #tpu.dot_dimension_numbers<[1], [0], [0], [1], [0, 0, 1, 1], [], []>} : vector<16x32xf32>, vector<32x16xf32>, vector<16x16xf32> -> vector<16x16xf32>
    %c1_103 = arith.constant 1 : index
    %c0_104 = arith.constant 0 : index
    %c0_105 = arith.constant 0 : index
    %160 = vector.load %arg15[%c1_103, %c0_104, %c0_105] : memref<2x1x16xf32, #tpu.memory_space<vmem>>, vector<1x1x16xf32>
    %161 = vector.shape_cast %160 : vector<1x1x16xf32> to vector<1x16xf32>
    %162 = vector.broadcast %161 : vector<1x16xf32> to vector<16x16xf32>
    %163 = arith.addf %159, %162 : vector<16x16xf32>
    %164 = math.tanh %163 : vector<16x16xf32>
    %c1_106 = arith.constant 1 : index
    %c0_107 = arith.constant 0 : index
    %c0_108 = arith.constant 0 : index
    %165 = vector.load %arg16[%c1_106, %c0_107, %c0_108] : memref<2x16x32xf32, #tpu.memory_space<vmem>>, vector<1x16x32xf32>
    %166 = vector.shape_cast %165 : vector<1x16x32xf32> to vector<16x32xf32>
    %cst_109 = arith.constant dense<0.000000e+00> : vector<16x32xf32>
    %167 = tpu.matmul %164, %166, %cst_109 {dimension_numbers = #tpu.dot_dimension_numbers<[1], [0], [0], [1], [0, 0, 1, 1], [], []>} : vector<16x16xf32>, vector<16x32xf32>, vector<16x32xf32> -> vector<16x32xf32>
    %c1_110 = arith.constant 1 : index
    %c0_111 = arith.constant 0 : index
    %c0_112 = arith.constant 0 : index
    %168 = vector.load %arg17[%c1_110, %c0_111, %c0_112] : memref<2x1x32xf32, #tpu.memory_space<vmem>>, vector<1x1x32xf32>
    %169 = vector.shape_cast %168 : vector<1x1x32xf32> to vector<1x32xf32>
    %170 = vector.broadcast %169 : vector<1x32xf32> to vector<16x32xf32>
    %171 = arith.addf %167, %170 : vector<16x32xf32>
    %cst_113 = arith.constant dense<0xFF800000> : vector<32xf32>
    %172 = vector.multi_reduction <maximumf>, %171, %cst_113 [0] : vector<16x32xf32> to vector<32xf32>
    %173 = vector.shape_cast %172 : vector<32xf32> to vector<1x32xf32>
    %174 = vector.broadcast %173 : vector<1x32xf32> to vector<16x32xf32>
    %175 = arith.subf %171, %174 : vector<16x32xf32>
    %176 = math.exp %175 : vector<16x32xf32>
    %cst_114 = arith.constant dense<0.000000e+00> : vector<32xf32>
    %177 = vector.multi_reduction <add>, %176, %cst_114 [0] : vector<16x32xf32> to vector<32xf32>
    %178 = vector.shape_cast %177 : vector<32xf32> to vector<1x32xf32>
    %179 = vector.broadcast %178 : vector<1x32xf32> to vector<16x32xf32>
    %180 = arith.divf %176, %179 : vector<16x32xf32>
    %181 = arith.mulf %180, %129 : vector<16x32xf32>
    %cst_115 = arith.constant dense<0.000000e+00> : vector<32xf32>
    %182 = vector.multi_reduction <add>, %181, %cst_115 [0] : vector<16x32xf32> to vector<32xf32>
    %183 = vector.shape_cast %182 : vector<32xf32> to vector<1x32xf32>
    %184 = tpu.concatenate %156, %183 in 1 : vector<1x32xf32>, vector<1x32xf32> -> vector<1x64xf32>
    %185 = arith.mulf %184, %184 : vector<1x64xf32>
    %186 = vector.shape_cast %185 : vector<1x64xf32> to vector<1x1x64xf32>
    %cst_116 = arith.constant dense<0.000000e+00> : vector<1xf32>
    %187 = vector.multi_reduction <add>, %186, %cst_116 [1, 2] : vector<1x1x64xf32> to vector<1xf32>
    %188 = vector.shape_cast %187 : vector<1xf32> to vector<1x1x1xf32>
    %189 = vector.extract %188[0, 0, 0] : f32 from vector<1x1x1xf32>
    %190 = math.sqrt %189 : f32
    %cst_117 = arith.constant 9.99999996E-13 : f32
    %191 = arith.maximumf %190, %cst_117 : f32
    %192 = vector.broadcast %191 : f32 to vector<1x64xf32>
    %193 = arith.divf %184, %192 : vector<1x64xf32>
    %194 = vector.shape_cast %193 : vector<1x64xf32> to vector<1x1x64xf32>
    %c0_118 = arith.constant 0 : index
    %c0_119 = arith.constant 0 : index
    %c0_120 = arith.constant 0 : index
    %195 = vector.load %arg18[%c0_118, %c0_119, %c0_120] : memref<1x1x64xf32, #tpu.memory_space<vmem>>, vector<1x1x64xf32>
    tpu.vector_store %arg18[%c0_118, %c0_119, %c0_120], %194 {strides = array<i32>} : memref<1x1x64xf32, #tpu.memory_space<vmem>>, vector<1x1x64xf32>,
    %196 = vector.broadcast %82 : f32 to vector<1x1x1xf32>
    %c0_121 = arith.constant 0 : index
    %c0_122 = arith.constant 0 : index
    %c0_123 = arith.constant 0 : index
    %197 = vector.load %arg19[%c0_121, %c0_122, %c0_123] : memref<1x1x1xf32, #tpu.memory_space<vmem>>, vector<1x1x1xf32>
    tpu.vector_store %arg19[%c0_121, %c0_122, %c0_123], %196 {strides = array<i32>} : memref<1x1x1xf32, #tpu.memory_space<vmem>>, vector<1x1x1xf32>,
    return
  }
  func.func @transform_0(%arg0: i32) -> (i32, i32, i32) {
    %c0_i32 = arith.constant 0 : i32
    %c0_i32_0 = arith.constant 0 : i32
    %c0_i32_1 = arith.constant 0 : i32
    return %arg0, %c0_i32, %c0_i32_0 : i32, i32, i32
  }
  func.func @transform_1(%arg0: i32) -> (i32, i32) {
    %c0_i32 = arith.constant 0 : i32
    %c0_i32_0 = arith.constant 0 : i32
    %c0_i32_1 = arith.constant 0 : i32
    return %c0_i32, %c0_i32_0 : i32, i32
  }
  func.func @transform_2(%arg0: i32) -> (i32, i32) {
    %c0_i32 = arith.constant 0 : i32
    %c0_i32_0 = arith.constant 0 : i32
    %c0_i32_1 = arith.constant 0 : i32
    return %c0_i32, %c0_i32_0 : i32, i32
  }
  func.func @transform_3(%arg0: i32) -> (i32, i32, i32) {
    %c0_i32 = arith.constant 0 : i32
    %c0_i32_0 = arith.constant 0 : i32
    %c0_i32_1 = arith.constant 0 : i32
    %c0_i32_2 = arith.constant 0 : i32
    return %c0_i32, %c0_i32_0, %c0_i32_1 : i32, i32, i32
  }
  func.func @transform_4(%arg0: i32) -> (i32, i32) {
    %c0_i32 = arith.constant 0 : i32
    %c0_i32_0 = arith.constant 0 : i32
    %c0_i32_1 = arith.constant 0 : i32
    return %c0_i32, %c0_i32_0 : i32, i32
  }
  func.func @transform_5(%arg0: i32) -> (i32, i32, i32) {
    %c0_i32 = arith.constant 0 : i32
    %c0_i32_0 = arith.constant 0 : i32
    %c0_i32_1 = arith.constant 0 : i32
    %c0_i32_2 = arith.constant 0 : i32
    return %c0_i32, %c0_i32_0, %c0_i32_1 : i32, i32, i32
  }
  func.func @transform_6(%arg0: i32) -> (i32, i32) {
    %c0_i32 = arith.constant 0 : i32
    %c0_i32_0 = arith.constant 0 : i32
    %c0_i32_1 = arith.constant 0 : i32
    return %c0_i32, %c0_i32_0 : i32, i32
  }
  func.func @transform_7(%arg0: i32) -> (i32, i32, i32) {
    %c0_i32 = arith.constant 0 : i32
    %c0_i32_0 = arith.constant 0 : i32
    %c0_i32_1 = arith.constant 0 : i32
    %c0_i32_2 = arith.constant 0 : i32
    return %c0_i32, %c0_i32_0, %c0_i32_1 : i32, i32, i32
  }
  func.func @transform_8(%arg0: i32) -> (i32, i32) {
    %c0_i32 = arith.constant 0 : i32
    %c0_i32_0 = arith.constant 0 : i32
    %c0_i32_1 = arith.constant 0 : i32
    return %c0_i32, %c0_i32_0 : i32, i32
  }
  func.func @transform_9(%arg0: i32) -> (i32, i32, i32) {
    %c0_i32 = arith.constant 0 : i32
    %c0_i32_0 = arith.constant 0 : i32
    %c0_i32_1 = arith.constant 0 : i32
    %c0_i32_2 = arith.constant 0 : i32
    return %c0_i32, %c0_i32_0, %c0_i32_1 : i32, i32, i32
  }
  func.func @transform_10(%arg0: i32) -> (i32, i32) {
    %c0_i32 = arith.constant 0 : i32
    %c0_i32_0 = arith.constant 0 : i32
    %c0_i32_1 = arith.constant 0 : i32
    return %c0_i32, %c0_i32_0 : i32, i32
  }
  func.func @transform_11(%arg0: i32) -> (i32, i32) {
    %c0_i32 = arith.constant 0 : i32
    %c0_i32_0 = arith.constant 0 : i32
    %c0_i32_1 = arith.constant 0 : i32
    return %c0_i32, %c0_i32_0 : i32, i32
  }
  func.func @transform_12(%arg0: i32) -> (i32, i32) {
    %c0_i32 = arith.constant 0 : i32
    %c0_i32_0 = arith.constant 0 : i32
    %c0_i32_1 = arith.constant 0 : i32
    return %c0_i32, %c0_i32_0 : i32, i32
  }
  func.func @transform_13(%arg0: i32) -> (i32, i32, i32) {
    %c0_i32 = arith.constant 0 : i32
    %c0_i32_0 = arith.constant 0 : i32
    %c0_i32_1 = arith.constant 0 : i32
    %c0_i32_2 = arith.constant 0 : i32
    return %c0_i32, %c0_i32_0, %c0_i32_1 : i32, i32, i32
  }
  func.func @transform_14(%arg0: i32) -> (i32, i32, i32) {
    %c0_i32 = arith.constant 0 : i32
    %c0_i32_0 = arith.constant 0 : i32
    %c0_i32_1 = arith.constant 0 : i32
    %c0_i32_2 = arith.constant 0 : i32
    return %c0_i32, %c0_i32_0, %c0_i32_1 : i32, i32, i32
  }
  func.func @transform_15(%arg0: i32) -> (i32, i32, i32) {
    %c0_i32 = arith.constant 0 : i32
    %c0_i32_0 = arith.constant 0 : i32
    %c0_i32_1 = arith.constant 0 : i32
    %c0_i32_2 = arith.constant 0 : i32
    return %c0_i32, %c0_i32_0, %c0_i32_1 : i32, i32, i32
  }
  func.func @transform_16(%arg0: i32) -> (i32, i32, i32) {
    %c0_i32 = arith.constant 0 : i32
    %c0_i32_0 = arith.constant 0 : i32
    %c0_i32_1 = arith.constant 0 : i32
    %c0_i32_2 = arith.constant 0 : i32
    return %c0_i32, %c0_i32_0, %c0_i32_1 : i32, i32, i32
  }
  func.func @transform_17(%arg0: i32) -> (i32, i32, i32) {
    %c0_i32 = arith.constant 0 : i32
    %c0_i32_0 = arith.constant 0 : i32
    %c0_i32_1 = arith.constant 0 : i32
    return %arg0, %c0_i32, %c0_i32_0 : i32, i32, i32
  }
  func.func @transform_18(%arg0: i32) -> (i32, i32, i32) {
    %c0_i32 = arith.constant 0 : i32
    %c0_i32_0 = arith.constant 0 : i32
    %c0_i32_1 = arith.constant 0 : i32
    return %arg0, %c0_i32, %c0_i32_0 : i32, i32, i32
  }
}

</mosaic_0001>

<llo_original>
// kernel: tpu_custom_call.1
$region0: #{tpu_custom_call.1}
  #allocation0 [shape = 'u32[]', space=smem, size = 0x4, offset = 0x4, fixed_abs, tag = 'smem constant byte address 0x4 - core index']
  #allocation1 [shape = 'u32[144,128]{1,0:T(1,128)}', space=vmem, size = 0x12000, scoped, tag = 'internal scratch']
  %s0 = inlined_call_operand.hbm [shape: f32[2,16,20], index: 0, kind: input, shape index: {}]
  %s1 = inlined_call_operand.hbm [shape: f32[20,32], index: 1, kind: input, shape index: {}]
  %s2 = inlined_call_operand.vmem [shape: f32[1,32], index: 2, kind: input, shape index: {}]
  %s3 = inlined_call_operand.vmem [shape: f32[3,32,32], index: 3, kind: input, shape index: {}]
  %s4 = inlined_call_operand.vmem [shape: f32[1,32], index: 4, kind: input, shape index: {}]
  %s5 = inlined_call_operand.vmem [shape: f32[3,32,32], index: 5, kind: input, shape index: {}]
  %s6 = inlined_call_operand.vmem [shape: f32[1,32], index: 6, kind: input, shape index: {}]
  %s7 = inlined_call_operand.hbm [shape: f32[3,32,32], index: 7, kind: input, shape index: {}]
  %s8 = inlined_call_operand.vmem [shape: f32[1,32], index: 8, kind: input, shape index: {}]
  %s9 = inlined_call_operand.hbm [shape: f32[3,32,32], index: 9, kind: input, shape index: {}]
  %s10 = inlined_call_operand.vmem [shape: f32[1,32], index: 10, kind: input, shape index: {}]
  %s11 = inlined_call_operand.vmem [shape: f32[64,32], index: 11, kind: input, shape index: {}]
  %s12 = inlined_call_operand.hbm [shape: f32[32,64], index: 12, kind: input, shape index: {}]
  %s13 = inlined_call_operand.vmem [shape: f32[2,32,16], index: 13, kind: input, shape index: {}]
  %s14 = inlined_call_operand.vmem [shape: f32[2,1,16], index: 14, kind: input, shape index: {}]
  %s15 = inlined_call_operand.hbm [shape: f32[2,16,32], index: 15, kind: input, shape index: {}]
  %s16 = inlined_call_operand.vmem [shape: f32[2,1,32], index: 16, kind: input, shape index: {}]
  %s17 = inlined_call_operand.hbm [shape: f32[2,1,64], index: 17, kind: output, shape index: {0}]
  %s18 = inlined_call_operand.vmem [shape: f32[2,1,1], index: 18, kind: output, shape index: {1}]
  %19 = xla_tuple %s17, %s18
  %s20 = sld [smem:[#allocation0]]
  $region133: #{tpu_custom_call.1} parent=0
    _
  %s22 = ssub.s32 1, %s20
  %s23 = scalar_select 0, %s22, %s20
  $region1: #{tpu_custom_call.1} parent=0
    #allocation2 [shape = 'u8[16384]{0}', space=vmem, size = 0x4000, scoped, tag = 'input window, operand 0']
    #allocation3 [shape = 's32[2]{0}', space=sflag, size = 0x8, scoped, tag = 'scoped memory for tpu_custom_call.1']
    #allocation4 [shape = 's32[2]{0}', space=sflag, size = 0x8, scoped, tag = 'scoped memory for tpu_custom_call.1']
    #allocation5 [shape = 'u8[12288]{0}', space=vmem, size = 0x3000, scoped, tag = 'input window, operand 1, single buffered']
    #allocation6 [shape = 's32[1]{0}', space=sflag, size = 0x4, scoped, tag = 'scoped memory for tpu_custom_call.1']
    #allocation7 [shape = 'u8[49152]{0}', space=vmem, size = 0xc000, scoped, tag = 'input window, operand 7, single buffered']
    #allocation8 [shape = 'u8[49152]{0}', space=vmem, size = 0xc000, scoped, tag = 'input window, operand 9, single buffered']
    #allocation9 [shape = 's32[1]{0}', space=sflag, size = 0x4, scoped, tag = 'scoped memory for tpu_custom_call.1']
    #allocation10 [shape = 'u8[16384]{0}', space=vmem, size = 0x4000, scoped, tag = 'input window, operand 12, single buffered']
    #allocation11 [shape = 'u8[16384]{0}', space=vmem, size = 0x4000, scoped, tag = 'input window, operand 15, single buffered']
    #allocation12 [shape = 's32[1]{0}', space=sflag, size = 0x4, scoped, tag = 'scoped memory for tpu_custom_call.1']
    #allocation13 [shape = 'u8[1024]{0}', space=vmem, size = 0x400, scoped, tag = 'output window, operand 0']
    %24 = vsyncpa [#allocation3], 0
    %s25 = scalar_lea.sflag [#allocation3], 1
    %26 = vsyncpa %s25, 0
    %27 = vsyncpa [#allocation6], 0
    %28 = vsyncpa [#allocation9], 0
    %29 = vsyncpa [#allocation12], 0
    %30 = vsyncpa [#allocation4], 0
    %s31 = scalar_lea.sflag [#allocation4], 1
    %32 = vsyncpa %s31, 0
    loop: start=0, step=1, limit=4
    $region2: #{tpu_custom_call.1} parent=1 // loop_pre_header
      _
    $region3: #{tpu_custom_call.1} parent=1 // loop_header
      %s34 = sphi 0, %s38
      %p35 = scmp.ge.s32.totalorder %s34, 4
      %s44 = sphi 0, %s46
      %s47 = sphi 0, %s44
      %s48 = sphi 0, %s47
      %s64 = sphi 0, %s48
      %s68 = sphi 0, %s68
      %s70 = sphi 0, %s68
      %s71 = sphi 0, %s70
      %s85 = sphi 0, %s71
      %s89 = sphi 0, %s89
      %s91 = sphi 0, %s89
      %s92 = sphi 0, %s91
      %s106 = sphi 0, %s92
      %s110 = sphi 0, %s110
      %s112 = sphi 0, %s110
      %s113 = sphi 0, %s112
      %s127 = sphi 0, %s113
      %s131 = sphi 0, %s131
      %s133 = sphi 0, %s131
      %s134 = sphi 0, %s133
      %s148 = sphi 0, %s134
      %s152 = sphi 0, %s152
      %s154 = sphi 0, %s152
      %s155 = sphi 0, %s154
      %s169 = sphi 0, %s155
      %s173 = sphi 0, %s173
      %s175 = sphi 0, %s173
      %s176 = sphi 0, %s175
      %s190 = sphi 0, %s176
      %s194 = sphi 0, %s194
      %s196 = sphi 0, %s194
      %s197 = sphi 0, %s196
      %s211 = sphi 0, %s197
      %s215 = sphi 0, %s215
      %s217 = sphi 0, %s215
      %s218 = sphi 0, %s217
      %s232 = sphi 0, %s218
      %s236 = sphi 0, %s236
      %s238 = sphi 0, %s236
      %s239 = sphi 0, %s238
      %s253 = sphi 0, %s239
      %s257 = sphi 0, %s257
      %s259 = sphi 0, %s257
      %s260 = sphi 0, %s259
      %s274 = sphi 0, %s260
      %s278 = sphi 0, %s278
      %s280 = sphi 0, %s278
      %s281 = sphi 0, %s280
      %s295 = sphi 0, %s281
      %s299 = sphi 0, %s299
      %s301 = sphi 0, %s299
      %s302 = sphi 0, %s301
      %s316 = sphi 0, %s302
      %s320 = sphi 0, %s320
      %s322 = sphi 0, %s320
      %s323 = sphi 0, %s322
      %s337 = sphi 0, %s323
      %s341 = sphi 0, %s341
      %s343 = sphi 0, %s341
      %s344 = sphi 0, %s343
      %s358 = sphi 0, %s344
      %s362 = sphi 0, %s362
      %s364 = sphi 0, %s362
      %s365 = sphi 0, %s364
      %s379 = sphi 0, %s365
      %s383 = sphi 0, %s383
      %s385 = sphi 0, %s383
      %s386 = sphi 0, %s385
      %s400 = sphi 0, %s386
      %s406 = sphi 0, %s408
      %s409 = sphi 0, %s406
      %s410 = sphi 0, %s409
      %s426 = sphi 0, %s410
      %s432 = sphi 0, %s434
      %s435 = sphi 0, %s432
      %s436 = sphi 0, %s435
      %s452 = sphi 0, %s436
    $region4: #{tpu_custom_call.1} parent=1 // loop_header_branch
      %37 = sbr.rel (%p35) target = $region8
    $region5: #{tpu_custom_call.1} parent=1 // loop_body
      %s39 = ssub.s32 %s34, 1
      %s40 = ssub.s32 %s34, 2
      %s41 = sadd.s32 %s34, 1
      %s42 = ssub.s32 %s34, %s41
      %p43 = scmp.eq.s32.totalorder %s42, 0
      %s45 = sadd.s32 %s44, 1
      %s46 = scalar_select %p43, %s44, %s45
      %p49 = pneg %p43
      %p50 = scmp.eq.s32.totalorder %s34, 1
      %p51 = por %p49, %p50
      %p52 = scmp.ne.s32.totalorder %s44, %s47
      %p53 = scmp.eq.s32.totalorder %s34, 0
      %p54 = por %p52, %p53
      %p55 = scmp.ne.s32.totalorder %s44, %s47
      %p56 = scmp.eq.s32.totalorder %s39, 1
      %p57 = por %p55, %p56
      %p58 = scmp.ne.s32.totalorder %s47, %s48
      %p59 = scmp.eq.s32.totalorder %s39, 0
      %p60 = por %p58, %p59
      %p61 = scmp.ne.s32.totalorder %s47, %s48
      %p62 = scmp.eq.s32.totalorder %s40, 1
      %p63 = por %p61, %p62
      %p65 = scmp.ne.s32.totalorder %s48, %s64
      %p66 = scmp.eq.s32.totalorder %s40, 0
      %p67 = por %p65, %p66
      %s69 = sadd.s32 %s68, 1
      %p72 = scmp.eq.s32.totalorder %s34, 1
      %p73 = scmp.ne.s32.totalorder %s68, %s70
      %p74 = scmp.eq.s32.totalorder %s34, 0
      %p75 = por %p73, %p74
      %p76 = scmp.ne.s32.totalorder %s68, %s70
      %p77 = scmp.eq.s32.totalorder %s39, 1
      %p78 = por %p76, %p77
      %p79 = scmp.ne.s32.totalorder %s70, %s71
      %p80 = scmp.eq.s32.totalorder %s39, 0
      %p81 = por %p79, %p80
      %p82 = scmp.ne.s32.totalorder %s70, %s71
      %p83 = scmp.eq.s32.totalorder %s40, 1
      %p84 = por %p82, %p83
      %p86 = scmp.ne.s32.totalorder %s71, %s85
      %p87 = scmp.eq.s32.totalorder %s40, 0
      %p88 = por %p86, %p87
      %s90 = sadd.s32 %s89, 1
      %p93 = scmp.eq.s32.totalorder %s34, 1
      %p94 = scmp.ne.s32.totalorder %s89, %s91
      %p95 = scmp.eq.s32.totalorder %s34, 0
      %p96 = por %p94, %p95
      %p97 = scmp.ne.s32.totalorder %s89, %s91
      %p98 = scmp.eq.s32.totalorder %s39, 1
      %p99 = por %p97, %p98
      %p100 = scmp.ne.s32.totalorder %s91, %s92
      %p101 = scmp.eq.s32.totalorder %s39, 0
      %p102 = por %p100, %p101
      %p103 = scmp.ne.s32.totalorder %s91, %s92
      %p104 = scmp.eq.s32.totalorder %s40, 1
      %p105 = por %p103, %p104
      %p107 = scmp.ne.s32.totalorder %s92, %s106
      %p108 = scmp.eq.s32.totalorder %s40, 0
      %p109 = por %p107, %p108
      %s111 = sadd.s32 %s110, 1
      %p114 = scmp.eq.s32.totalorder %s34, 1
      %p115 = scmp.ne.s32.totalorder %s110, %s112
      %p116 = scmp.eq.s32.totalorder %s34, 0
      %p117 = por %p115, %p116
      %p118 = scmp.ne.s32.totalorder %s110, %s112
      %p119 = scmp.eq.s32.totalorder %s39, 1
      %p120 = por %p118, %p119
      %p121 = scmp.ne.s32.totalorder %s112, %s113
      %p122 = scmp.eq.s32.totalorder %s39, 0
      %p123 = por %p121, %p122
      %p124 = scmp.ne.s32.totalorder %s112, %s113
      %p125 = scmp.eq.s32.totalorder %s40, 1
      %p126 = por %p124, %p125
      %p128 = scmp.ne.s32.totalorder %s113, %s127
      %p129 = scmp.eq.s32.totalorder %s40, 0
      %p130 = por %p128, %p129
      %s132 = sadd.s32 %s131, 1
      %p135 = scmp.eq.s32.totalorder %s34, 1
      %p136 = scmp.ne.s32.totalorder %s131, %s133
      %p137 = scmp.eq.s32.totalorder %s34, 0
      %p138 = por %p136, %p137
      %p139 = scmp.ne.s32.totalorder %s131, %s133
      %p140 = scmp.eq.s32.totalorder %s39, 1
      %p141 = por %p139, %p140
      %p142 = scmp.ne.s32.totalorder %s133, %s134
      %p143 = scmp.eq.s32.totalorder %s39, 0
      %p144 = por %p142, %p143
      %p145 = scmp.ne.s32.totalorder %s133, %s134
      %p146 = scmp.eq.s32.totalorder %s40, 1
      %p147 = por %p145, %p146
      %p149 = scmp.ne.s32.totalorder %s134, %s148
      %p150 = scmp.eq.s32.totalorder %s40, 0
      %p151 = por %p149, %p150
      %s153 = sadd.s32 %s152, 1
      %p156 = scmp.eq.s32.totalorder %s34, 1
      %p157 = scmp.ne.s32.totalorder %s152, %s154
      %p158 = scmp.eq.s32.totalorder %s34, 0
      %p159 = por %p157, %p158
      %p160 = scmp.ne.s32.totalorder %s152, %s154
      %p161 = scmp.eq.s32.totalorder %s39, 1
      %p162 = por %p160, %p161
      %p163 = scmp.ne.s32.totalorder %s154, %s155
      %p164 = scmp.eq.s32.totalorder %s39, 0
      %p165 = por %p163, %p164
      %p166 = scmp.ne.s32.totalorder %s154, %s155
      %p167 = scmp.eq.s32.totalorder %s40, 1
      %p168 = por %p166, %p167
      %p170 = scmp.ne.s32.totalorder %s155, %s169
      %p171 = scmp.eq.s32.totalorder %s40, 0
      %p172 = por %p170, %p171
      %s174 = sadd.s32 %s173, 1
      %p177 = scmp.eq.s32.totalorder %s34, 1
      %p178 = scmp.ne.s32.totalorder %s173, %s175
      %p179 = scmp.eq.s32.totalorder %s34, 0
      %p180 = por %p178, %p179
      %p181 = scmp.ne.s32.totalorder %s173, %s175
      %p182 = scmp.eq.s32.totalorder %s39, 1
      %p183 = por %p181, %p182
      %p184 = scmp.ne.s32.totalorder %s175, %s176
      %p185 = scmp.eq.s32.totalorder %s39, 0
      %p186 = por %p184, %p185
      %p187 = scmp.ne.s32.totalorder %s175, %s176
      %p188 = scmp.eq.s32.totalorder %s40, 1
      %p189 = por %p187, %p188
      %p191 = scmp.ne.s32.totalorder %s176, %s190
      %p192 = scmp.eq.s32.totalorder %s40, 0
      %p193 = por %p191, %p192
      %s195 = sadd.s32 %s194, 1
      %p198 = scmp.eq.s32.totalorder %s34, 1
      %p199 = scmp.ne.s32.totalorder %s194, %s196
      %p200 = scmp.eq.s32.totalorder %s34, 0
      %p201 = por %p199, %p200
      %p202 = scmp.ne.s32.totalorder %s194, %s196
      %p203 = scmp.eq.s32.totalorder %s39, 1
      %p204 = por %p202, %p203
      %p205 = scmp.ne.s32.totalorder %s196, %s197
      %p206 = scmp.eq.s32.totalorder %s39, 0
      %p207 = por %p205, %p206
      %p208 = scmp.ne.s32.totalorder %s196, %s197
      %p209 = scmp.eq.s32.totalorder %s40, 1
      %p210 = por %p208, %p209
      %p212 = scmp.ne.s32.totalorder %s197, %s211
      %p213 = scmp.eq.s32.totalorder %s40, 0
      %p214 = por %p212, %p213
      %s216 = sadd.s32 %s215, 1
      %p219 = scmp.eq.s32.totalorder %s34, 1
      %p220 = scmp.ne.s32.totalorder %s215, %s217
      %p221 = scmp.eq.s32.totalorder %s34, 0
      %p222 = por %p220, %p221
      %p223 = scmp.ne.s32.totalorder %s215, %s217
      %p224 = scmp.eq.s32.totalorder %s39, 1
      %p225 = por %p223, %p224
      %p226 = scmp.ne.s32.totalorder %s217, %s218
      %p227 = scmp.eq.s32.totalorder %s39, 0
      %p228 = por %p226, %p227
      %p229 = scmp.ne.s32.totalorder %s217, %s218
      %p230 = scmp.eq.s32.totalorder %s40, 1
      %p231 = por %p229, %p230
      %p233 = scmp.ne.s32.totalorder %s218, %s232
      %p234 = scmp.eq.s32.totalorder %s40, 0
      %p235 = por %p233, %p234
      %s237 = sadd.s32 %s236, 1
      %p240 = scmp.eq.s32.totalorder %s34, 1
      %p241 = scmp.ne.s32.totalorder %s236, %s238
      %p242 = scmp.eq.s32.totalorder %s34, 0
      %p243 = por %p241, %p242
      %p244 = scmp.ne.s32.totalorder %s236, %s238
      %p245 = scmp.eq.s32.totalorder %s39, 1
      %p246 = por %p244, %p245
      %p247 = scmp.ne.s32.totalorder %s238, %s239
      %p248 = scmp.eq.s32.totalorder %s39, 0
      %p249 = por %p247, %p248
      %p250 = scmp.ne.s32.totalorder %s238, %s239
      %p251 = scmp.eq.s32.totalorder %s40, 1
      %p252 = por %p250, %p251
      %p254 = scmp.ne.s32.totalorder %s239, %s253
      %p255 = scmp.eq.s32.totalorder %s40, 0
      %p256 = por %p254, %p255
      %s258 = sadd.s32 %s257, 1
      %p261 = scmp.eq.s32.totalorder %s34, 1
      %p262 = scmp.ne.s32.totalorder %s257, %s259
      %p263 = scmp.eq.s32.totalorder %s34, 0
      %p264 = por %p262, %p263
      %p265 = scmp.ne.s32.totalorder %s257, %s259
      %p266 = scmp.eq.s32.totalorder %s39, 1
      %p267 = por %p265, %p266
      %p268 = scmp.ne.s32.totalorder %s259, %s260
      %p269 = scmp.eq.s32.totalorder %s39, 0
      %p270 = por %p268, %p269
      %p271 = scmp.ne.s32.totalorder %s259, %s260
      %p272 = scmp.eq.s32.totalorder %s40, 1
      %p273 = por %p271, %p272
      %p275 = scmp.ne.s32.totalorder %s260, %s274
      %p276 = scmp.eq.s32.totalorder %s40, 0
      %p277 = por %p275, %p276
      %s279 = sadd.s32 %s278, 1
      %p282 = scmp.eq.s32.totalorder %s34, 1
      %p283 = scmp.ne.s32.totalorder %s278, %s280
      %p284 = scmp.eq.s32.totalorder %s34, 0
      %p285 = por %p283, %p284
      %p286 = scmp.ne.s32.totalorder %s278, %s280
      %p287 = scmp.eq.s32.totalorder %s39, 1
      %p288 = por %p286, %p287
      %p289 = scmp.ne.s32.totalorder %s280, %s281
      %p290 = scmp.eq.s32.totalorder %s39, 0
      %p291 = por %p289, %p290
      %p292 = scmp.ne.s32.totalorder %s280, %s281
      %p293 = scmp.eq.s32.totalorder %s40, 1
      %p294 = por %p292, %p293
      %p296 = scmp.ne.s32.totalorder %s281, %s295
      %p297 = scmp.eq.s32.totalorder %s40, 0
      %p298 = por %p296, %p297
      %s300 = sadd.s32 %s299, 1
      %p303 = scmp.eq.s32.totalorder %s34, 1
      %p304 = scmp.ne.s32.totalorder %s299, %s301
      %p305 = scmp.eq.s32.totalorder %s34, 0
      %p306 = por %p304, %p305
      %p307 = scmp.ne.s32.totalorder %s299, %s301
      %p308 = scmp.eq.s32.totalorder %s39, 1
      %p309 = por %p307, %p308
      %p310 = scmp.ne.s32.totalorder %s301, %s302
      %p311 = scmp.eq.s32.totalorder %s39, 0
      %p312 = por %p310, %p311
      %p313 = scmp.ne.s32.totalorder %s301, %s302
      %p314 = scmp.eq.s32.totalorder %s40, 1
      %p315 = por %p313, %p314
      %p317 = scmp.ne.s32.totalorder %s302, %s316
      %p318 = scmp.eq.s32.totalorder %s40, 0
      %p319 = por %p317, %p318
      %s321 = sadd.s32 %s320, 1
      %p324 = scmp.eq.s32.totalorder %s34, 1
      %p325 = scmp.ne.s32.totalorder %s320, %s322
      %p326 = scmp.eq.s32.totalorder %s34, 0
      %p327 = por %p325, %p326
      %p328 = scmp.ne.s32.totalorder %s320, %s322
      %p329 = scmp.eq.s32.totalorder %s39, 1
      %p330 = por %p328, %p329
      %p331 = scmp.ne.s32.totalorder %s322, %s323
      %p332 = scmp.eq.s32.totalorder %s39, 0
      %p333 = por %p331, %p332
      %p334 = scmp.ne.s32.totalorder %s322, %s323
      %p335 = scmp.eq.s32.totalorder %s40, 1
      %p336 = por %p334, %p335
      %p338 = scmp.ne.s32.totalorder %s323, %s337
      %p339 = scmp.eq.s32.totalorder %s40, 0
      %p340 = por %p338, %p339
      %s342 = sadd.s32 %s341, 1
      %p345 = scmp.eq.s32.totalorder %s34, 1
      %p346 = scmp.ne.s32.totalorder %s341, %s343
      %p347 = scmp.eq.s32.totalorder %s34, 0
      %p348 = por %p346, %p347
      %p349 = scmp.ne.s32.totalorder %s341, %s343
      %p350 = scmp.eq.s32.totalorder %s39, 1
      %p351 = por %p349, %p350
      %p352 = scmp.ne.s32.totalorder %s343, %s344
      %p353 = scmp.eq.s32.totalorder %s39, 0
      %p354 = por %p352, %p353
      %p355 = scmp.ne.s32.totalorder %s343, %s344
      %p356 = scmp.eq.s32.totalorder %s40, 1
      %p357 = por %p355, %p356
      %p359 = scmp.ne.s32.totalorder %s344, %s358
      %p360 = scmp.eq.s32.totalorder %s40, 0
      %p361 = por %p359, %p360
      %s363 = sadd.s32 %s362, 1
      %p366 = scmp.eq.s32.totalorder %s34, 1
      %p367 = scmp.ne.s32.totalorder %s362, %s364
      %p368 = scmp.eq.s32.totalorder %s34, 0
      %p369 = por %p367, %p368
      %p370 = scmp.ne.s32.totalorder %s362, %s364
      %p371 = scmp.eq.s32.totalorder %s39, 1
      %p372 = por %p370, %p371
      %p373 = scmp.ne.s32.totalorder %s364, %s365
      %p374 = scmp.eq.s32.totalorder %s39, 0
      %p375 = por %p373, %p374
      %p376 = scmp.ne.s32.totalorder %s364, %s365
      %p377 = scmp.eq.s32.totalorder %s40, 1
      %p378 = por %p376, %p377
      %p380 = scmp.ne.s32.totalorder %s365, %s379
      %p381 = scmp.eq.s32.totalorder %s40, 0
      %p382 = por %p380, %p381
      %s384 = sadd.s32 %s383, 1
      %p387 = scmp.eq.s32.totalorder %s34, 1
      %p388 = scmp.ne.s32.totalorder %s383, %s385
      %p389 = scmp.eq.s32.totalorder %s34, 0
      %p390 = por %p388, %p389
      %p391 = scmp.ne.s32.totalorder %s383, %s385
      %p392 = scmp.eq.s32.totalorder %s39, 1
      %p393 = por %p391, %p392
      %p394 = scmp.ne.s32.totalorder %s385, %s386
      %p395 = scmp.eq.s32.totalorder %s39, 0
      %p396 = por %p394, %p395
      %p397 = scmp.ne.s32.totalorder %s385, %s386
      %p398 = scmp.eq.s32.totalorder %s40, 1
      %p399 = por %p397, %p398
      %p401 = scmp.ne.s32.totalorder %s386, %s400
      %p402 = scmp.eq.s32.totalorder %s40, 0
      %p403 = por %p401, %p402
      %s404 = ssub.s32 %s34, %s41
      %p405 = scmp.eq.s32.totalorder %s404, 0
      %s407 = sadd.s32 %s406, 1
      %s408 = scalar_select %p405, %s406, %s407
      %p411 = pneg %p405
      %p412 = scmp.eq.s32.totalorder %s34, 1
      %p413 = por %p411, %p412
      %p414 = scmp.ne.s32.totalorder %s406, %s409
      %p415 = scmp.eq.s32.totalorder %s34, 0
      %p416 = por %p414, %p415
      %p417 = scmp.ne.s32.totalorder %s406, %s409
      %p418 = scmp.eq.s32.totalorder %s39, 1
      %p419 = por %p417, %p418
      %p420 = scmp.ne.s32.totalorder %s409, %s410
      %p421 = scmp.eq.s32.totalorder %s39, 0
      %p422 = por %p420, %p421
      %p423 = scmp.ne.s32.totalorder %s409, %s410
      %p424 = scmp.eq.s32.totalorder %s40, 1
      %p425 = por %p423, %p424
      %p427 = scmp.ne.s32.totalorder %s410, %s426
      %p428 = scmp.eq.s32.totalorder %s40, 0
      %p429 = por %p427, %p428
      %s430 = ssub.s32 %s34, %s41
      %p431 = scmp.eq.s32.totalorder %s430, 0
      %s433 = sadd.s32 %s432, 1
      %s434 = scalar_select %p431, %s432, %s433
      %p437 = pneg %p431
      %p438 = scmp.eq.s32.totalorder %s34, 1
      %p439 = por %p437, %p438
      %p440 = scmp.ne.s32.totalorder %s432, %s435
      %p441 = scmp.eq.s32.totalorder %s34, 0
      %p442 = por %p440, %p441
      %p443 = scmp.ne.s32.totalorder %s432, %s435
      %p444 = scmp.eq.s32.totalorder %s39, 1
      %p445 = por %p443, %p444
      %p446 = scmp.ne.s32.totalorder %s435, %s436
      %p447 = scmp.eq.s32.totalorder %s39, 0
      %p448 = por %p446, %p447
      %p449 = scmp.ne.s32.totalorder %s435, %s436
      %p450 = scmp.eq.s32.totalorder %s40, 1
      %p451 = por %p449, %p450
      %p453 = scmp.ne.s32.totalorder %s436, %s452
      %p454 = scmp.eq.s32.totalorder %s40, 0
      %p455 = por %p453, %p454
      %p456 = scmp.le.s32.totalorder 1, %s34
      %p457 = scmp.lt.s32.totalorder %s34, 3
      %p458 = pnand %p456, %p457
      %p459 = pneg %p458
      // Predicated region
      $region9: #{tpu_custom_call.1} parent=5 // pred_check
        _
      $region10: #{tpu_custom_call.1} parent=5 // pred_check_branch
        %461 = sbr.rel (%p458) target = $region12
      $region11: #{tpu_custom_call.1} parent=5 // pred_region
        %s462 = ssub.s32 %s34, 1
        // Predicated region
        $region13: #{tpu_custom_call.1} parent=11 // pred_check
          %p463 = pneg %p81
        $region14: #{tpu_custom_call.1} parent=11 // pred_check_branch
          %465 = sbr.rel (%p463) target = $region16
        $region15: #{tpu_custom_call.1} parent=11 // pred_region
          %s467 = ssub.s32 384, 384
          %468 = vsyncadd [#allocation6], %s467
          %s469 = sshll.u32 [#allocation5], 4
          %s470 = int_to_ptr.vmem [resolvable:$true] %s469
          %475 = dma.hbm_to_vmem [thread:$0]  %s1, 384, %s470, [#allocation6], 128, 128, 8
        $region16: #{tpu_custom_call.1} parent=11 // pred_fallthru
          _
        // Predicated region
        $region17: #{tpu_custom_call.1} parent=11 // pred_check
          %p476 = pneg %p102
        $region18: #{tpu_custom_call.1} parent=11 // pred_check_branch
          %478 = sbr.rel (%p476) target = $region20
        $region19: #{tpu_custom_call.1} parent=11 // pred_region
          _
        $region20: #{tpu_custom_call.1} parent=11 // pred_fallthru
          _
        // Predicated region
        $region21: #{tpu_custom_call.1} parent=11 // pred_check
          %p479 = pneg %p123
        $region22: #{tpu_custom_call.1} parent=11 // pred_check_branch
          %481 = sbr.rel (%p479) target = $region24
        $region23: #{tpu_custom_call.1} parent=11 // pred_region
          _
        $region24: #{tpu_custom_call.1} parent=11 // pred_fallthru
          _
        // Predicated region
        $region25: #{tpu_custom_call.1} parent=11 // pred_check
          %p482 = pneg %p144
        $region26: #{tpu_custom_call.1} parent=11 // pred_check_branch
          %484 = sbr.rel (%p482) target = $region28
        $region27: #{tpu_custom_call.1} parent=11 // pred_region
          _
        $region28: #{tpu_custom_call.1} parent=11 // pred_fallthru
          _
        // Predicated region
        $region29: #{tpu_custom_call.1} parent=11 // pred_check
          %p485 = pneg %p165
        $region30: #{tpu_custom_call.1} parent=11 // pred_check_branch
          %487 = sbr.rel (%p485) target = $region32
        $region31: #{tpu_custom_call.1} parent=11 // pred_region
          _
        $region32: #{tpu_custom_call.1} parent=11 // pred_fallthru
          _
        // Predicated region
        $region33: #{tpu_custom_call.1} parent=11 // pred_check
          %p488 = pneg %p186
        $region34: #{tpu_custom_call.1} parent=11 // pred_check_branch
          %490 = sbr.rel (%p488) target = $region36
        $region35: #{tpu_custom_call.1} parent=11 // pred_region
          _
        $region36: #{tpu_custom_call.1} parent=11 // pred_fallthru
          _
        // Predicated region
        $region37: #{tpu_custom_call.1} parent=11 // pred_check
          %p491 = pneg %p207
        $region38: #{tpu_custom_call.1} parent=11 // pred_check_branch
          %493 = sbr.rel (%p491) target = $region40
        $region39: #{tpu_custom_call.1} parent=11 // pred_region
          %s495 = ssub.s32 1536, 1536
          %496 = vsyncadd [#allocation6], %s495
          %s497 = sshll.u32 [#allocation7], 4
          %s498 = int_to_ptr.vmem [resolvable:$true] %s497
          %503 = dma.hbm_to_vmem [thread:$0]  %s7, 1536, %s498, [#allocation6], 128, 128, 8
        $region40: #{tpu_custom_call.1} parent=11 // pred_fallthru
          _
        // Predicated region
        $region41: #{tpu_custom_call.1} parent=11 // pred_check
          %p504 = pneg %p228
        $region42: #{tpu_custom_call.1} parent=11 // pred_check_branch
          %506 = sbr.rel (%p504) target = $region44
        $region43: #{tpu_custom_call.1} parent=11 // pred_region
          _
        $region44: #{tpu_custom_call.1} parent=11 // pred_fallthru
          _
        // Predicated region
        $region45: #{tpu_custom_call.1} parent=11 // pred_check
          %p507 = pneg %p249
        $region46: #{tpu_custom_call.1} parent=11 // pred_check_branch
          %509 = sbr.rel (%p507) target = $region48
        $region47: #{tpu_custom_call.1} parent=11 // pred_region
          %s511 = ssub.s32 1536, 1536
          %512 = vsyncadd [#allocation9], %s511
          %s513 = sshll.u32 [#allocation8], 4
          %s514 = int_to_ptr.vmem [resolvable:$true] %s513
          %519 = dma.hbm_to_vmem [thread:$0]  %s9, 1536, %s514, [#allocation9], 128, 128, 8
        $region48: #{tpu_custom_call.1} parent=11 // pred_fallthru
          _
        // Predicated region
        $region49: #{tpu_custom_call.1} parent=11 // pred_check
          %p520 = pneg %p270
        $region50: #{tpu_custom_call.1} parent=11 // pred_check_branch
          %522 = sbr.rel (%p520) target = $region52
        $region51: #{tpu_custom_call.1} parent=11 // pred_region
          _
        $region52: #{tpu_custom_call.1} parent=11 // pred_fallthru
          _
        // Predicated region
        $region53: #{tpu_custom_call.1} parent=11 // pred_check
          %p523 = pneg %p291
        $region54: #{tpu_custom_call.1} parent=11 // pred_check_branch
          %525 = sbr.rel (%p523) target = $region56
        $region55: #{tpu_custom_call.1} parent=11 // pred_region
          _
        $region56: #{tpu_custom_call.1} parent=11 // pred_fallthru
          _
        // Predicated region
        $region57: #{tpu_custom_call.1} parent=11 // pred_check
          %p526 = pneg %p312
        $region58: #{tpu_custom_call.1} parent=11 // pred_check_branch
          %528 = sbr.rel (%p526) target = $region60
        $region59: #{tpu_custom_call.1} parent=11 // pred_region
          %s530 = ssub.s32 512, 512
          %531 = vsyncadd [#allocation9], %s530
          %s532 = sshll.u32 [#allocation10], 4
          %s533 = int_to_ptr.vmem [resolvable:$true] %s532
          %538 = dma.hbm_to_vmem [thread:$0]  %s12, 512, %s533, [#allocation9], 128, 128, 8
        $region60: #{tpu_custom_call.1} parent=11 // pred_fallthru
          _
        // Predicated region
        $region61: #{tpu_custom_call.1} parent=11 // pred_check
          %p539 = pneg %p333
        $region62: #{tpu_custom_call.1} parent=11 // pred_check_branch
          %541 = sbr.rel (%p539) target = $region64
        $region63: #{tpu_custom_call.1} parent=11 // pred_region
          _
        $region64: #{tpu_custom_call.1} parent=11 // pred_fallthru
          _
        // Predicated region
        $region65: #{tpu_custom_call.1} parent=11 // pred_check
          %p542 = pneg %p354
        $region66: #{tpu_custom_call.1} parent=11 // pred_check_branch
          %544 = sbr.rel (%p542) target = $region68
        $region67: #{tpu_custom_call.1} parent=11 // pred_region
          _
        $region68: #{tpu_custom_call.1} parent=11 // pred_fallthru
          _
        // Predicated region
        $region69: #{tpu_custom_call.1} parent=11 // pred_check
          %p545 = pneg %p375
        $region70: #{tpu_custom_call.1} parent=11 // pred_check_branch
          %547 = sbr.rel (%p545) target = $region72
        $region71: #{tpu_custom_call.1} parent=11 // pred_region
          %s549 = ssub.s32 512, 512
          %550 = vsyncadd [#allocation12], %s549
          %s551 = sshll.u32 [#allocation11], 4
          %s552 = int_to_ptr.vmem [resolvable:$true] %s551
          %557 = dma.hbm_to_vmem [thread:$0]  %s15, 512, %s552, [#allocation12], 128, 128, 8
        $region72: #{tpu_custom_call.1} parent=11 // pred_fallthru
          _
        // Predicated region
        $region73: #{tpu_custom_call.1} parent=11 // pred_check
          %p558 = pneg %p396
        $region74: #{tpu_custom_call.1} parent=11 // pred_check_branch
          %560 = sbr.rel (%p558) target = $region76
        $region75: #{tpu_custom_call.1} parent=11 // pred_region
          _
        $region76: #{tpu_custom_call.1} parent=11 // pred_fallthru
          _
      $region12: #{tpu_custom_call.1} parent=5 // pred_fallthru
        _
      %p561 = scmp.lt.s32.totalorder %s34, 2
      // Predicated region
      $region77: #{tpu_custom_call.1} parent=5 // pred_check
        %p562 = pneg %p561
      $region78: #{tpu_custom_call.1} parent=5 // pred_check_branch
        %564 = sbr.rel (%p562) target = $region80
      $region79: #{tpu_custom_call.1} parent=5 // pred_region
        // Predicated region
        $region81: #{tpu_custom_call.1} parent=79 // pred_check
          %p565 = pneg %p54
        $region82: #{tpu_custom_call.1} parent=79 // pred_check_branch
          %567 = sbr.rel (%p565) target = $region84
        $region83: #{tpu_custom_call.1} parent=79 // pred_region
          %s568 = sand.u32 %s44, 1
          %s569 = scalar_lea.sflag [#allocation3], %s568
          %s570 = sand.u32 %s44, 1
          %s571 = smul.addr %s570, 16
          %s572 = scalar_lea.vmem [#allocation2], %s571
          %s574 = ssub.s32 256, 256
          %575 = vsyncadd %s569, %s574
          %s576 = smul.addr %s34, 2
          %s577 = smul.addr %s576, 128
          %s578 = scalar_lea.hbm %s0, %s577
          %s579 = sshll.u32 %s572, 4
          %s580 = int_to_ptr.vmem [resolvable:$true] %s579
          %585 = dma.hbm_to_vmem [thread:$0]  %s578, 256, %s580, %s569, 128, 128, 8
        $region84: #{tpu_custom_call.1} parent=79 // pred_fallthru
          _
      $region80: #{tpu_custom_call.1} parent=5 // pred_fallthru
        _
      %p586 = scmp.le.s32.totalorder 1, %s34
      %p587 = scmp.lt.s32.totalorder %s34, 3
      %p588 = pnand %p586, %p587
      %p589 = pneg %p588
      // Predicated region
      $region85: #{tpu_custom_call.1} parent=5 // pred_check
        _
      $region86: #{tpu_custom_call.1} parent=5 // pred_check_branch
        %591 = sbr.rel (%p588) target = $region88
      $region87: #{tpu_custom_call.1} parent=5 // pred_region
        %s592 = ssub.s32 %s34, 1
        %s593 = sand.u32 %s47, 1
        %s594 = scalar_lea.sflag [#allocation3], %s593
        %s595 = sand.u32 %s47, 1
        %s596 = smul.addr %s595, 16
        %s597 = scalar_lea.vmem [#allocation2], %s596
        // Predicated region
        $region89: #{tpu_custom_call.1} parent=87 // pred_check
          %p598 = pneg %p60
        $region90: #{tpu_custom_call.1} parent=87 // pred_check_branch
          %600 = sbr.rel (%p598) target = $region92
        $region91: #{tpu_custom_call.1} parent=87 // pred_region
          %601 = dma.done %s594, 256
        $region92: #{tpu_custom_call.1} parent=87 // pred_fallthru
          _
        // Predicated region
        $region93: #{tpu_custom_call.1} parent=87 // pred_check
          %p602 = pneg %p81
        $region94: #{tpu_custom_call.1} parent=87 // pred_check_branch
          %604 = sbr.rel (%p602) target = $region96
        $region95: #{tpu_custom_call.1} parent=87 // pred_region
          %605 = dma.done [#allocation6], 384
        $region96: #{tpu_custom_call.1} parent=87 // pred_fallthru
          _
        // Predicated region
        $region97: #{tpu_custom_call.1} parent=87 // pred_check
          %p606 = pneg %p207
        $region98: #{tpu_custom_call.1} parent=87 // pred_check_branch
          %608 = sbr.rel (%p606) target = $region100
        $region99: #{tpu_custom_call.1} parent=87 // pred_region
          %609 = dma.done [#allocation6], 1536
        $region100: #{tpu_custom_call.1} parent=87 // pred_fallthru
          _
        // Predicated region
        $region101: #{tpu_custom_call.1} parent=87 // pred_check
          %p610 = pneg %p249
        $region102: #{tpu_custom_call.1} parent=87 // pred_check_branch
          %612 = sbr.rel (%p610) target = $region104
        $region103: #{tpu_custom_call.1} parent=87 // pred_region
          %613 = dma.done [#allocation9], 1536
        $region104: #{tpu_custom_call.1} parent=87 // pred_fallthru
          _
        // Predicated region
        $region105: #{tpu_custom_call.1} parent=87 // pred_check
          %p614 = pneg %p312
        $region106: #{tpu_custom_call.1} parent=87 // pred_check_branch
          %616 = sbr.rel (%p614) target = $region108
        $region107: #{tpu_custom_call.1} parent=87 // pred_region
          %617 = dma.done [#allocation9], 512
        $region108: #{tpu_custom_call.1} parent=87 // pred_fallthru
          _
        // Predicated region
        $region109: #{tpu_custom_call.1} parent=87 // pred_check
          %p618 = pneg %p375
        $region110: #{tpu_custom_call.1} parent=87 // pred_check_branch
          %620 = sbr.rel (%p618) target = $region112
        $region111: #{tpu_custom_call.1} parent=87 // pred_region
          %621 = dma.done [#allocation12], 512
        $region112: #{tpu_custom_call.1} parent=87 // pred_fallthru
          _
        %s622 = sand.u32 %s47, 1
        %s623 = scalar_lea.sflag [#allocation3], %s622
        %s624 = sand.u32 %s47, 1
        %s625 = smul.addr %s624, 16
        %s626 = scalar_lea.vmem [#allocation2], %s625
        %p627 = pneg %p60
        %p628 = pneg %p57
        %p629 = pneg %p81
        %p630 = pneg %p78
        %p631 = pneg %p102
        %p632 = pneg %p99
        %p633 = pneg %p123
        %p634 = pneg %p120
        %p635 = pneg %p144
        %p636 = pneg %p141
        %p637 = pneg %p165
        %p638 = pneg %p162
        %p639 = pneg %p186
        %p640 = pneg %p183
        %p641 = pneg %p207
        %p642 = pneg %p204
        %p643 = pneg %p228
        %p644 = pneg %p225
        %p645 = pneg %p249
        %p646 = pneg %p246
        %p647 = pneg %p270
        %p648 = pneg %p267
        %p649 = pneg %p291
        %p650 = pneg %p288
        %p651 = pneg %p312
        %p652 = pneg %p309
        %p653 = pneg %p333
        %p654 = pneg %p330
        %p655 = pneg %p354
        %p656 = pneg %p351
        %p657 = pneg %p375
        %p658 = pneg %p372
        %p659 = pneg %p396
        %p660 = pneg %p393
        %p661 = pneg %p422
        %p662 = pneg %p419
        %s663 = sand.u32 %s409, 1
        %s664 = scalar_lea.sflag [#allocation4], %s663
        %s665 = sand.u32 %s409, 1
        %s666 = scalar_lea.vmem [#allocation13], %s665
        %p667 = pneg %p448
        %p668 = pneg %p445
        %p669 = scmp.lt.s32.totalorder %s39, 1
        %s670 = scalar_select %p669, %s39, 1
        %s671 = scalar_lea.vmem %s18, %s670
        %p672 = scmp.lt.s32.totalorder %s39, 1
        %s673 = scalar_select %p672, %s39, 1
        %s674 = scalar_lea.vmem %s18, %s673
        %v675 = vld [vmem:[%s597] sm:$0xff]
        %v676 = vld [vmem:[%s597 + $0x8] sm:$0xff]
        %v677 = vld [vmem:[#allocation5] sm:$0xff]
        %v678 = vld [vmem:[#allocation5 + $0x8] sm:$0xff]
        %v679 = vld [vmem:[#allocation5 + $0x10] sm:$0xf]
        %v680 = vld [vmem:[%s2] sm:$0x1]
        %v682 = vlaneseq
        %v683 = vshrl.u32 %v682, 7
        %v684 = vsub.s32 0, %v683
        %v685 = vrot.slane %v680, %v684
        %vm687 = vcmask 162816
        %v689 = vsel %vm687, %v675, 0
        %v692 = vsel %vm687, %v676, 0
        %vm694 = vcmask 1043456
        %v696 = vsel %vm694, %v679, 0
        %698 = vmatprep.subr.mxu0 0.0
        %699 = vmatpush1.msra.mxu0 0.0
        %700 = vmatprep.subr.mxu0 0.0
        %701 = vmatpush1.msra.mxu0 0.0
        %702 = vmatprep.subr.mxu0 0.0
        %703 = vmatpush1.msra.mxu0 0.0
        %704 = vmatprep.subr.mxu0 0.0
        %705 = vmatpush1.msra.mxu0 0.0
        %706 = vmatprep.subr.mxu0 0.0
        %707 = vmatpush1.msra.mxu0 0.0
        %708 = vmatprep.subr.mxu0 0.0
        %709 = vmatpush1.msra.mxu0 0.0
        %710 = vmatprep.subr.mxu0 0.0
        %711 = vmatpush1.msra.mxu0 0.0
        %712 = vmatprep.subr.mxu0 0.0
        %713 = vmatpush1.msra.mxu0 0.0
        %714 = vmatprep.subr.mxu0 0.0
        %715 = vmatpush1.msra.mxu0 0.0
        %716 = vmatprep.subr.mxu0 0.0
        %717 = vmatpush1.msra.mxu0 0.0
        %718 = vmatprep.subr.mxu0 0.0
        %719 = vmatpush1.msra.mxu0 0.0
        %720 = vmatprep.subr.mxu0 0.0
        %721 = vmatpush1.msra.mxu0 0.0
        %722 = vmatprep.subr.mxu0 0.0
        %723 = vmatpush1.msra.mxu0 0.0
        %724 = vmatprep.subr.mxu0 0.0
        %725 = vmatpush1.msra.mxu0 %v696
        %726 = vmatprep.subr.mxu0 0.0
        %727 = vmatpush1.msra.mxu0 %v678
        %728 = vmatprep.subr.mxu0 0.0
        %729 = vmatpush1.msra.mxu0 %v677
        %730 = vmatprep.subr.mxu0 0.0
        %731 = vmatpush2.msra.mxu0 0.0
        %732 = vmatprep.subr.mxu0 0.0
        %733 = vmatpush2.msra.mxu0 0.0
        %734 = vmatprep.subr.mxu0 0.0
        %735 = vmatpush2.msra.mxu0 0.0
        %736 = vmatprep.subr.mxu0 0.0
        %737 = vmatpush2.msra.mxu0 0.0
        %738 = vmatprep.subr.mxu0 0.0
        %739 = vmatpush2.msra.mxu0 0.0
        %740 = vmatprep.subr.mxu0 0.0
        %741 = vmatpush2.msra.mxu0 0.0
        %742 = vmatprep.subr.mxu0 0.0
        %743 = vmatpush2.msra.mxu0 0.0
        %744 = vmatprep.subr.mxu0 0.0
        %745 = vmatpush2.msra.mxu0 0.0
        %746 = vmatprep.subr.mxu0 0.0
        %747 = vmatpush2.msra.mxu0 0.0
        %748 = vmatprep.subr.mxu0 0.0
        %749 = vmatpush2.msra.mxu0 0.0
        %750 = vmatprep.subr.mxu0 0.0
        %751 = vmatpush2.msra.mxu0 0.0
        %752 = vmatprep.subr.mxu0 0.0
        %753 = vmatpush2.msra.mxu0 0.0
        %754 = vmatprep.subr.mxu0 0.0
        %755 = vmatpush2.msra.mxu0 0.0
        %756 = vmatprep.subr.mxu0 0.0
        %757 = vmatpush2.msra.mxu0 0.0
        %758 = vmatprep.subr.mxu0 0.0
        %759 = vmatpush2.msra.mxu0 0.0
        %760 = vmatprep.subr.mxu0 0.0
        %761 = vmatpush2.msra.mxu0 0.0
        %762 = vmatprep.mubr.f32.mxu0 0.0
        %763 = vmatmul.mubr.f32.gmra.mxu0 %v689
        %v764 = vpop.f32.mrf.mxu0
        %v765 = vadd.f32 %v685, %v764
        %v766 = vpop.f32.mrf.mxu0
        %767 = vmatprep.mubr.f32.mxu0 0.0
        %768 = vmatmul.mubr.f32.gmra.mxu0 %v692
        %v769 = vpop.f32.mrf.mxu0
        %v770 = vadd.f32 %v685, %v769
        %v771 = vpop.f32.mrf.mxu0
        %772 = vdwg.mxu0
        %vm775 = vcmask 1040384
        %v776 = vrot.slane %v765, 7
        %v777 = vrot.slane %v770, 7
        %v778 = vsel %vm775, %v776, %v777
        %v781 = vsel %vm775, 0.0, %v776
        %v782 = vsel %vm775, %v777, 0.0
        %v783 = vld [vmem:[%s3] sm:$0xff]
        %v784 = vld [vmem:[%s3 + $0x8] sm:$0xff]
        %v785 = vld [vmem:[%s3 + $0x10] sm:$0xff]
        %v786 = vld [vmem:[%s3 + $0x18] sm:$0xff]
        %s787 = scalar_lea.vmem %s3, 32
        %v788 = vld [vmem:[%s787] sm:$0xff]
        %v789 = vld [vmem:[%s787 + $0x8] sm:$0xff]
        %v790 = vld [vmem:[%s787 + $0x10] sm:$0xff]
        %v791 = vld [vmem:[%s787 + $0x18] sm:$0xff]
        %vm794 = vcmask 1046528
        %v795 = vrot.slane %v781, 1
        %v796 = vrot.slane %v778, 1
        %v797 = vsel %vm794, %v795, %v796
        %v798 = vrot.slane %v782, 1
        %v799 = vsel %vm794, %v796, %v798
        %vm800 = vcmask 261120
        %v801 = vsel %vm800, %v797, 0
        %v803 = vsel %vm800, %v799, 0
        %805 = vmatprep.subr.mxu0 0.0
        %806 = vmatpush1.msra.mxu0 0.0
        %807 = vmatprep.subr.mxu0 0.0
        %808 = vmatpush1.msra.mxu0 0.0
        %809 = vmatprep.subr.mxu0 0.0
        %810 = vmatpush1.msra.mxu0 0.0
        %811 = vmatprep.subr.mxu0 0.0
        %812 = vmatpush1.msra.mxu0 0.0
        %813 = vmatprep.subr.mxu0 0.0
        %814 = vmatpush1.msra.mxu0 0.0
        %815 = vmatprep.subr.mxu0 0.0
        %816 = vmatpush1.msra.mxu0 0.0
        %817 = vmatprep.subr.mxu0 0.0
        %818 = vmatpush1.msra.mxu0 0.0
        %819 = vmatprep.subr.mxu0 0.0
        %820 = vmatpush1.msra.mxu0 0.0
        %821 = vmatprep.subr.mxu0 0.0
        %822 = vmatpush1.msra.mxu0 0.0
        %823 = vmatprep.subr.mxu0 0.0
        %824 = vmatpush1.msra.mxu0 0.0
        %825 = vmatprep.subr.mxu0 0.0
        %826 = vmatpush1.msra.mxu0 0.0
        %827 = vmatprep.subr.mxu0 0.0
        %828 = vmatpush1.msra.mxu0 0.0
        %829 = vmatprep.subr.mxu0 0.0
        %830 = vmatpush1.msra.mxu0 %v791
        %831 = vmatprep.subr.mxu0 0.0
        %832 = vmatpush1.msra.mxu0 %v790
        %833 = vmatprep.subr.mxu0 0.0
        %834 = vmatpush1.msra.mxu0 %v789
        %835 = vmatprep.subr.mxu0 0.0
        %836 = vmatpush1.msra.mxu0 %v788
        %837 = vmatprep.subr.mxu0 0.0
        %838 = vmatpush2.msra.mxu0 0.0
        %839 = vmatprep.subr.mxu0 0.0
        %840 = vmatpush2.msra.mxu0 0.0
        %841 = vmatprep.subr.mxu0 0.0
        %842 = vmatpush2.msra.mxu0 0.0
        %843 = vmatprep.subr.mxu0 0.0
        %844 = vmatpush2.msra.mxu0 0.0
        %845 = vmatprep.subr.mxu0 0.0
        %846 = vmatpush2.msra.mxu0 0.0
        %847 = vmatprep.subr.mxu0 0.0
        %848 = vmatpush2.msra.mxu0 0.0
        %849 = vmatprep.subr.mxu0 0.0
        %850 = vmatpush2.msra.mxu0 0.0
        %851 = vmatprep.subr.mxu0 0.0
        %852 = vmatpush2.msra.mxu0 0.0
        %853 = vmatprep.subr.mxu0 0.0
        %854 = vmatpush2.msra.mxu0 0.0
        %855 = vmatprep.subr.mxu0 0.0
        %856 = vmatpush2.msra.mxu0 0.0
        %857 = vmatprep.subr.mxu0 0.0
        %858 = vmatpush2.msra.mxu0 0.0
        %859 = vmatprep.subr.mxu0 0.0
        %860 = vmatpush2.msra.mxu0 0.0
        %861 = vmatprep.subr.mxu0 0.0
        %862 = vmatpush2.msra.mxu0 0.0
        %863 = vmatprep.subr.mxu0 0.0
        %864 = vmatpush2.msra.mxu0 0.0
        %865 = vmatprep.subr.mxu0 0.0
        %866 = vmatpush2.msra.mxu0 0.0
        %867 = vmatprep.subr.mxu0 0.0
        %868 = vmatpush2.msra.mxu0 0.0
        %869 = vmatprep.mubr.f32.mxu0 0.0
        %870 = vmatmul.mubr.f32.gmra.mxu0 %v801
        %v871 = vpop.f32.mrf.mxu0
        %v872 = vadd.f32 0.0, %v871
        %v873 = vpop.f32.mrf.mxu0
        %874 = vmatprep.mubr.f32.mxu0 0.0
        %875 = vmatmul.mubr.f32.gmra.mxu0 %v803
        %v876 = vpop.f32.mrf.mxu0
        %v877 = vadd.f32 0.0, %v876
        %v878 = vpop.f32.mrf.mxu0
        %879 = vdwg.mxu0
        %v880 = vsel %vm800, %v781, 0
        %v882 = vsel %vm800, %v778, 0
        %884 = vmatprep.subr.mxu0 0.0
        %885 = vmatpush1.msra.mxu0 0.0
        %886 = vmatprep.subr.mxu0 0.0
        %887 = vmatpush1.msra.mxu0 0.0
        %888 = vmatprep.subr.mxu0 0.0
        %889 = vmatpush1.msra.mxu0 0.0
        %890 = vmatprep.subr.mxu0 0.0
        %891 = vmatpush1.msra.mxu0 0.0
        %892 = vmatprep.subr.mxu0 0.0
        %893 = vmatpush1.msra.mxu0 0.0
        %894 = vmatprep.subr.mxu0 0.0
        %895 = vmatpush1.msra.mxu0 0.0
        %896 = vmatprep.subr.mxu0 0.0
        %897 = vmatpush1.msra.mxu0 0.0
        %898 = vmatprep.subr.mxu0 0.0
        %899 = vmatpush1.msra.mxu0 0.0
        %900 = vmatprep.subr.mxu0 0.0
        %901 = vmatpush1.msra.mxu0 0.0
        %902 = vmatprep.subr.mxu0 0.0
        %903 = vmatpush1.msra.mxu0 0.0
        %904 = vmatprep.subr.mxu0 0.0
        %905 = vmatpush1.msra.mxu0 0.0
        %906 = vmatprep.subr.mxu0 0.0
        %907 = vmatpush1.msra.mxu0 0.0
        %908 = vmatprep.subr.mxu0 0.0
        %909 = vmatpush1.msra.mxu0 %v786
        %910 = vmatprep.subr.mxu0 0.0
        %911 = vmatpush1.msra.mxu0 %v785
        %912 = vmatprep.subr.mxu0 0.0
        %913 = vmatpush1.msra.mxu0 %v784
        %914 = vmatprep.subr.mxu0 0.0
        %915 = vmatpush1.msra.mxu0 %v783
        %916 = vmatprep.subr.mxu0 0.0
        %917 = vmatpush2.msra.mxu0 0.0
        %918 = vmatprep.subr.mxu0 0.0
        %919 = vmatpush2.msra.mxu0 0.0
        %920 = vmatprep.subr.mxu0 0.0
        %921 = vmatpush2.msra.mxu0 0.0
        %922 = vmatprep.subr.mxu0 0.0
        %923 = vmatpush2.msra.mxu0 0.0
        %924 = vmatprep.subr.mxu0 0.0
        %925 = vmatpush2.msra.mxu0 0.0
        %926 = vmatprep.subr.mxu0 0.0
        %927 = vmatpush2.msra.mxu0 0.0
        %928 = vmatprep.subr.mxu0 0.0
        %929 = vmatpush2.msra.mxu0 0.0
        %930 = vmatprep.subr.mxu0 0.0
        %931 = vmatpush2.msra.mxu0 0.0
        %932 = vmatprep.subr.mxu0 0.0
        %933 = vmatpush2.msra.mxu0 0.0
        %934 = vmatprep.subr.mxu0 0.0
        %935 = vmatpush2.msra.mxu0 0.0
        %936 = vmatprep.subr.mxu0 0.0
        %937 = vmatpush2.msra.mxu0 0.0
        %938 = vmatprep.subr.mxu0 0.0
        %939 = vmatpush2.msra.mxu0 0.0
        %940 = vmatprep.subr.mxu0 0.0
        %941 = vmatpush2.msra.mxu0 0.0
        %942 = vmatprep.subr.mxu0 0.0
        %943 = vmatpush2.msra.mxu0 0.0
        %944 = vmatprep.subr.mxu0 0.0
        %945 = vmatpush2.msra.mxu0 0.0
        %946 = vmatprep.subr.mxu0 0.0
        %947 = vmatpush2.msra.mxu0 0.0
        %948 = vmatprep.mubr.f32.mxu0 0.0
        %949 = vmatmul.mubr.f32.gmra.mxu0 %v880
        %v950 = vpop.f32.mrf.mxu0
        %v951 = vadd.f32 %v872, %v950
        %v952 = vpop.f32.mrf.mxu0
        %953 = vmatprep.mubr.f32.mxu0 0.0
        %954 = vmatmul.mubr.f32.gmra.mxu0 %v882
        %v955 = vpop.f32.mrf.mxu0
        %v956 = vadd.f32 %v877, %v955
        %v957 = vpop.f32.mrf.mxu0
        %958 = vdwg.mxu0
        %s959 = scalar_lea.vmem %s3, 64
        %v960 = vld [vmem:[%s959] sm:$0xff]
        %v961 = vld [vmem:[%s959 + $0x8] sm:$0xff]
        %v962 = vld [vmem:[%s959 + $0x10] sm:$0xff]
        %v963 = vld [vmem:[%s959 + $0x18] sm:$0xff]
        %vm964 = vcmask 1045504
        %v965 = vrot.slane %v781, 2
        %v966 = vrot.slane %v778, 2
        %v967 = vsel %vm964, %v965, %v966
        %v968 = vrot.slane %v782, 2
        %v969 = vsel %vm964, %v966, %v968
        %v970 = vsel %vm800, %v967, 0
        %v972 = vsel %vm800, %v969, 0
        %974 = vmatprep.subr.mxu0 0.0
        %975 = vmatpush1.msra.mxu0 0.0
        %976 = vmatprep.subr.mxu0 0.0
        %977 = vmatpush1.msra.mxu0 0.0
        %978 = vmatprep.subr.mxu0 0.0
        %979 = vmatpush1.msra.mxu0 0.0
        %980 = vmatprep.subr.mxu0 0.0
        %981 = vmatpush1.msra.mxu0 0.0
        %982 = vmatprep.subr.mxu0 0.0
        %983 = vmatpush1.msra.mxu0 0.0
        %984 = vmatprep.subr.mxu0 0.0
        %985 = vmatpush1.msra.mxu0 0.0
        %986 = vmatprep.subr.mxu0 0.0
        %987 = vmatpush1.msra.mxu0 0.0
        %988 = vmatprep.subr.mxu0 0.0
        %989 = vmatpush1.msra.mxu0 0.0
        %990 = vmatprep.subr.mxu0 0.0
        %991 = vmatpush1.msra.mxu0 0.0
        %992 = vmatprep.subr.mxu0 0.0
        %993 = vmatpush1.msra.mxu0 0.0
        %994 = vmatprep.subr.mxu0 0.0
        %995 = vmatpush1.msra.mxu0 0.0
        %996 = vmatprep.subr.mxu0 0.0
        %997 = vmatpush1.msra.mxu0 0.0
        %998 = vmatprep.subr.mxu0 0.0
        %999 = vmatpush1.msra.mxu0 %v963
        %1000 = vmatprep.subr.mxu0 0.0
        %1001 = vmatpush1.msra.mxu0 %v962
        %1002 = vmatprep.subr.mxu0 0.0
        %1003 = vmatpush1.msra.mxu0 %v961
        %1004 = vmatprep.subr.mxu0 0.0
        %1005 = vmatpush1.msra.mxu0 %v960
        %1006 = vmatprep.subr.mxu0 0.0
        %1007 = vmatpush2.msra.mxu0 0.0
        %1008 = vmatprep.subr.mxu0 0.0
        %1009 = vmatpush2.msra.mxu0 0.0
        %1010 = vmatprep.subr.mxu0 0.0
        %1011 = vmatpush2.msra.mxu0 0.0
        %1012 = vmatprep.subr.mxu0 0.0
        %1013 = vmatpush2.msra.mxu0 0.0
        %1014 = vmatprep.subr.mxu0 0.0
        %1015 = vmatpush2.msra.mxu0 0.0
        %1016 = vmatprep.subr.mxu0 0.0
        %1017 = vmatpush2.msra.mxu0 0.0
        %1018 = vmatprep.subr.mxu0 0.0
        %1019 = vmatpush2.msra.mxu0 0.0
        %1020 = vmatprep.subr.mxu0 0.0
        %1021 = vmatpush2.msra.mxu0 0.0
        %1022 = vmatprep.subr.mxu0 0.0
        %1023 = vmatpush2.msra.mxu0 0.0
        %1024 = vmatprep.subr.mxu0 0.0
        %1025 = vmatpush2.msra.mxu0 0.0
        %1026 = vmatprep.subr.mxu0 0.0
        %1027 = vmatpush2.msra.mxu0 0.0
        %1028 = vmatprep.subr.mxu0 0.0
        %1029 = vmatpush2.msra.mxu0 0.0
        %1030 = vmatprep.subr.mxu0 0.0
        %1031 = vmatpush2.msra.mxu0 0.0
        %1032 = vmatprep.subr.mxu0 0.0
        %1033 = vmatpush2.msra.mxu0 0.0
        %1034 = vmatprep.subr.mxu0 0.0
        %1035 = vmatpush2.msra.mxu0 0.0
        %1036 = vmatprep.subr.mxu0 0.0
        %1037 = vmatpush2.msra.mxu0 0.0
        %1038 = vmatprep.mubr.f32.mxu0 0.0
        %1039 = vmatmul.mubr.f32.gmra.mxu0 %v970
        %v1040 = vpop.f32.mrf.mxu0
        %v1041 = vadd.f32 0.0, %v1040
        %v1042 = vpop.f32.mrf.mxu0
        %1043 = vmatprep.mubr.f32.mxu0 0.0
        %1044 = vmatmul.mubr.f32.gmra.mxu0 %v972
        %v1045 = vpop.f32.mrf.mxu0
        %v1046 = vadd.f32 0.0, %v1045
        %v1047 = vpop.f32.mrf.mxu0
        %1048 = vdwg.mxu0
        %v1049 = vadd.f32 %v951, %v1041
        %v1050 = vadd.f32 %v956, %v1046
        %v1051 = vld [vmem:[%s4] sm:$0x1]
        %v1053 = vlaneseq
        %v1054 = vshrl.u32 %v1053, 7
        %v1055 = vsub.s32 0, %v1054
        %v1056 = vrot.slane %v1051, %v1055
        %v1058 = vadd.f32 %v1049, %v1056
        %v1059 = vadd.f32 %v1050, %v1056
        %v1060 = vmax.f32 %v1058, 0.0
        %v1061 = vmax.f32 %v1059, 0.0
        %v1064 = vrot.slane %v1060, 7
        %v1065 = vrot.slane %v1061, 7
        %v1066 = vsel %vm775, %v1064, %v1065
        %v1069 = vsel %vm775, 0.0, %v1064
        %v1070 = vsel %vm775, %v1065, 0.0
        %v1071 = vld [vmem:[%s5] sm:$0xff]
        %v1072 = vld [vmem:[%s5 + $0x8] sm:$0xff]
        %v1073 = vld [vmem:[%s5 + $0x10] sm:$0xff]
        %v1074 = vld [vmem:[%s5 + $0x18] sm:$0xff]
        %s1075 = scalar_lea.vmem %s5, 32
        %v1076 = vld [vmem:[%s1075] sm:$0xff]
        %v1077 = vld [vmem:[%s1075 + $0x8] sm:$0xff]
        %v1078 = vld [vmem:[%s1075 + $0x10] sm:$0xff]
        %v1079 = vld [vmem:[%s1075 + $0x18] sm:$0xff]
        %v1082 = vrot.slane %v1069, 1
        %v1083 = vrot.slane %v1066, 1
        %v1084 = vsel %vm794, %v1082, %v1083
        %v1085 = vrot.slane %v1070, 1
        %v1086 = vsel %vm794, %v1083, %v1085
        %v1087 = vsel %vm800, %v1084, 0
        %v1089 = vsel %vm800, %v1086, 0
        %1091 = vmatprep.subr.mxu0 0.0
        %1092 = vmatpush1.msra.mxu0 0.0
        %1093 = vmatprep.subr.mxu0 0.0
        %1094 = vmatpush1.msra.mxu0 0.0
        %1095 = vmatprep.subr.mxu0 0.0
        %1096 = vmatpush1.msra.mxu0 0.0
        %1097 = vmatprep.subr.mxu0 0.0
        %1098 = vmatpush1.msra.mxu0 0.0
        %1099 = vmatprep.subr.mxu0 0.0
        %1100 = vmatpush1.msra.mxu0 0.0
        %1101 = vmatprep.subr.mxu0 0.0
        %1102 = vmatpush1.msra.mxu0 0.0
        %1103 = vmatprep.subr.mxu0 0.0
        %1104 = vmatpush1.msra.mxu0 0.0
        %1105 = vmatprep.subr.mxu0 0.0
        %1106 = vmatpush1.msra.mxu0 0.0
        %1107 = vmatprep.subr.mxu0 0.0
        %1108 = vmatpush1.msra.mxu0 0.0
        %1109 = vmatprep.subr.mxu0 0.0
        %1110 = vmatpush1.msra.mxu0 0.0
        %1111 = vmatprep.subr.mxu0 0.0
        %1112 = vmatpush1.msra.mxu0 0.0
        %1113 = vmatprep.subr.mxu0 0.0
        %1114 = vmatpush1.msra.mxu0 0.0
        %1115 = vmatprep.subr.mxu0 0.0
        %1116 = vmatpush1.msra.mxu0 %v1079
        %1117 = vmatprep.subr.mxu0 0.0
        %1118 = vmatpush1.msra.mxu0 %v1078
        %1119 = vmatprep.subr.mxu0 0.0
        %1120 = vmatpush1.msra.mxu0 %v1077
        %1121 = vmatprep.subr.mxu0 0.0
        %1122 = vmatpush1.msra.mxu0 %v1076
        %1123 = vmatprep.subr.mxu0 0.0
        %1124 = vmatpush2.msra.mxu0 0.0
        %1125 = vmatprep.subr.mxu0 0.0
        %1126 = vmatpush2.msra.mxu0 0.0
        %1127 = vmatprep.subr.mxu0 0.0
        %1128 = vmatpush2.msra.mxu0 0.0
        %1129 = vmatprep.subr.mxu0 0.0
        %1130 = vmatpush2.msra.mxu0 0.0
        %1131 = vmatprep.subr.mxu0 0.0
        %1132 = vmatpush2.msra.mxu0 0.0
        %1133 = vmatprep.subr.mxu0 0.0
        %1134 = vmatpush2.msra.mxu0 0.0
        %1135 = vmatprep.subr.mxu0 0.0
        %1136 = vmatpush2.msra.mxu0 0.0
        %1137 = vmatprep.subr.mxu0 0.0
        %1138 = vmatpush2.msra.mxu0 0.0
        %1139 = vmatprep.subr.mxu0 0.0
        %1140 = vmatpush2.msra.mxu0 0.0
        %1141 = vmatprep.subr.mxu0 0.0
        %1142 = vmatpush2.msra.mxu0 0.0
        %1143 = vmatprep.subr.mxu0 0.0
        %1144 = vmatpush2.msra.mxu0 0.0
        %1145 = vmatprep.subr.mxu0 0.0
        %1146 = vmatpush2.msra.mxu0 0.0
        %1147 = vmatprep.subr.mxu0 0.0
        %1148 = vmatpush2.msra.mxu0 0.0
        %1149 = vmatprep.subr.mxu0 0.0
        %1150 = vmatpush2.msra.mxu0 0.0
        %1151 = vmatprep.subr.mxu0 0.0
        %1152 = vmatpush2.msra.mxu0 0.0
        %1153 = vmatprep.subr.mxu0 0.0
        %1154 = vmatpush2.msra.mxu0 0.0
        %1155 = vmatprep.mubr.f32.mxu0 0.0
        %1156 = vmatmul.mubr.f32.gmra.mxu0 %v1087
        %v1157 = vpop.f32.mrf.mxu0
        %v1158 = vadd.f32 0.0, %v1157
        %v1159 = vpop.f32.mrf.mxu0
        %1160 = vmatprep.mubr.f32.mxu0 0.0
        %1161 = vmatmul.mubr.f32.gmra.mxu0 %v1089
        %v1162 = vpop.f32.mrf.mxu0
        %v1163 = vadd.f32 0.0, %v1162
        %v1164 = vpop.f32.mrf.mxu0
        %1165 = vdwg.mxu0
        %v1166 = vsel %vm800, %v1069, 0
        %v1168 = vsel %vm800, %v1066, 0
        %1170 = vmatprep.subr.mxu0 0.0
        %1171 = vmatpush1.msra.mxu0 0.0
        %1172 = vmatprep.subr.mxu0 0.0
        %1173 = vmatpush1.msra.mxu0 0.0
        %1174 = vmatprep.subr.mxu0 0.0
        %1175 = vmatpush1.msra.mxu0 0.0
        %1176 = vmatprep.subr.mxu0 0.0
        %1177 = vmatpush1.msra.mxu0 0.0
        %1178 = vmatprep.subr.mxu0 0.0
        %1179 = vmatpush1.msra.mxu0 0.0
        %1180 = vmatprep.subr.mxu0 0.0
        %1181 = vmatpush1.msra.mxu0 0.0
        %1182 = vmatprep.subr.mxu0 0.0
        %1183 = vmatpush1.msra.mxu0 0.0
        %1184 = vmatprep.subr.mxu0 0.0
        %1185 = vmatpush1.msra.mxu0 0.0
        %1186 = vmatprep.subr.mxu0 0.0
        %1187 = vmatpush1.msra.mxu0 0.0
        %1188 = vmatprep.subr.mxu0 0.0
        %1189 = vmatpush1.msra.mxu0 0.0
        %1190 = vmatprep.subr.mxu0 0.0
        %1191 = vmatpush1.msra.mxu0 0.0
        %1192 = vmatprep.subr.mxu0 0.0
        %1193 = vmatpush1.msra.mxu0 0.0
        %1194 = vmatprep.subr.mxu0 0.0
        %1195 = vmatpush1.msra.mxu0 %v1074
        %1196 = vmatprep.subr.mxu0 0.0
        %1197 = vmatpush1.msra.mxu0 %v1073
        %1198 = vmatprep.subr.mxu0 0.0
        %1199 = vmatpush1.msra.mxu0 %v1072
        %1200 = vmatprep.subr.mxu0 0.0
        %1201 = vmatpush1.msra.mxu0 %v1071
        %1202 = vmatprep.subr.mxu0 0.0
        %1203 = vmatpush2.msra.mxu0 0.0
        %1204 = vmatprep.subr.mxu0 0.0
        %1205 = vmatpush2.msra.mxu0 0.0
        %1206 = vmatprep.subr.mxu0 0.0
        %1207 = vmatpush2.msra.mxu0 0.0
        %1208 = vmatprep.subr.mxu0 0.0
        %1209 = vmatpush2.msra.mxu0 0.0
        %1210 = vmatprep.subr.mxu0 0.0
        %1211 = vmatpush2.msra.mxu0 0.0
        %1212 = vmatprep.subr.mxu0 0.0
        %1213 = vmatpush2.msra.mxu0 0.0
        %1214 = vmatprep.subr.mxu0 0.0
        %1215 = vmatpush2.msra.mxu0 0.0
        %1216 = vmatprep.subr.mxu0 0.0
        %1217 = vmatpush2.msra.mxu0 0.0
        %1218 = vmatprep.subr.mxu0 0.0
        %1219 = vmatpush2.msra.mxu0 0.0
        %1220 = vmatprep.subr.mxu0 0.0
        %1221 = vmatpush2.msra.mxu0 0.0
        %1222 = vmatprep.subr.mxu0 0.0
        %1223 = vmatpush2.msra.mxu0 0.0
        %1224 = vmatprep.subr.mxu0 0.0
        %1225 = vmatpush2.msra.mxu0 0.0
        %1226 = vmatprep.subr.mxu0 0.0
        %1227 = vmatpush2.msra.mxu0 0.0
        %1228 = vmatprep.subr.mxu0 0.0
        %1229 = vmatpush2.msra.mxu0 0.0
        %1230 = vmatprep.subr.mxu0 0.0
        %1231 = vmatpush2.msra.mxu0 0.0
        %1232 = vmatprep.subr.mxu0 0.0
        %1233 = vmatpush2.msra.mxu0 0.0
        %1234 = vmatprep.mubr.f32.mxu0 0.0
        %1235 = vmatmul.mubr.f32.gmra.mxu0 %v1166
        %v1236 = vpop.f32.mrf.mxu0
        %v1237 = vadd.f32 %v1158, %v1236
        %v1238 = vpop.f32.mrf.mxu0
        %1239 = vmatprep.mubr.f32.mxu0 0.0
        %1240 = vmatmul.mubr.f32.gmra.mxu0 %v1168
        %v1241 = vpop.f32.mrf.mxu0
        %v1242 = vadd.f32 %v1163, %v1241
        %v1243 = vpop.f32.mrf.mxu0
        %1244 = vdwg.mxu0
        %s1245 = scalar_lea.vmem %s5, 64
        %v1246 = vld [vmem:[%s1245] sm:$0xff]
        %v1247 = vld [vmem:[%s1245 + $0x8] sm:$0xff]
        %v1248 = vld [vmem:[%s1245 + $0x10] sm:$0xff]
        %v1249 = vld [vmem:[%s1245 + $0x18] sm:$0xff]
        %v1250 = vrot.slane %v1069, 2
        %v1251 = vrot.slane %v1066, 2
        %v1252 = vsel %vm964, %v1250, %v1251
        %v1253 = vrot.slane %v1070, 2
        %v1254 = vsel %vm964, %v1251, %v1253
        %v1255 = vsel %vm800, %v1252, 0
        %v1257 = vsel %vm800, %v1254, 0
        %1259 = vmatprep.subr.mxu0 0.0
        %1260 = vmatpush1.msra.mxu0 0.0
        %1261 = vmatprep.subr.mxu0 0.0
        %1262 = vmatpush1.msra.mxu0 0.0
        %1263 = vmatprep.subr.mxu0 0.0
        %1264 = vmatpush1.msra.mxu0 0.0
        %1265 = vmatprep.subr.mxu0 0.0
        %1266 = vmatpush1.msra.mxu0 0.0
        %1267 = vmatprep.subr.mxu0 0.0
        %1268 = vmatpush1.msra.mxu0 0.0
        %1269 = vmatprep.subr.mxu0 0.0
        %1270 = vmatpush1.msra.mxu0 0.0
        %1271 = vmatprep.subr.mxu0 0.0
        %1272 = vmatpush1.msra.mxu0 0.0
        %1273 = vmatprep.subr.mxu0 0.0
        %1274 = vmatpush1.msra.mxu0 0.0
        %1275 = vmatprep.subr.mxu0 0.0
        %1276 = vmatpush1.msra.mxu0 0.0
        %1277 = vmatprep.subr.mxu0 0.0
        %1278 = vmatpush1.msra.mxu0 0.0
        %1279 = vmatprep.subr.mxu0 0.0
        %1280 = vmatpush1.msra.mxu0 0.0
        %1281 = vmatprep.subr.mxu0 0.0
        %1282 = vmatpush1.msra.mxu0 0.0
        %1283 = vmatprep.subr.mxu0 0.0
        %1284 = vmatpush1.msra.mxu0 %v1249
        %1285 = vmatprep.subr.mxu0 0.0
        %1286 = vmatpush1.msra.mxu0 %v1248
        %1287 = vmatprep.subr.mxu0 0.0
        %1288 = vmatpush1.msra.mxu0 %v1247
        %1289 = vmatprep.subr.mxu0 0.0
        %1290 = vmatpush1.msra.mxu0 %v1246
        %1291 = vmatprep.subr.mxu0 0.0
        %1292 = vmatpush2.msra.mxu0 0.0
        %1293 = vmatprep.subr.mxu0 0.0
        %1294 = vmatpush2.msra.mxu0 0.0
        %1295 = vmatprep.subr.mxu0 0.0
        %1296 = vmatpush2.msra.mxu0 0.0
        %1297 = vmatprep.subr.mxu0 0.0
        %1298 = vmatpush2.msra.mxu0 0.0
        %1299 = vmatprep.subr.mxu0 0.0
        %1300 = vmatpush2.msra.mxu0 0.0
        %1301 = vmatprep.subr.mxu0 0.0
        %1302 = vmatpush2.msra.mxu0 0.0
        %1303 = vmatprep.subr.mxu0 0.0
        %1304 = vmatpush2.msra.mxu0 0.0
        %1305 = vmatprep.subr.mxu0 0.0
        %1306 = vmatpush2.msra.mxu0 0.0
        %1307 = vmatprep.subr.mxu0 0.0
        %1308 = vmatpush2.msra.mxu0 0.0
        %1309 = vmatprep.subr.mxu0 0.0
        %1310 = vmatpush2.msra.mxu0 0.0
        %1311 = vmatprep.subr.mxu0 0.0
        %1312 = vmatpush2.msra.mxu0 0.0
        %1313 = vmatprep.subr.mxu0 0.0
        %1314 = vmatpush2.msra.mxu0 0.0
        %1315 = vmatprep.subr.mxu0 0.0
        %1316 = vmatpush2.msra.mxu0 0.0
        %1317 = vmatprep.subr.mxu0 0.0
        %1318 = vmatpush2.msra.mxu0 0.0
        %1319 = vmatprep.subr.mxu0 0.0
        %1320 = vmatpush2.msra.mxu0 0.0
        %1321 = vmatprep.subr.mxu0 0.0
        %1322 = vmatpush2.msra.mxu0 0.0
        %1323 = vmatprep.mubr.f32.mxu0 0.0
        %1324 = vmatmul.mubr.f32.gmra.mxu0 %v1255
        %v1325 = vpop.f32.mrf.mxu0
        %v1326 = vadd.f32 0.0, %v1325
        %v1327 = vpop.f32.mrf.mxu0
        %1328 = vmatprep.mubr.f32.mxu0 0.0
        %1329 = vmatmul.mubr.f32.gmra.mxu0 %v1257
        %v1330 = vpop.f32.mrf.mxu0
        %v1331 = vadd.f32 0.0, %v1330
        %v1332 = vpop.f32.mrf.mxu0
        %1333 = vdwg.mxu0
        %v1334 = vadd.f32 %v1237, %v1326
        %v1335 = vadd.f32 %v1242, %v1331
        %v1336 = vld [vmem:[%s6] sm:$0x1]
        %v1338 = vlaneseq
        %v1339 = vshrl.u32 %v1338, 7
        %v1340 = vsub.s32 0, %v1339
        %v1341 = vrot.slane %v1336, %v1340
        %v1343 = vadd.f32 %v1334, %v1341
        %v1344 = vadd.f32 %v1335, %v1341
        %v1345 = vadd.f32 %v1343, %v765
        %v1346 = vadd.f32 %v1344, %v770
        %v1347 = vmax.f32 %v1345, 0.0
        %v1348 = vmax.f32 %v1346, 0.0
        %v1349 = vld [vmem:[%s11] sm:$0xff]
        %v1350 = vld [vmem:[%s11 + $0x8] sm:$0xff]
        %v1351 = vld [vmem:[%s11 + $0x10] sm:$0xff]
        %v1352 = vld [vmem:[%s11 + $0x18] sm:$0xff]
        %v1353 = vld [vmem:[%s11 + $0x20] sm:$0xff]
        %v1354 = vld [vmem:[%s11 + $0x28] sm:$0xff]
        %v1355 = vld [vmem:[%s11 + $0x30] sm:$0xff]
        %v1356 = vld [vmem:[%s11 + $0x38] sm:$0xff]
        %v1357 = vld [vmem:[#allocation10] sm:$0xff]
        %v1358 = vld [vmem:[#allocation10 + $0x8] sm:$0xff]
        %v1359 = vld [vmem:[#allocation10 + $0x10] sm:$0xff]
        %v1360 = vld [vmem:[#allocation10 + $0x18] sm:$0xff]
        %v1361 = vmul.f32 %v1347, %v1347
        %v1362 = vmul.f32 %v1348, %v1348
        %v1363 = vsel %vm800, %v1361, 0.0
        %1364 = vadd.xlane.f32.xlu0 %v1363
        %v1365 = vpop.xlane.xlu0 %1364
        %v1366 = vsel %vm800, %v1362, 0.0
        %1367 = vadd.xlane.f32.xlu0 %v1366
        %v1368 = vpop.xlane.xlu0 %1367
        %v1369 = vmul.f32 %v1357, %v1357
        %v1370 = vmul.f32 %v1358, %v1358
        %v1371 = vmul.f32 %v1359, %v1359
        %v1372 = vmul.f32 %v1360, %v1360
        %vm1373 = vcmask 523264
        %v1374 = vsel %vm1373, %v1369, 0.0
        %v1375 = vsel %vm1373, %v1370, 0.0
        %v1376 = vadd.f32 %v1374, %v1375
        %v1377 = vsel %vm1373, %v1371, 0.0
        %v1378 = vadd.f32 %v1376, %v1377
        %v1379 = vsel %vm1373, %v1372, 0.0
        %v1380 = vadd.f32 %v1378, %v1379
        %v1381 = vrot.slane %v1380, 4
        %v1382 = vadd.f32 %v1380, %v1381
        %v1383 = vrot.slane %v1382, 2
        %v1384 = vadd.f32 %v1382, %v1383
        %v1385 = vrot.slane %v1384, 1
        %v1386 = vadd.f32 %v1384, %v1385
        %v1388 = vsel %vm800, %v1347, 0
        %v1391 = vsel %vm800, %v1348, 0
        %1393 = vmatprep.subr.mxu0 0.0
        %1394 = vmatpush1.msra.mxu0 0.0
        %1395 = vmatprep.subr.mxu0 0.0
        %1396 = vmatpush1.msra.mxu0 0.0
        %1397 = vmatprep.subr.mxu0 0.0
        %1398 = vmatpush1.msra.mxu0 0.0
        %1399 = vmatprep.subr.mxu0 0.0
        %1400 = vmatpush1.msra.mxu0 0.0
        %1401 = vmatprep.subr.mxu0 0.0
        %1402 = vmatpush1.msra.mxu0 0.0
        %1403 = vmatprep.subr.mxu0 0.0
        %1404 = vmatpush1.msra.mxu0 0.0
        %1405 = vmatprep.subr.mxu0 0.0
        %1406 = vmatpush1.msra.mxu0 0.0
        %1407 = vmatprep.subr.mxu0 0.0
        %1408 = vmatpush1.msra.mxu0 0.0
        %1409 = vmatprep.subr.mxu0 0.0
        %1410 = vmatpush1.msra.mxu0 0.0
        %1411 = vmatprep.subr.mxu0 0.0
        %1412 = vmatpush1.msra.mxu0 0.0
        %1413 = vmatprep.subr.mxu0 0.0
        %1414 = vmatpush1.msra.mxu0 0.0
        %1415 = vmatprep.subr.mxu0 0.0
        %1416 = vmatpush1.msra.mxu0 0.0
        %1417 = vmatprep.subr.mxu0 0.0
        %1418 = vmatpush1.msra.mxu0 %v1360
        %1419 = vmatprep.subr.mxu0 0.0
        %1420 = vmatpush1.msra.mxu0 %v1359
        %1421 = vmatprep.subr.mxu0 0.0
        %1422 = vmatpush1.msra.mxu0 %v1358
        %1423 = vmatprep.subr.mxu0 0.0
        %1424 = vmatpush1.msra.mxu0 %v1357
        %1425 = vmatprep.subr.mxu0 0.0
        %1426 = vmatpush2.msra.mxu0 0.0
        %1427 = vmatprep.subr.mxu0 0.0
        %1428 = vmatpush2.msra.mxu0 0.0
        %1429 = vmatprep.subr.mxu0 0.0
        %1430 = vmatpush2.msra.mxu0 0.0
        %1431 = vmatprep.subr.mxu0 0.0
        %1432 = vmatpush2.msra.mxu0 0.0
        %1433 = vmatprep.subr.mxu0 0.0
        %1434 = vmatpush2.msra.mxu0 0.0
        %1435 = vmatprep.subr.mxu0 0.0
        %1436 = vmatpush2.msra.mxu0 0.0
        %1437 = vmatprep.subr.mxu0 0.0
        %1438 = vmatpush2.msra.mxu0 0.0
        %1439 = vmatprep.subr.mxu0 0.0
        %1440 = vmatpush2.msra.mxu0 0.0
        %1441 = vmatprep.subr.mxu0 0.0
        %1442 = vmatpush2.msra.mxu0 0.0
        %1443 = vmatprep.subr.mxu0 0.0
        %1444 = vmatpush2.msra.mxu0 0.0
        %1445 = vmatprep.subr.mxu0 0.0
        %1446 = vmatpush2.msra.mxu0 0.0
        %1447 = vmatprep.subr.mxu0 0.0
        %1448 = vmatpush2.msra.mxu0 0.0
        %1449 = vmatprep.subr.mxu0 0.0
        %1450 = vmatpush2.msra.mxu0 0.0
        %1451 = vmatprep.subr.mxu0 0.0
        %1452 = vmatpush2.msra.mxu0 0.0
        %1453 = vmatprep.subr.mxu0 0.0
        %1454 = vmatpush2.msra.mxu0 0.0
        %1455 = vmatprep.subr.mxu0 0.0
        %1456 = vmatpush2.msra.mxu0 0.0
        %1457 = vmatprep.mubr.f32.mxu0 0.0
        %1458 = vmatmul.mubr.f32.gmra.mxu0 %v1388
        %v1459 = vpop.f32.mrf.mxu0
        %v1460 = vadd.f32 0.0, %v1459
        %v1461 = vpop.f32.mrf.mxu0
        %1462 = vmatprep.mubr.f32.mxu0 0.0
        %1463 = vmatmul.mubr.f32.gmra.mxu0 %v1391
        %v1464 = vpop.f32.mrf.mxu0
        %v1465 = vadd.f32 0.0, %v1464
        %v1466 = vpop.f32.mrf.mxu0
        %1467 = vdwg.mxu0
        %v1468 = vadd.f32 %v1365, %v1386
        %v1469 = vadd.f32 %v1368, %v1386
        %v1470 = vmul.f32 %v1460, 2.0
        %v1471 = vmul.f32 %v1465, 2.0
        %v1472 = vsub.f32 %v1468, %v1470
        %v1473 = vsub.f32 %v1469, %v1471
        %v1474 = vsel %vm1373, %v1472, inf
        %1475 = vmin.index.xlane.f32.xlu0 %v1474
        %v1476 = vpop.xlane.xlu0 %1475
        %v1477 = vsel %vm1373, %v1473, inf
        %1478 = vmin.index.xlane.f32.xlu0 %v1477
        %v1479 = vpop.xlane.xlu0 %1478
        %v1480 = vlaneseq
        %v1481 = vand.u32 %v1480, 127
        %vm1482 = vcmp.eq.s32.totalorder %v1476, %v1481
        %vm1483 = vcmp.eq.s32.totalorder %v1479, %v1481
        %v1484 = vsel %vm1482, 1, 0
        %v1485 = vsel %vm1483, 1, 0
        %v1486 = vcvt.s32.f32 %v1484
        %v1487 = vcvt.s32.f32 %v1485
        %v1489 = vsel %vm1373, %v1486, 0
        %v1492 = vsel %vm1373, %v1487, 0
        %1494 = vmatprep.subr.mxu0 0.0
        %1495 = vmatpush1.msra.mxu0 0.0
        %1496 = vmatprep.subr.mxu0 0.0
        %1497 = vmatpush1.msra.mxu0 0.0
        %1498 = vmatprep.subr.mxu0 0.0
        %1499 = vmatpush1.msra.mxu0 0.0
        %1500 = vmatprep.subr.mxu0 0.0
        %1501 = vmatpush1.msra.mxu0 0.0
        %1502 = vmatprep.subr.mxu0 0.0
        %1503 = vmatpush1.msra.mxu0 0.0
        %1504 = vmatprep.subr.mxu0 0.0
        %1505 = vmatpush1.msra.mxu0 0.0
        %1506 = vmatprep.subr.mxu0 0.0
        %1507 = vmatpush1.msra.mxu0 0.0
        %1508 = vmatprep.subr.mxu0 0.0
        %1509 = vmatpush1.msra.mxu0 0.0
        %1510 = vmatprep.subr.mxu0 0.0
        %1511 = vmatpush1.msra.mxu0 %v1356
        %1512 = vmatprep.subr.mxu0 0.0
        %1513 = vmatpush1.msra.mxu0 %v1355
        %1514 = vmatprep.subr.mxu0 0.0
        %1515 = vmatpush1.msra.mxu0 %v1354
        %1516 = vmatprep.subr.mxu0 0.0
        %1517 = vmatpush1.msra.mxu0 %v1353
        %1518 = vmatprep.subr.mxu0 0.0
        %1519 = vmatpush1.msra.mxu0 %v1352
        %1520 = vmatprep.subr.mxu0 0.0
        %1521 = vmatpush1.msra.mxu0 %v1351
        %1522 = vmatprep.subr.mxu0 0.0
        %1523 = vmatpush1.msra.mxu0 %v1350
        %1524 = vmatprep.subr.mxu0 0.0
        %1525 = vmatpush1.msra.mxu0 %v1349
        %1526 = vmatprep.subr.mxu0 0.0
        %1527 = vmatpush2.msra.mxu0 0.0
        %1528 = vmatprep.subr.mxu0 0.0
        %1529 = vmatpush2.msra.mxu0 0.0
        %1530 = vmatprep.subr.mxu0 0.0
        %1531 = vmatpush2.msra.mxu0 0.0
        %1532 = vmatprep.subr.mxu0 0.0
        %1533 = vmatpush2.msra.mxu0 0.0
        %1534 = vmatprep.subr.mxu0 0.0
        %1535 = vmatpush2.msra.mxu0 0.0
        %1536 = vmatprep.subr.mxu0 0.0
        %1537 = vmatpush2.msra.mxu0 0.0
        %1538 = vmatprep.subr.mxu0 0.0
        %1539 = vmatpush2.msra.mxu0 0.0
        %1540 = vmatprep.subr.mxu0 0.0
        %1541 = vmatpush2.msra.mxu0 0.0
        %1542 = vmatprep.subr.mxu0 0.0
        %1543 = vmatpush2.msra.mxu0 0.0
        %1544 = vmatprep.subr.mxu0 0.0
        %1545 = vmatpush2.msra.mxu0 0.0
        %1546 = vmatprep.subr.mxu0 0.0
        %1547 = vmatpush2.msra.mxu0 0.0
        %1548 = vmatprep.subr.mxu0 0.0
        %1549 = vmatpush2.msra.mxu0 0.0
        %1550 = vmatprep.subr.mxu0 0.0
        %1551 = vmatpush2.msra.mxu0 0.0
        %1552 = vmatprep.subr.mxu0 0.0
        %1553 = vmatpush2.msra.mxu0 0.0
        %1554 = vmatprep.subr.mxu0 0.0
        %1555 = vmatpush2.msra.mxu0 0.0
        %1556 = vmatprep.subr.mxu0 0.0
        %1557 = vmatpush2.msra.mxu0 0.0
        %1558 = vmatprep.mubr.f32.mxu0 0.0
        %1559 = vmatmul.mubr.f32.gmra.mxu0 %v1489
        %v1560 = vpop.f32.mrf.mxu0
        %v1561 = vadd.f32 0.0, %v1560
        %v1562 = vpop.f32.mrf.mxu0
        %1563 = vmatprep.mubr.f32.mxu0 0.0
        %1564 = vmatmul.mubr.f32.gmra.mxu0 %v1492
        %v1565 = vpop.f32.mrf.mxu0
        %v1566 = vadd.f32 0.0, %v1565
        %v1567 = vpop.f32.mrf.mxu0
        %1568 = vdwg.mxu0
        %v1569 = vsub.f32 %v1347, %v1561
        %v1570 = vsub.f32 %v1348, %v1566
        %v1571 = vmul.f32 %v1569, %v1569
        %v1572 = vmul.f32 %v1570, %v1570
        %v1573 = vsel %vm800, %v1571, 0.0
        %v1574 = vsel %vm800, %v1572, 0.0
        %v1575 = vadd.f32 %v1573, %v1574
        %1576 = vadd.xlane.f32.xlu0 %v1575
        %v1577 = vpop.xlane.xlu0 %1576
        %v1578 = vrot.slane %v1577, 4
        %v1579 = vadd.f32 %v1577, %v1578
        %v1580 = vrot.slane %v1579, 2
        %v1581 = vadd.f32 %v1579, %v1580
        %v1582 = vrot.slane %v1581, 1
        %v1583 = vadd.f32 %v1581, %v1582
        %s1584 = vtos %v1583
        %v1587 = vrot.slane %v1561, 7
        %v1588 = vrot.slane %v1566, 7
        %v1589 = vsel %vm775, %v1587, %v1588
        %v1592 = vsel %vm775, 0.0, %v1587
        %v1593 = vsel %vm775, %v1588, 0.0
        %v1594 = vld [vmem:[#allocation7] sm:$0xff]
        %v1595 = vld [vmem:[#allocation7 + $0x8] sm:$0xff]
        %v1596 = vld [vmem:[#allocation7 + $0x10] sm:$0xff]
        %v1597 = vld [vmem:[#allocation7 + $0x18] sm:$0xff]
        %s1598 = scalar_lea.vmem [#allocation7], 32
        %v1599 = vld [vmem:[%s1598] sm:$0xff]
        %v1600 = vld [vmem:[%s1598 + $0x8] sm:$0xff]
        %v1601 = vld [vmem:[%s1598 + $0x10] sm:$0xff]
        %v1602 = vld [vmem:[%s1598 + $0x18] sm:$0xff]
        %v1605 = vrot.slane %v1592, 1
        %v1606 = vrot.slane %v1589, 1
        %v1607 = vsel %vm794, %v1605, %v1606
        %v1608 = vrot.slane %v1593, 1
        %v1609 = vsel %vm794, %v1606, %v1608
        %v1610 = vsel %vm800, %v1607, 0
        %v1612 = vsel %vm800, %v1609, 0
        %1614 = vmatprep.subr.mxu0 0.0
        %1615 = vmatpush1.msra.mxu0 0.0
        %1616 = vmatprep.subr.mxu0 0.0
        %1617 = vmatpush1.msra.mxu0 0.0
        %1618 = vmatprep.subr.mxu0 0.0
        %1619 = vmatpush1.msra.mxu0 0.0
        %1620 = vmatprep.subr.mxu0 0.0
        %1621 = vmatpush1.msra.mxu0 0.0
        %1622 = vmatprep.subr.mxu0 0.0
        %1623 = vmatpush1.msra.mxu0 0.0
        %1624 = vmatprep.subr.mxu0 0.0
        %1625 = vmatpush1.msra.mxu0 0.0
        %1626 = vmatprep.subr.mxu0 0.0
        %1627 = vmatpush1.msra.mxu0 0.0
        %1628 = vmatprep.subr.mxu0 0.0
        %1629 = vmatpush1.msra.mxu0 0.0
        %1630 = vmatprep.subr.mxu0 0.0
        %1631 = vmatpush1.msra.mxu0 0.0
        %1632 = vmatprep.subr.mxu0 0.0
        %1633 = vmatpush1.msra.mxu0 0.0
        %1634 = vmatprep.subr.mxu0 0.0
        %1635 = vmatpush1.msra.mxu0 0.0
        %1636 = vmatprep.subr.mxu0 0.0
        %1637 = vmatpush1.msra.mxu0 0.0
        %1638 = vmatprep.subr.mxu0 0.0
        %1639 = vmatpush1.msra.mxu0 %v1602
        %1640 = vmatprep.subr.mxu0 0.0
        %1641 = vmatpush1.msra.mxu0 %v1601
        %1642 = vmatprep.subr.mxu0 0.0
        %1643 = vmatpush1.msra.mxu0 %v1600
        %1644 = vmatprep.subr.mxu0 0.0
        %1645 = vmatpush1.msra.mxu0 %v1599
        %1646 = vmatprep.subr.mxu0 0.0
        %1647 = vmatpush2.msra.mxu0 0.0
        %1648 = vmatprep.subr.mxu0 0.0
        %1649 = vmatpush2.msra.mxu0 0.0
        %1650 = vmatprep.subr.mxu0 0.0
        %1651 = vmatpush2.msra.mxu0 0.0
        %1652 = vmatprep.subr.mxu0 0.0
        %1653 = vmatpush2.msra.mxu0 0.0
        %1654 = vmatprep.subr.mxu0 0.0
        %1655 = vmatpush2.msra.mxu0 0.0
        %1656 = vmatprep.subr.mxu0 0.0
        %1657 = vmatpush2.msra.mxu0 0.0
        %1658 = vmatprep.subr.mxu0 0.0
        %1659 = vmatpush2.msra.mxu0 0.0
        %1660 = vmatprep.subr.mxu0 0.0
        %1661 = vmatpush2.msra.mxu0 0.0
        %1662 = vmatprep.subr.mxu0 0.0
        %1663 = vmatpush2.msra.mxu0 0.0
        %1664 = vmatprep.subr.mxu0 0.0
        %1665 = vmatpush2.msra.mxu0 0.0
        %1666 = vmatprep.subr.mxu0 0.0
        %1667 = vmatpush2.msra.mxu0 0.0
        %1668 = vmatprep.subr.mxu0 0.0
        %1669 = vmatpush2.msra.mxu0 0.0
        %1670 = vmatprep.subr.mxu0 0.0
        %1671 = vmatpush2.msra.mxu0 0.0
        %1672 = vmatprep.subr.mxu0 0.0
        %1673 = vmatpush2.msra.mxu0 0.0
        %1674 = vmatprep.subr.mxu0 0.0
        %1675 = vmatpush2.msra.mxu0 0.0
        %1676 = vmatprep.subr.mxu0 0.0
        %1677 = vmatpush2.msra.mxu0 0.0
        %1678 = vmatprep.mubr.f32.mxu0 0.0
        %1679 = vmatmul.mubr.f32.gmra.mxu0 %v1610
        %v1680 = vpop.f32.mrf.mxu0
        %v1681 = vadd.f32 0.0, %v1680
        %v1682 = vpop.f32.mrf.mxu0
        %1683 = vmatprep.mubr.f32.mxu0 0.0
        %1684 = vmatmul.mubr.f32.gmra.mxu0 %v1612
        %v1685 = vpop.f32.mrf.mxu0
        %v1686 = vadd.f32 0.0, %v1685
        %v1687 = vpop.f32.mrf.mxu0
        %1688 = vdwg.mxu0
        %v1689 = vsel %vm800, %v1592, 0
        %v1691 = vsel %vm800, %v1589, 0
        %1693 = vmatprep.subr.mxu0 0.0
        %1694 = vmatpush1.msra.mxu0 0.0
        %1695 = vmatprep.subr.mxu0 0.0
        %1696 = vmatpush1.msra.mxu0 0.0
        %1697 = vmatprep.subr.mxu0 0.0
        %1698 = vmatpush1.msra.mxu0 0.0
        %1699 = vmatprep.subr.mxu0 0.0
        %1700 = vmatpush1.msra.mxu0 0.0
        %1701 = vmatprep.subr.mxu0 0.0
        %1702 = vmatpush1.msra.mxu0 0.0
        %1703 = vmatprep.subr.mxu0 0.0
        %1704 = vmatpush1.msra.mxu0 0.0
        %1705 = vmatprep.subr.mxu0 0.0
        %1706 = vmatpush1.msra.mxu0 0.0
        %1707 = vmatprep.subr.mxu0 0.0
        %1708 = vmatpush1.msra.mxu0 0.0
        %1709 = vmatprep.subr.mxu0 0.0
        %1710 = vmatpush1.msra.mxu0 0.0
        %1711 = vmatprep.subr.mxu0 0.0
        %1712 = vmatpush1.msra.mxu0 0.0
        %1713 = vmatprep.subr.mxu0 0.0
        %1714 = vmatpush1.msra.mxu0 0.0
        %1715 = vmatprep.subr.mxu0 0.0
        %1716 = vmatpush1.msra.mxu0 0.0
        %1717 = vmatprep.subr.mxu0 0.0
        %1718 = vmatpush1.msra.mxu0 %v1597
        %1719 = vmatprep.subr.mxu0 0.0
        %1720 = vmatpush1.msra.mxu0 %v1596
        %1721 = vmatprep.subr.mxu0 0.0
        %1722 = vmatpush1.msra.mxu0 %v1595
        %1723 = vmatprep.subr.mxu0 0.0
        %1724 = vmatpush1.msra.mxu0 %v1594
        %1725 = vmatprep.subr.mxu0 0.0
        %1726 = vmatpush2.msra.mxu0 0.0
        %1727 = vmatprep.subr.mxu0 0.0
        %1728 = vmatpush2.msra.mxu0 0.0
        %1729 = vmatprep.subr.mxu0 0.0
        %1730 = vmatpush2.msra.mxu0 0.0
        %1731 = vmatprep.subr.mxu0 0.0
        %1732 = vmatpush2.msra.mxu0 0.0
        %1733 = vmatprep.subr.mxu0 0.0
        %1734 = vmatpush2.msra.mxu0 0.0
        %1735 = vmatprep.subr.mxu0 0.0
        %1736 = vmatpush2.msra.mxu0 0.0
        %1737 = vmatprep.subr.mxu0 0.0
        %1738 = vmatpush2.msra.mxu0 0.0
        %1739 = vmatprep.subr.mxu0 0.0
        %1740 = vmatpush2.msra.mxu0 0.0
        %1741 = vmatprep.subr.mxu0 0.0
        %1742 = vmatpush2.msra.mxu0 0.0
        %1743 = vmatprep.subr.mxu0 0.0
        %1744 = vmatpush2.msra.mxu0 0.0
        %1745 = vmatprep.subr.mxu0 0.0
        %1746 = vmatpush2.msra.mxu0 0.0
        %1747 = vmatprep.subr.mxu0 0.0
        %1748 = vmatpush2.msra.mxu0 0.0
        %1749 = vmatprep.subr.mxu0 0.0
        %1750 = vmatpush2.msra.mxu0 0.0
        %1751 = vmatprep.subr.mxu0 0.0
        %1752 = vmatpush2.msra.mxu0 0.0
        %1753 = vmatprep.subr.mxu0 0.0
        %1754 = vmatpush2.msra.mxu0 0.0
        %1755 = vmatprep.subr.mxu0 0.0
        %1756 = vmatpush2.msra.mxu0 0.0
        %1757 = vmatprep.mubr.f32.mxu0 0.0
        %1758 = vmatmul.mubr.f32.gmra.mxu0 %v1689
        %v1759 = vpop.f32.mrf.mxu0
        %v1760 = vadd.f32 %v1681, %v1759
        %v1761 = vpop.f32.mrf.mxu0
        %1762 = vmatprep.mubr.f32.mxu0 0.0
        %1763 = vmatmul.mubr.f32.gmra.mxu0 %v1691
        %v1764 = vpop.f32.mrf.mxu0
        %v1765 = vadd.f32 %v1686, %v1764
        %v1766 = vpop.f32.mrf.mxu0
        %1767 = vdwg.mxu0
        %s1768 = scalar_lea.vmem [#allocation7], 64
        %v1769 = vld [vmem:[%s1768] sm:$0xff]
        %v1770 = vld [vmem:[%s1768 + $0x8] sm:$0xff]
        %v1771 = vld [vmem:[%s1768 + $0x10] sm:$0xff]
        %v1772 = vld [vmem:[%s1768 + $0x18] sm:$0xff]
        %v1773 = vrot.slane %v1592, 2
        %v1774 = vrot.slane %v1589, 2
        %v1775 = vsel %vm964, %v1773, %v1774
        %v1776 = vrot.slane %v1593, 2
        %v1777 = vsel %vm964, %v1774, %v1776
        %v1778 = vsel %vm800, %v1775, 0
        %v1780 = vsel %vm800, %v1777, 0
        %1782 = vmatprep.subr.mxu0 0.0
        %1783 = vmatpush1.msra.mxu0 0.0
        %1784 = vmatprep.subr.mxu0 0.0
        %1785 = vmatpush1.msra.mxu0 0.0
        %1786 = vmatprep.subr.mxu0 0.0
        %1787 = vmatpush1.msra.mxu0 0.0
        %1788 = vmatprep.subr.mxu0 0.0
        %1789 = vmatpush1.msra.mxu0 0.0
        %1790 = vmatprep.subr.mxu0 0.0
        %1791 = vmatpush1.msra.mxu0 0.0
        %1792 = vmatprep.subr.mxu0 0.0
        %1793 = vmatpush1.msra.mxu0 0.0
        %1794 = vmatprep.subr.mxu0 0.0
        %1795 = vmatpush1.msra.mxu0 0.0
        %1796 = vmatprep.subr.mxu0 0.0
        %1797 = vmatpush1.msra.mxu0 0.0
        %1798 = vmatprep.subr.mxu0 0.0
        %1799 = vmatpush1.msra.mxu0 0.0
        %1800 = vmatprep.subr.mxu0 0.0
        %1801 = vmatpush1.msra.mxu0 0.0
        %1802 = vmatprep.subr.mxu0 0.0
        %1803 = vmatpush1.msra.mxu0 0.0
        %1804 = vmatprep.subr.mxu0 0.0
        %1805 = vmatpush1.msra.mxu0 0.0
        %1806 = vmatprep.subr.mxu0 0.0
        %1807 = vmatpush1.msra.mxu0 %v1772
        %1808 = vmatprep.subr.mxu0 0.0
        %1809 = vmatpush1.msra.mxu0 %v1771
        %1810 = vmatprep.subr.mxu0 0.0
        %1811 = vmatpush1.msra.mxu0 %v1770
        %1812 = vmatprep.subr.mxu0 0.0
        %1813 = vmatpush1.msra.mxu0 %v1769
        %1814 = vmatprep.subr.mxu0 0.0
        %1815 = vmatpush2.msra.mxu0 0.0
        %1816 = vmatprep.subr.mxu0 0.0
        %1817 = vmatpush2.msra.mxu0 0.0
        %1818 = vmatprep.subr.mxu0 0.0
        %1819 = vmatpush2.msra.mxu0 0.0
        %1820 = vmatprep.subr.mxu0 0.0
        %1821 = vmatpush2.msra.mxu0 0.0
        %1822 = vmatprep.subr.mxu0 0.0
        %1823 = vmatpush2.msra.mxu0 0.0
        %1824 = vmatprep.subr.mxu0 0.0
        %1825 = vmatpush2.msra.mxu0 0.0
        %1826 = vmatprep.subr.mxu0 0.0
        %1827 = vmatpush2.msra.mxu0 0.0
        %1828 = vmatprep.subr.mxu0 0.0
        %1829 = vmatpush2.msra.mxu0 0.0
        %1830 = vmatprep.subr.mxu0 0.0
        %1831 = vmatpush2.msra.mxu0 0.0
        %1832 = vmatprep.subr.mxu0 0.0
        %1833 = vmatpush2.msra.mxu0 0.0
        %1834 = vmatprep.subr.mxu0 0.0
        %1835 = vmatpush2.msra.mxu0 0.0
        %1836 = vmatprep.subr.mxu0 0.0
        %1837 = vmatpush2.msra.mxu0 0.0
        %1838 = vmatprep.subr.mxu0 0.0
        %1839 = vmatpush2.msra.mxu0 0.0
        %1840 = vmatprep.subr.mxu0 0.0
        %1841 = vmatpush2.msra.mxu0 0.0
        %1842 = vmatprep.subr.mxu0 0.0
        %1843 = vmatpush2.msra.mxu0 0.0
        %1844 = vmatprep.subr.mxu0 0.0
        %1845 = vmatpush2.msra.mxu0 0.0
        %1846 = vmatprep.mubr.f32.mxu0 0.0
        %1847 = vmatmul.mubr.f32.gmra.mxu0 %v1778
        %v1848 = vpop.f32.mrf.mxu0
        %v1849 = vadd.f32 0.0, %v1848
        %v1850 = vpop.f32.mrf.mxu0
        %1851 = vmatprep.mubr.f32.mxu0 0.0
        %1852 = vmatmul.mubr.f32.gmra.mxu0 %v1780
        %v1853 = vpop.f32.mrf.mxu0
        %v1854 = vadd.f32 0.0, %v1853
        %v1855 = vpop.f32.mrf.mxu0
        %1856 = vdwg.mxu0
        %v1857 = vadd.f32 %v1760, %v1849
        %v1858 = vadd.f32 %v1765, %v1854
        %v1859 = vld [vmem:[%s8] sm:$0x1]
        %v1861 = vlaneseq
        %v1862 = vshrl.u32 %v1861, 7
        %v1863 = vsub.s32 0, %v1862
        %v1864 = vrot.slane %v1859, %v1863
        %v1866 = vadd.f32 %v1857, %v1864
        %v1867 = vadd.f32 %v1858, %v1864
        %v1868 = vmax.f32 %v1866, 0.0
        %v1869 = vmax.f32 %v1867, 0.0
        %v1872 = vrot.slane %v1868, 7
        %v1873 = vrot.slane %v1869, 7
        %v1874 = vsel %vm775, %v1872, %v1873
        %v1877 = vsel %vm775, 0.0, %v1872
        %v1878 = vsel %vm775, %v1873, 0.0
        %v1879 = vld [vmem:[#allocation8] sm:$0xff]
        %v1880 = vld [vmem:[#allocation8 + $0x8] sm:$0xff]
        %v1881 = vld [vmem:[#allocation8 + $0x10] sm:$0xff]
        %v1882 = vld [vmem:[#allocation8 + $0x18] sm:$0xff]
        %s1883 = scalar_lea.vmem [#allocation8], 32
        %v1884 = vld [vmem:[%s1883] sm:$0xff]
        %v1885 = vld [vmem:[%s1883 + $0x8] sm:$0xff]
        %v1886 = vld [vmem:[%s1883 + $0x10] sm:$0xff]
        %v1887 = vld [vmem:[%s1883 + $0x18] sm:$0xff]
        %v1890 = vrot.slane %v1877, 1
        %v1891 = vrot.slane %v1874, 1
        %v1892 = vsel %vm794, %v1890, %v1891
        %v1893 = vrot.slane %v1878, 1
        %v1894 = vsel %vm794, %v1891, %v1893
        %v1895 = vsel %vm800, %v1892, 0
        %v1897 = vsel %vm800, %v1894, 0
        %1899 = vmatprep.subr.mxu0 0.0
        %1900 = vmatpush1.msra.mxu0 0.0
        %1901 = vmatprep.subr.mxu0 0.0
        %1902 = vmatpush1.msra.mxu0 0.0
        %1903 = vmatprep.subr.mxu0 0.0
        %1904 = vmatpush1.msra.mxu0 0.0
        %1905 = vmatprep.subr.mxu0 0.0
        %1906 = vmatpush1.msra.mxu0 0.0
        %1907 = vmatprep.subr.mxu0 0.0
        %1908 = vmatpush1.msra.mxu0 0.0
        %1909 = vmatprep.subr.mxu0 0.0
        %1910 = vmatpush1.msra.mxu0 0.0
        %1911 = vmatprep.subr.mxu0 0.0
        %1912 = vmatpush1.msra.mxu0 0.0
        %1913 = vmatprep.subr.mxu0 0.0
        %1914 = vmatpush1.msra.mxu0 0.0
        %1915 = vmatprep.subr.mxu0 0.0
        %1916 = vmatpush1.msra.mxu0 0.0
        %1917 = vmatprep.subr.mxu0 0.0
        %1918 = vmatpush1.msra.mxu0 0.0
        %1919 = vmatprep.subr.mxu0 0.0
        %1920 = vmatpush1.msra.mxu0 0.0
        %1921 = vmatprep.subr.mxu0 0.0
        %1922 = vmatpush1.msra.mxu0 0.0
        %1923 = vmatprep.subr.mxu0 0.0
        %1924 = vmatpush1.msra.mxu0 %v1887
        %1925 = vmatprep.subr.mxu0 0.0
        %1926 = vmatpush1.msra.mxu0 %v1886
        %1927 = vmatprep.subr.mxu0 0.0
        %1928 = vmatpush1.msra.mxu0 %v1885
        %1929 = vmatprep.subr.mxu0 0.0
        %1930 = vmatpush1.msra.mxu0 %v1884
        %1931 = vmatprep.subr.mxu0 0.0
        %1932 = vmatpush2.msra.mxu0 0.0
        %1933 = vmatprep.subr.mxu0 0.0
        %1934 = vmatpush2.msra.mxu0 0.0
        %1935 = vmatprep.subr.mxu0 0.0
        %1936 = vmatpush2.msra.mxu0 0.0
        %1937 = vmatprep.subr.mxu0 0.0
        %1938 = vmatpush2.msra.mxu0 0.0
        %1939 = vmatprep.subr.mxu0 0.0
        %1940 = vmatpush2.msra.mxu0 0.0
        %1941 = vmatprep.subr.mxu0 0.0
        %1942 = vmatpush2.msra.mxu0 0.0
        %1943 = vmatprep.subr.mxu0 0.0
        %1944 = vmatpush2.msra.mxu0 0.0
        %1945 = vmatprep.subr.mxu0 0.0
        %1946 = vmatpush2.msra.mxu0 0.0
        %1947 = vmatprep.subr.mxu0 0.0
        %1948 = vmatpush2.msra.mxu0 0.0
        %1949 = vmatprep.subr.mxu0 0.0
        %1950 = vmatpush2.msra.mxu0 0.0
        %1951 = vmatprep.subr.mxu0 0.0
        %1952 = vmatpush2.msra.mxu0 0.0
        %1953 = vmatprep.subr.mxu0 0.0
        %1954 = vmatpush2.msra.mxu0 0.0
        %1955 = vmatprep.subr.mxu0 0.0
        %1956 = vmatpush2.msra.mxu0 0.0
        %1957 = vmatprep.subr.mxu0 0.0
        %1958 = vmatpush2.msra.mxu0 0.0
        %1959 = vmatprep.subr.mxu0 0.0
        %1960 = vmatpush2.msra.mxu0 0.0
        %1961 = vmatprep.subr.mxu0 0.0
        %1962 = vmatpush2.msra.mxu0 0.0
        %1963 = vmatprep.mubr.f32.mxu0 0.0
        %1964 = vmatmul.mubr.f32.gmra.mxu0 %v1895
        %v1965 = vpop.f32.mrf.mxu0
        %v1966 = vadd.f32 0.0, %v1965
        %v1967 = vpop.f32.mrf.mxu0
        %1968 = vmatprep.mubr.f32.mxu0 0.0
        %1969 = vmatmul.mubr.f32.gmra.mxu0 %v1897
        %v1970 = vpop.f32.mrf.mxu0
        %v1971 = vadd.f32 0.0, %v1970
        %v1972 = vpop.f32.mrf.mxu0
        %1973 = vdwg.mxu0
        %v1974 = vsel %vm800, %v1877, 0
        %v1976 = vsel %vm800, %v1874, 0
        %1978 = vmatprep.subr.mxu0 0.0
        %1979 = vmatpush1.msra.mxu0 0.0
        %1980 = vmatprep.subr.mxu0 0.0
        %1981 = vmatpush1.msra.mxu0 0.0
        %1982 = vmatprep.subr.mxu0 0.0
        %1983 = vmatpush1.msra.mxu0 0.0
        %1984 = vmatprep.subr.mxu0 0.0
        %1985 = vmatpush1.msra.mxu0 0.0
        %1986 = vmatprep.subr.mxu0 0.0
        %1987 = vmatpush1.msra.mxu0 0.0
        %1988 = vmatprep.subr.mxu0 0.0
        %1989 = vmatpush1.msra.mxu0 0.0
        %1990 = vmatprep.subr.mxu0 0.0
        %1991 = vmatpush1.msra.mxu0 0.0
        %1992 = vmatprep.subr.mxu0 0.0
        %1993 = vmatpush1.msra.mxu0 0.0
        %1994 = vmatprep.subr.mxu0 0.0
        %1995 = vmatpush1.msra.mxu0 0.0
        %1996 = vmatprep.subr.mxu0 0.0
        %1997 = vmatpush1.msra.mxu0 0.0
        %1998 = vmatprep.subr.mxu0 0.0
        %1999 = vmatpush1.msra.mxu0 0.0
        %2000 = vmatprep.subr.mxu0 0.0
        %2001 = vmatpush1.msra.mxu0 0.0
        %2002 = vmatprep.subr.mxu0 0.0
        %2003 = vmatpush1.msra.mxu0 %v1882
        %2004 = vmatprep.subr.mxu0 0.0
        %2005 = vmatpush1.msra.mxu0 %v1881
        %2006 = vmatprep.subr.mxu0 0.0
        %2007 = vmatpush1.msra.mxu0 %v1880
        %2008 = vmatprep.subr.mxu0 0.0
        %2009 = vmatpush1.msra.mxu0 %v1879
        %2010 = vmatprep.subr.mxu0 0.0
        %2011 = vmatpush2.msra.mxu0 0.0
        %2012 = vmatprep.subr.mxu0 0.0
        %2013 = vmatpush2.msra.mxu0 0.0
        %2014 = vmatprep.subr.mxu0 0.0
        %2015 = vmatpush2.msra.mxu0 0.0
        %2016 = vmatprep.subr.mxu0 0.0
        %2017 = vmatpush2.msra.mxu0 0.0
        %2018 = vmatprep.subr.mxu0 0.0
        %2019 = vmatpush2.msra.mxu0 0.0
        %2020 = vmatprep.subr.mxu0 0.0
        %2021 = vmatpush2.msra.mxu0 0.0
        %2022 = vmatprep.subr.mxu0 0.0
        %2023 = vmatpush2.msra.mxu0 0.0
        %2024 = vmatprep.subr.mxu0 0.0
        %2025 = vmatpush2.msra.mxu0 0.0
        %2026 = vmatprep.subr.mxu0 0.0
        %2027 = vmatpush2.msra.mxu0 0.0
        %2028 = vmatprep.subr.mxu0 0.0
        %2029 = vmatpush2.msra.mxu0 0.0
        %2030 = vmatprep.subr.mxu0 0.0
        %2031 = vmatpush2.msra.mxu0 0.0
        %2032 = vmatprep.subr.mxu0 0.0
        %2033 = vmatpush2.msra.mxu0 0.0
        %2034 = vmatprep.subr.mxu0 0.0
        %2035 = vmatpush2.msra.mxu0 0.0
        %2036 = vmatprep.subr.mxu0 0.0
        %2037 = vmatpush2.msra.mxu0 0.0
        %2038 = vmatprep.subr.mxu0 0.0
        %2039 = vmatpush2.msra.mxu0 0.0
        %2040 = vmatprep.subr.mxu0 0.0
        %2041 = vmatpush2.msra.mxu0 0.0
        %2042 = vmatprep.mubr.f32.mxu0 0.0
        %2043 = vmatmul.mubr.f32.gmra.mxu0 %v1974
        %v2044 = vpop.f32.mrf.mxu0
        %v2045 = vadd.f32 %v1966, %v2044
        %v2046 = vpop.f32.mrf.mxu0
        %2047 = vmatprep.mubr.f32.mxu0 0.0
        %2048 = vmatmul.mubr.f32.gmra.mxu0 %v1976
        %v2049 = vpop.f32.mrf.mxu0
        %v2050 = vadd.f32 %v1971, %v2049
        %v2051 = vpop.f32.mrf.mxu0
        %2052 = vdwg.mxu0
        %s2053 = scalar_lea.vmem [#allocation8], 64
        %v2054 = vld [vmem:[%s2053] sm:$0xff]
        %v2055 = vld [vmem:[%s2053 + $0x8] sm:$0xff]
        %v2056 = vld [vmem:[%s2053 + $0x10] sm:$0xff]
        %v2057 = vld [vmem:[%s2053 + $0x18] sm:$0xff]
        %v2058 = vrot.slane %v1877, 2
        %v2059 = vrot.slane %v1874, 2
        %v2060 = vsel %vm964, %v2058, %v2059
        %v2061 = vrot.slane %v1878, 2
        %v2062 = vsel %vm964, %v2059, %v2061
        %v2063 = vsel %vm800, %v2060, 0
        %v2065 = vsel %vm800, %v2062, 0
        %2067 = vmatprep.subr.mxu0 0.0
        %2068 = vmatpush1.msra.mxu0 0.0
        %2069 = vmatprep.subr.mxu0 0.0
        %2070 = vmatpush1.msra.mxu0 0.0
        %2071 = vmatprep.subr.mxu0 0.0
        %2072 = vmatpush1.msra.mxu0 0.0
        %2073 = vmatprep.subr.mxu0 0.0
        %2074 = vmatpush1.msra.mxu0 0.0
        %2075 = vmatprep.subr.mxu0 0.0
        %2076 = vmatpush1.msra.mxu0 0.0
        %2077 = vmatprep.subr.mxu0 0.0
        %2078 = vmatpush1.msra.mxu0 0.0
        %2079 = vmatprep.subr.mxu0 0.0
        %2080 = vmatpush1.msra.mxu0 0.0
        %2081 = vmatprep.subr.mxu0 0.0
        %2082 = vmatpush1.msra.mxu0 0.0
        %2083 = vmatprep.subr.mxu0 0.0
        %2084 = vmatpush1.msra.mxu0 0.0
        %2085 = vmatprep.subr.mxu0 0.0
        %2086 = vmatpush1.msra.mxu0 0.0
        %2087 = vmatprep.subr.mxu0 0.0
        %2088 = vmatpush1.msra.mxu0 0.0
        %2089 = vmatprep.subr.mxu0 0.0
        %2090 = vmatpush1.msra.mxu0 0.0
        %2091 = vmatprep.subr.mxu0 0.0
        %2092 = vmatpush1.msra.mxu0 %v2057
        %2093 = vmatprep.subr.mxu0 0.0
        %2094 = vmatpush1.msra.mxu0 %v2056
        %2095 = vmatprep.subr.mxu0 0.0
        %2096 = vmatpush1.msra.mxu0 %v2055
        %2097 = vmatprep.subr.mxu0 0.0
        %2098 = vmatpush1.msra.mxu0 %v2054
        %2099 = vmatprep.subr.mxu0 0.0
        %2100 = vmatpush2.msra.mxu0 0.0
        %2101 = vmatprep.subr.mxu0 0.0
        %2102 = vmatpush2.msra.mxu0 0.0
        %2103 = vmatprep.subr.mxu0 0.0
        %2104 = vmatpush2.msra.mxu0 0.0
        %2105 = vmatprep.subr.mxu0 0.0
        %2106 = vmatpush2.msra.mxu0 0.0
        %2107 = vmatprep.subr.mxu0 0.0
        %2108 = vmatpush2.msra.mxu0 0.0
        %2109 = vmatprep.subr.mxu0 0.0
        %2110 = vmatpush2.msra.mxu0 0.0
        %2111 = vmatprep.subr.mxu0 0.0
        %2112 = vmatpush2.msra.mxu0 0.0
        %2113 = vmatprep.subr.mxu0 0.0
        %2114 = vmatpush2.msra.mxu0 0.0
        %2115 = vmatprep.subr.mxu0 0.0
        %2116 = vmatpush2.msra.mxu0 0.0
        %2117 = vmatprep.subr.mxu0 0.0
        %2118 = vmatpush2.msra.mxu0 0.0
        %2119 = vmatprep.subr.mxu0 0.0
        %2120 = vmatpush2.msra.mxu0 0.0
        %2121 = vmatprep.subr.mxu0 0.0
        %2122 = vmatpush2.msra.mxu0 0.0
        %2123 = vmatprep.subr.mxu0 0.0
        %2124 = vmatpush2.msra.mxu0 0.0
        %2125 = vmatprep.subr.mxu0 0.0
        %2126 = vmatpush2.msra.mxu0 0.0
        %2127 = vmatprep.subr.mxu0 0.0
        %2128 = vmatpush2.msra.mxu0 0.0
        %2129 = vmatprep.subr.mxu0 0.0
        %2130 = vmatpush2.msra.mxu0 0.0
        %2131 = vmatprep.mubr.f32.mxu0 0.0
        %2132 = vmatmul.mubr.f32.gmra.mxu0 %v2063
        %v2133 = vpop.f32.mrf.mxu0
        %v2134 = vadd.f32 0.0, %v2133
        %v2135 = vpop.f32.mrf.mxu0
        %2136 = vmatprep.mubr.f32.mxu0 0.0
        %2137 = vmatmul.mubr.f32.gmra.mxu0 %v2065
        %v2138 = vpop.f32.mrf.mxu0
        %v2139 = vadd.f32 0.0, %v2138
        %v2140 = vpop.f32.mrf.mxu0
        %2141 = vdwg.mxu0
        %v2142 = vadd.f32 %v2045, %v2134
        %v2143 = vadd.f32 %v2050, %v2139
        %v2144 = vld [vmem:[%s10] sm:$0x1]
        %v2146 = vlaneseq
        %v2147 = vshrl.u32 %v2146, 7
        %v2148 = vsub.s32 0, %v2147
        %v2149 = vrot.slane %v2144, %v2148
        %v2151 = vadd.f32 %v2142, %v2149
        %v2152 = vadd.f32 %v2143, %v2149
        %v2153 = vadd.f32 %v2151, %v1561
        %v2154 = vadd.f32 %v2152, %v1566
        %v2155 = vmax.f32 %v2153, 0.0
        %v2156 = vmax.f32 %v2154, 0.0
        %v2157 = vld [vmem:[%s13] sm:$0xff]
        %v2158 = vld [vmem:[%s13 + $0x8] sm:$0xff]
        %v2159 = vld [vmem:[%s13 + $0x10] sm:$0xff]
        %v2160 = vld [vmem:[%s13 + $0x18] sm:$0xff]
        %v2161 = vld [vmem:[%s14] sm:$0x1]
        %v2163 = vlaneseq
        %v2164 = vshrl.u32 %v2163, 7
        %v2165 = vsub.s32 0, %v2164
        %v2166 = vrot.slane %v2161, %v2165
        %v2169 = vsel %vm800, %v2155, 0
        %v2172 = vsel %vm800, %v2156, 0
        %2174 = vmatprep.subr.mxu0 0.0
        %2175 = vmatpush1.msra.mxu0 0.0
        %2176 = vmatprep.subr.mxu0 0.0
        %2177 = vmatpush1.msra.mxu0 0.0
        %2178 = vmatprep.subr.mxu0 0.0
        %2179 = vmatpush1.msra.mxu0 0.0
        %2180 = vmatprep.subr.mxu0 0.0
        %2181 = vmatpush1.msra.mxu0 0.0
        %2182 = vmatprep.subr.mxu0 0.0
        %2183 = vmatpush1.msra.mxu0 0.0
        %2184 = vmatprep.subr.mxu0 0.0
        %2185 = vmatpush1.msra.mxu0 0.0
        %2186 = vmatprep.subr.mxu0 0.0
        %2187 = vmatpush1.msra.mxu0 0.0
        %2188 = vmatprep.subr.mxu0 0.0
        %2189 = vmatpush1.msra.mxu0 0.0
        %2190 = vmatprep.subr.mxu0 0.0
        %2191 = vmatpush1.msra.mxu0 0.0
        %2192 = vmatprep.subr.mxu0 0.0
        %2193 = vmatpush1.msra.mxu0 0.0
        %2194 = vmatprep.subr.mxu0 0.0
        %2195 = vmatpush1.msra.mxu0 0.0
        %2196 = vmatprep.subr.mxu0 0.0
        %2197 = vmatpush1.msra.mxu0 0.0
        %2198 = vmatprep.subr.mxu0 0.0
        %2199 = vmatpush1.msra.mxu0 %v2160
        %2200 = vmatprep.subr.mxu0 0.0
        %2201 = vmatpush1.msra.mxu0 %v2159
        %2202 = vmatprep.subr.mxu0 0.0
        %2203 = vmatpush1.msra.mxu0 %v2158
        %2204 = vmatprep.subr.mxu0 0.0
        %2205 = vmatpush1.msra.mxu0 %v2157
        %2206 = vmatprep.subr.mxu0 0.0
        %2207 = vmatpush2.msra.mxu0 0.0
        %2208 = vmatprep.subr.mxu0 0.0
        %2209 = vmatpush2.msra.mxu0 0.0
        %2210 = vmatprep.subr.mxu0 0.0
        %2211 = vmatpush2.msra.mxu0 0.0
        %2212 = vmatprep.subr.mxu0 0.0
        %2213 = vmatpush2.msra.mxu0 0.0
        %2214 = vmatprep.subr.mxu0 0.0
        %2215 = vmatpush2.msra.mxu0 0.0
        %2216 = vmatprep.subr.mxu0 0.0
        %2217 = vmatpush2.msra.mxu0 0.0
        %2218 = vmatprep.subr.mxu0 0.0
        %2219 = vmatpush2.msra.mxu0 0.0
        %2220 = vmatprep.subr.mxu0 0.0
        %2221 = vmatpush2.msra.mxu0 0.0
        %2222 = vmatprep.subr.mxu0 0.0
        %2223 = vmatpush2.msra.mxu0 0.0
        %2224 = vmatprep.subr.mxu0 0.0
        %2225 = vmatpush2.msra.mxu0 0.0
        %2226 = vmatprep.subr.mxu0 0.0
        %2227 = vmatpush2.msra.mxu0 0.0
        %2228 = vmatprep.subr.mxu0 0.0
        %2229 = vmatpush2.msra.mxu0 0.0
        %2230 = vmatprep.subr.mxu0 0.0
        %2231 = vmatpush2.msra.mxu0 0.0
        %2232 = vmatprep.subr.mxu0 0.0
        %2233 = vmatpush2.msra.mxu0 0.0
        %2234 = vmatprep.subr.mxu0 0.0
        %2235 = vmatpush2.msra.mxu0 0.0
        %2236 = vmatprep.subr.mxu0 0.0
        %2237 = vmatpush2.msra.mxu0 0.0
        %2238 = vmatprep.mubr.f32.mxu0 0.0
        %2239 = vmatmul.mubr.f32.gmra.mxu0 %v2169
        %v2240 = vpop.f32.mrf.mxu0
        %v2241 = vadd.f32 %v2166, %v2240
        %v2242 = vpop.f32.mrf.mxu0
        %2243 = vmatprep.mubr.f32.mxu0 0.0
        %2244 = vmatmul.mubr.f32.gmra.mxu0 %v2172
        %v2245 = vpop.f32.mrf.mxu0
        %v2246 = vadd.f32 %v2166, %v2245
        %v2247 = vpop.f32.mrf.mxu0
        %2248 = vdwg.mxu0
        %v2249 = vtanh.pop %v2241
        %v2250 = vtanh.pop %v2246
        %v2251 = vld [vmem:[#allocation11] sm:$0xff]
        %v2252 = vld [vmem:[#allocation11 + $0x8] sm:$0xff]
        %v2253 = vld [vmem:[%s16] sm:$0x1]
        %v2255 = vlaneseq
        %v2256 = vshrl.u32 %v2255, 7
        %v2257 = vsub.s32 0, %v2256
        %v2258 = vrot.slane %v2253, %v2257
        %vm2260 = vcmask 130048
        %v2262 = vsel %vm2260, %v2249, 0
        %v2265 = vsel %vm2260, %v2250, 0
        %2267 = vmatprep.subr.mxu0 0.0
        %2268 = vmatpush1.msra.mxu0 0.0
        %2269 = vmatprep.subr.mxu0 0.0
        %2270 = vmatpush1.msra.mxu0 0.0
        %2271 = vmatprep.subr.mxu0 0.0
        %2272 = vmatpush1.msra.mxu0 0.0
        %2273 = vmatprep.subr.mxu0 0.0
        %2274 = vmatpush1.msra.mxu0 0.0
        %2275 = vmatprep.subr.mxu0 0.0
        %2276 = vmatpush1.msra.mxu0 0.0
        %2277 = vmatprep.subr.mxu0 0.0
        %2278 = vmatpush1.msra.mxu0 0.0
        %2279 = vmatprep.subr.mxu0 0.0
        %2280 = vmatpush1.msra.mxu0 0.0
        %2281 = vmatprep.subr.mxu0 0.0
        %2282 = vmatpush1.msra.mxu0 0.0
        %2283 = vmatprep.subr.mxu0 0.0
        %2284 = vmatpush1.msra.mxu0 0.0
        %2285 = vmatprep.subr.mxu0 0.0
        %2286 = vmatpush1.msra.mxu0 0.0
        %2287 = vmatprep.subr.mxu0 0.0
        %2288 = vmatpush1.msra.mxu0 0.0
        %2289 = vmatprep.subr.mxu0 0.0
        %2290 = vmatpush1.msra.mxu0 0.0
        %2291 = vmatprep.subr.mxu0 0.0
        %2292 = vmatpush1.msra.mxu0 0.0
        %2293 = vmatprep.subr.mxu0 0.0
        %2294 = vmatpush1.msra.mxu0 0.0
        %2295 = vmatprep.subr.mxu0 0.0
        %2296 = vmatpush1.msra.mxu0 %v2252
        %2297 = vmatprep.subr.mxu0 0.0
        %2298 = vmatpush1.msra.mxu0 %v2251
        %2299 = vmatprep.subr.mxu0 0.0
        %2300 = vmatpush2.msra.mxu0 0.0
        %2301 = vmatprep.subr.mxu0 0.0
        %2302 = vmatpush2.msra.mxu0 0.0
        %2303 = vmatprep.subr.mxu0 0.0
        %2304 = vmatpush2.msra.mxu0 0.0
        %2305 = vmatprep.subr.mxu0 0.0
        %2306 = vmatpush2.msra.mxu0 0.0
        %2307 = vmatprep.subr.mxu0 0.0
        %2308 = vmatpush2.msra.mxu0 0.0
        %2309 = vmatprep.subr.mxu0 0.0
        %2310 = vmatpush2.msra.mxu0 0.0
        %2311 = vmatprep.subr.mxu0 0.0
        %2312 = vmatpush2.msra.mxu0 0.0
        %2313 = vmatprep.subr.mxu0 0.0
        %2314 = vmatpush2.msra.mxu0 0.0
        %2315 = vmatprep.subr.mxu0 0.0
        %2316 = vmatpush2.msra.mxu0 0.0
        %2317 = vmatprep.subr.mxu0 0.0
        %2318 = vmatpush2.msra.mxu0 0.0
        %2319 = vmatprep.subr.mxu0 0.0
        %2320 = vmatpush2.msra.mxu0 0.0
        %2321 = vmatprep.subr.mxu0 0.0
        %2322 = vmatpush2.msra.mxu0 0.0
        %2323 = vmatprep.subr.mxu0 0.0
        %2324 = vmatpush2.msra.mxu0 0.0
        %2325 = vmatprep.subr.mxu0 0.0
        %2326 = vmatpush2.msra.mxu0 0.0
        %2327 = vmatprep.subr.mxu0 0.0
        %2328 = vmatpush2.msra.mxu0 0.0
        %2329 = vmatprep.subr.mxu0 0.0
        %2330 = vmatpush2.msra.mxu0 0.0
        %2331 = vmatprep.mubr.f32.mxu0 0.0
        %2332 = vmatmul.mubr.f32.gmra.mxu0 %v2262
        %v2333 = vpop.f32.mrf.mxu0
        %v2334 = vadd.f32 %v2258, %v2333
        %v2335 = vpop.f32.mrf.mxu0
        %2336 = vmatprep.mubr.f32.mxu0 0.0
        %2337 = vmatmul.mubr.f32.gmra.mxu0 %v2265
        %v2338 = vpop.f32.mrf.mxu0
        %v2339 = vadd.f32 %v2258, %v2338
        %v2340 = vpop.f32.mrf.mxu0
        %2341 = vdwg.mxu0
        %v2342 = vsel %vm800, %v2334, -inf
        %v2343 = vsel %vm800, %v2339, -inf
        %v2344 = vmax.f32 %v2342, %v2343
        %v2345 = vrot.slane %v2344, 4
        %v2346 = vmax.f32 %v2344, %v2345
        %v2347 = vrot.slane %v2346, 2
        %v2348 = vmax.f32 %v2346, %v2347
        %v2349 = vrot.slane %v2348, 1
        %v2350 = vmax.f32 %v2348, %v2349
        %v2351 = vsub.f32 %v2334, %v2350
        %v2352 = vsub.f32 %v2339, %v2350
        %v2353 = vmul.f32 %v2351, 1.442695
        %v2354 = vpow.pop %v2353
        %v2355 = vmul.f32 %v2352, 1.442695
        %v2356 = vpow.pop %v2355
        %v2357 = vsel %vm800, %v2354, 0.0
        %v2358 = vsel %vm800, %v2356, 0.0
        %v2359 = vadd.f32 %v2357, %v2358
        %v2360 = vrot.slane %v2359, 4
        %v2361 = vadd.f32 %v2359, %v2360
        %v2362 = vrot.slane %v2361, 2
        %v2363 = vadd.f32 %v2361, %v2362
        %v2364 = vrot.slane %v2363, 1
        %v2365 = vadd.f32 %v2363, %v2364
        %v2366 = vrcp.pop %v2365
        %v2367 = vmul.f32 %v2354, %v2366
        %v2368 = vmul.f32 %v2356, %v2366
        %v2369 = vmul.f32 %v2367, %v2155
        %v2370 = vmul.f32 %v2368, %v2156
        %v2371 = vsel %vm800, %v2369, 0.0
        %v2372 = vsel %vm800, %v2370, 0.0
        %v2373 = vadd.f32 %v2371, %v2372
        %v2374 = vrot.slane %v2373, 4
        %v2375 = vadd.f32 %v2373, %v2374
        %v2376 = vrot.slane %v2375, 2
        %v2377 = vadd.f32 %v2375, %v2376
        %v2378 = vrot.slane %v2377, 1
        %v2379 = vadd.f32 %v2377, %v2378
        %s2380 = scalar_lea.vmem %s13, 32
        %v2381 = vld [vmem:[%s2380] sm:$0xff]
        %v2382 = vld [vmem:[%s2380 + $0x8] sm:$0xff]
        %v2383 = vld [vmem:[%s2380 + $0x10] sm:$0xff]
        %v2384 = vld [vmem:[%s2380 + $0x18] sm:$0xff]
        %s2385 = scalar_lea.vmem %s14, 1
        %v2386 = vld [vmem:[%s2385] sm:$0x1]
        %v2388 = vlaneseq
        %v2389 = vshrl.u32 %v2388, 7
        %v2390 = vsub.s32 0, %v2389
        %v2391 = vrot.slane %v2386, %v2390
        %2393 = vmatprep.subr.mxu0 0.0
        %2394 = vmatpush1.msra.mxu0 0.0
        %2395 = vmatprep.subr.mxu0 0.0
        %2396 = vmatpush1.msra.mxu0 0.0
        %2397 = vmatprep.subr.mxu0 0.0
        %2398 = vmatpush1.msra.mxu0 0.0
        %2399 = vmatprep.subr.mxu0 0.0
        %2400 = vmatpush1.msra.mxu0 0.0
        %2401 = vmatprep.subr.mxu0 0.0
        %2402 = vmatpush1.msra.mxu0 0.0
        %2403 = vmatprep.subr.mxu0 0.0
        %2404 = vmatpush1.msra.mxu0 0.0
        %2405 = vmatprep.subr.mxu0 0.0
        %2406 = vmatpush1.msra.mxu0 0.0
        %2407 = vmatprep.subr.mxu0 0.0
        %2408 = vmatpush1.msra.mxu0 0.0
        %2409 = vmatprep.subr.mxu0 0.0
        %2410 = vmatpush1.msra.mxu0 0.0
        %2411 = vmatprep.subr.mxu0 0.0
        %2412 = vmatpush1.msra.mxu0 0.0
        %2413 = vmatprep.subr.mxu0 0.0
        %2414 = vmatpush1.msra.mxu0 0.0
        %2415 = vmatprep.subr.mxu0 0.0
        %2416 = vmatpush1.msra.mxu0 0.0
        %2417 = vmatprep.subr.mxu0 0.0
        %2418 = vmatpush1.msra.mxu0 %v2384
        %2419 = vmatprep.subr.mxu0 0.0
        %2420 = vmatpush1.msra.mxu0 %v2383
        %2421 = vmatprep.subr.mxu0 0.0
        %2422 = vmatpush1.msra.mxu0 %v2382
        %2423 = vmatprep.subr.mxu0 0.0
        %2424 = vmatpush1.msra.mxu0 %v2381
        %2425 = vmatprep.subr.mxu0 0.0
        %2426 = vmatpush2.msra.mxu0 0.0
        %2427 = vmatprep.subr.mxu0 0.0
        %2428 = vmatpush2.msra.mxu0 0.0
        %2429 = vmatprep.subr.mxu0 0.0
        %2430 = vmatpush2.msra.mxu0 0.0
        %2431 = vmatprep.subr.mxu0 0.0
        %2432 = vmatpush2.msra.mxu0 0.0
        %2433 = vmatprep.subr.mxu0 0.0
        %2434 = vmatpush2.msra.mxu0 0.0
        %2435 = vmatprep.subr.mxu0 0.0
        %2436 = vmatpush2.msra.mxu0 0.0
        %2437 = vmatprep.subr.mxu0 0.0
        %2438 = vmatpush2.msra.mxu0 0.0
        %2439 = vmatprep.subr.mxu0 0.0
        %2440 = vmatpush2.msra.mxu0 0.0
        %2441 = vmatprep.subr.mxu0 0.0
        %2442 = vmatpush2.msra.mxu0 0.0
        %2443 = vmatprep.subr.mxu0 0.0
        %2444 = vmatpush2.msra.mxu0 0.0
        %2445 = vmatprep.subr.mxu0 0.0
        %2446 = vmatpush2.msra.mxu0 0.0
        %2447 = vmatprep.subr.mxu0 0.0
        %2448 = vmatpush2.msra.mxu0 0.0
        %2449 = vmatprep.subr.mxu0 0.0
        %2450 = vmatpush2.msra.mxu0 0.0
        %2451 = vmatprep.subr.mxu0 0.0
        %2452 = vmatpush2.msra.mxu0 0.0
        %2453 = vmatprep.subr.mxu0 0.0
        %2454 = vmatpush2.msra.mxu0 0.0
        %2455 = vmatprep.subr.mxu0 0.0
        %2456 = vmatpush2.msra.mxu0 0.0
        %2457 = vmatprep.mubr.f32.mxu0 0.0
        %2458 = vmatmul.mubr.f32.gmra.mxu0 %v2169
        %v2459 = vpop.f32.mrf.mxu0
        %v2460 = vadd.f32 %v2391, %v2459
        %v2461 = vpop.f32.mrf.mxu0
        %2462 = vmatprep.mubr.f32.mxu0 0.0
        %2463 = vmatmul.mubr.f32.gmra.mxu0 %v2172
        %v2464 = vpop.f32.mrf.mxu0
        %v2465 = vadd.f32 %v2391, %v2464
        %v2466 = vpop.f32.mrf.mxu0
        %2467 = vdwg.mxu0
        %v2468 = vtanh.pop %v2460
        %v2469 = vtanh.pop %v2465
        %s2470 = scalar_lea.vmem [#allocation11], 16
        %v2471 = vld [vmem:[%s2470] sm:$0xff]
        %v2472 = vld [vmem:[%s2470 + $0x8] sm:$0xff]
        %s2473 = scalar_lea.vmem %s16, 1
        %v2474 = vld [vmem:[%s2473] sm:$0x1]
        %v2476 = vlaneseq
        %v2477 = vshrl.u32 %v2476, 7
        %v2478 = vsub.s32 0, %v2477
        %v2479 = vrot.slane %v2474, %v2478
        %v2482 = vsel %vm2260, %v2468, 0
        %v2485 = vsel %vm2260, %v2469, 0
        %2487 = vmatprep.subr.mxu0 0.0
        %2488 = vmatpush1.msra.mxu0 0.0
        %2489 = vmatprep.subr.mxu0 0.0
        %2490 = vmatpush1.msra.mxu0 0.0
        %2491 = vmatprep.subr.mxu0 0.0
        %2492 = vmatpush1.msra.mxu0 0.0
        %2493 = vmatprep.subr.mxu0 0.0
        %2494 = vmatpush1.msra.mxu0 0.0
        %2495 = vmatprep.subr.mxu0 0.0
        %2496 = vmatpush1.msra.mxu0 0.0
        %2497 = vmatprep.subr.mxu0 0.0
        %2498 = vmatpush1.msra.mxu0 0.0
        %2499 = vmatprep.subr.mxu0 0.0
        %2500 = vmatpush1.msra.mxu0 0.0
        %2501 = vmatprep.subr.mxu0 0.0
        %2502 = vmatpush1.msra.mxu0 0.0
        %2503 = vmatprep.subr.mxu0 0.0
        %2504 = vmatpush1.msra.mxu0 0.0
        %2505 = vmatprep.subr.mxu0 0.0
        %2506 = vmatpush1.msra.mxu0 0.0
        %2507 = vmatprep.subr.mxu0 0.0
        %2508 = vmatpush1.msra.mxu0 0.0
        %2509 = vmatprep.subr.mxu0 0.0
        %2510 = vmatpush1.msra.mxu0 0.0
        %2511 = vmatprep.subr.mxu0 0.0
        %2512 = vmatpush1.msra.mxu0 0.0
        %2513 = vmatprep.subr.mxu0 0.0
        %2514 = vmatpush1.msra.mxu0 0.0
        %2515 = vmatprep.subr.mxu0 0.0
        %2516 = vmatpush1.msra.mxu0 %v2472
        %2517 = vmatprep.subr.mxu0 0.0
        %2518 = vmatpush1.msra.mxu0 %v2471
        %2519 = vmatprep.subr.mxu0 0.0
        %2520 = vmatpush2.msra.mxu0 0.0
        %2521 = vmatprep.subr.mxu0 0.0
        %2522 = vmatpush2.msra.mxu0 0.0
        %2523 = vmatprep.subr.mxu0 0.0
        %2524 = vmatpush2.msra.mxu0 0.0
        %2525 = vmatprep.subr.mxu0 0.0
        %2526 = vmatpush2.msra.mxu0 0.0
        %2527 = vmatprep.subr.mxu0 0.0
        %2528 = vmatpush2.msra.mxu0 0.0
        %2529 = vmatprep.subr.mxu0 0.0
        %2530 = vmatpush2.msra.mxu0 0.0
        %2531 = vmatprep.subr.mxu0 0.0
        %2532 = vmatpush2.msra.mxu0 0.0
        %2533 = vmatprep.subr.mxu0 0.0
        %2534 = vmatpush2.msra.mxu0 0.0
        %2535 = vmatprep.subr.mxu0 0.0
        %2536 = vmatpush2.msra.mxu0 0.0
        %2537 = vmatprep.subr.mxu0 0.0
        %2538 = vmatpush2.msra.mxu0 0.0
        %2539 = vmatprep.subr.mxu0 0.0
        %2540 = vmatpush2.msra.mxu0 0.0
        %2541 = vmatprep.subr.mxu0 0.0
        %2542 = vmatpush2.msra.mxu0 0.0
        %2543 = vmatprep.subr.mxu0 0.0
        %2544 = vmatpush2.msra.mxu0 0.0
        %2545 = vmatprep.subr.mxu0 0.0
        %2546 = vmatpush2.msra.mxu0 0.0
        %2547 = vmatprep.subr.mxu0 0.0
        %2548 = vmatpush2.msra.mxu0 0.0
        %2549 = vmatprep.subr.mxu0 0.0
        %2550 = vmatpush2.msra.mxu0 0.0
        %2551 = vmatprep.mubr.f32.mxu0 0.0
        %2552 = vmatmul.mubr.f32.gmra.mxu0 %v2482
        %v2553 = vpop.f32.mrf.mxu0
        %v2554 = vadd.f32 %v2479, %v2553
        %v2555 = vpop.f32.mrf.mxu0
        %2556 = vmatprep.mubr.f32.mxu0 0.0
        %2557 = vmatmul.mubr.f32.gmra.mxu0 %v2485
        %v2558 = vpop.f32.mrf.mxu0
        %v2559 = vadd.f32 %v2479, %v2558
        %v2560 = vpop.f32.mrf.mxu0
        %2561 = vdwg.mxu0
        %v2562 = vsel %vm800, %v2554, -inf
        %v2563 = vsel %vm800, %v2559, -inf
        %v2564 = vmax.f32 %v2562, %v2563
        %v2565 = vrot.slane %v2564, 4
        %v2566 = vmax.f32 %v2564, %v2565
        %v2567 = vrot.slane %v2566, 2
        %v2568 = vmax.f32 %v2566, %v2567
        %v2569 = vrot.slane %v2568, 1
        %v2570 = vmax.f32 %v2568, %v2569
        %v2571 = vsub.f32 %v2554, %v2570
        %v2572 = vsub.f32 %v2559, %v2570
        %v2573 = vmul.f32 %v2571, 1.442695
        %v2574 = vpow.pop %v2573
        %v2575 = vmul.f32 %v2572, 1.442695
        %v2576 = vpow.pop %v2575
        %v2577 = vsel %vm800, %v2574, 0.0
        %v2578 = vsel %vm800, %v2576, 0.0
        %v2579 = vadd.f32 %v2577, %v2578
        %v2580 = vrot.slane %v2579, 4
        %v2581 = vadd.f32 %v2579, %v2580
        %v2582 = vrot.slane %v2581, 2
        %v2583 = vadd.f32 %v2581, %v2582
        %v2584 = vrot.slane %v2583, 1
        %v2585 = vadd.f32 %v2583, %v2584
        %v2586 = vrcp.pop %v2585
        %v2587 = vmul.f32 %v2574, %v2586
        %v2588 = vmul.f32 %v2576, %v2586
        %v2589 = vmul.f32 %v2587, %v2155
        %v2590 = vmul.f32 %v2588, %v2156
        %v2591 = vsel %vm800, %v2589, 0.0
        %v2592 = vsel %vm800, %v2590, 0.0
        %v2593 = vadd.f32 %v2591, %v2592
        %v2594 = vrot.slane %v2593, 4
        %v2595 = vadd.f32 %v2593, %v2594
        %v2596 = vrot.slane %v2595, 2
        %v2597 = vadd.f32 %v2595, %v2596
        %v2598 = vrot.slane %v2597, 1
        %v2599 = vadd.f32 %v2597, %v2598
        %2601 = vrot.lane.b32.xlu0 %v2599, 32
        %v2602 = vpop.permute.xlu0 %2601
        %v2604 = vsel %vm800, %v2379, %v2602
        %v2605 = vmul.f32 %v2604, %v2604
        %vm2606 = vcmask 516096
        %v2607 = vsel %vm2606, %v2605, 0.0
        %2608 = vadd.xlane.f32.xlu0 %v2607
        %v2609 = vpop.xlane.xlu0 %2608
        %v2610 = vrot.slane %v2609, 4
        %v2611 = vadd.f32 %v2609, %v2610
        %v2612 = vrot.slane %v2611, 2
        %v2613 = vadd.f32 %v2611, %v2612
        %v2614 = vrot.slane %v2613, 1
        %v2615 = vadd.f32 %v2613, %v2614
        %s2616 = vtos %v2615
        %v2617 = vstv %s2616
        %v2618 = vrsqrt.pop %v2617
        %v2619 = vmul.f32 %v2617, %v2618
        %vm2620 = vcmp.eq.f32.partialorder %v2617, inf
        %v2621 = vsel %vm2620, %v2617, %v2619
        %vm2622 = vcmp.eq.f32.partialorder %v2617, 0.0
        %v2623 = vand.u32 %v2617, 2147483648
        %v2624 = vsel %vm2622, %v2623, %v2621
        %s2625 = vtos %v2624
        %s2626 = smax.f32 %s2625, 1e-12
        %v2627 = vstv %s2626
        %v2628 = vrcp.pop %v2627
        %v2629 = vmul.f32 %v2604, %v2628
        %2630 = vst.msk [vmem:[%s666] sm:$0x1] %vm2606, %v2629
        %v2631 = vstv %s1584
        %vm2632 = vcmask 0
        %2633 = vst.msk [vmem:[%s674] sm:$0x1] %vm2632, %v2631
        %s2634 = sand.u32 %s409, 1
        %s2635 = scalar_lea.sflag [#allocation4], %s2634
        %s2636 = sand.u32 %s409, 1
        %s2637 = scalar_lea.vmem [#allocation13], %s2636
        %p2638 = scmp.lt.s32.totalorder %s39, 1
        %s2639 = scalar_select %p2638, %s39, 1
        %s2640 = scalar_lea.vmem %s18, %s2639
        // Predicated region
        $region113: #{tpu_custom_call.1} parent=87 // pred_check
          %p2641 = pneg %p419
        $region114: #{tpu_custom_call.1} parent=87 // pred_check_branch
          %2643 = sbr.rel (%p2641) target = $region116
        $region115: #{tpu_custom_call.1} parent=87 // pred_region
          %s2645 = ssub.s32 16, 16
          %2646 = vsyncadd %s2635, %s2645
          %s2647 = smul.addr %s39, 16
          %s2648 = scalar_lea.hbm %s17, %s2647
          %s2650 = sshll.u32 %s2637, 4
          %s2651 = int_to_ptr.vmem [resolvable:$true] %s2650
          %2653 = dma.vmem_to_hbm [thread:$0]  %s2651, 16, %s2648, %s2635
        $region116: #{tpu_custom_call.1} parent=87 // pred_fallthru
          _
        // Predicated region
        $region117: #{tpu_custom_call.1} parent=87 // pred_check
          %p2654 = pneg %p445
        $region118: #{tpu_custom_call.1} parent=87 // pred_check_branch
          %2656 = sbr.rel (%p2654) target = $region120
        $region119: #{tpu_custom_call.1} parent=87 // pred_region
          _
        $region120: #{tpu_custom_call.1} parent=87 // pred_fallthru
          _
      $region88: #{tpu_custom_call.1} parent=5 // pred_fallthru
        _
      %p2657 = scmp.le.s32.totalorder 2, %s34
      // Predicated region
      $region121: #{tpu_custom_call.1} parent=5 // pred_check
        %p2658 = pneg %p2657
      $region122: #{tpu_custom_call.1} parent=5 // pred_check_branch
        %2660 = sbr.rel (%p2658) target = $region124
      $region123: #{tpu_custom_call.1} parent=5 // pred_region
        %s2661 = ssub.s32 %s34, 2
        // Predicated region
        $region125: #{tpu_custom_call.1} parent=123 // pred_check
          %p2662 = pneg %p425
        $region126: #{tpu_custom_call.1} parent=123 // pred_check_branch
          %2664 = sbr.rel (%p2662) target = $region128
        $region127: #{tpu_custom_call.1} parent=123 // pred_region
          %s2665 = sand.u32 %s410, 1
          %s2666 = scalar_lea.sflag [#allocation4], %s2665
          %s2667 = sand.u32 %s410, 1
          %s2668 = scalar_lea.vmem [#allocation13], %s2667
          %2669 = dma.done %s2666, 16
        $region128: #{tpu_custom_call.1} parent=123 // pred_fallthru
          _
        // Predicated region
        $region129: #{tpu_custom_call.1} parent=123 // pred_check
          %p2670 = pneg %p451
        $region130: #{tpu_custom_call.1} parent=123 // pred_check_branch
          %2672 = sbr.rel (%p2670) target = $region132
        $region131: #{tpu_custom_call.1} parent=123 // pred_region
          %p2673 = scmp.lt.s32.totalorder %s40, 1
          %s2674 = scalar_select %p2673, %s40, 1
          %s2675 = scalar_lea.vmem %s18, %s2674
        $region132: #{tpu_custom_call.1} parent=123 // pred_fallthru
          _
      $region124: #{tpu_custom_call.1} parent=5 // pred_fallthru
        _
    $region6: #{tpu_custom_call.1} parent=1 // loop_footer
      %s38 = sadd.s32 1, %s34
    $region7: #{tpu_custom_call.1} parent=1 // loop_footer_branch
      %33 = sbr.rel target = $region3
    $region8: #{tpu_custom_call.1} parent=1 // loop_exit
      _
    %2676 = vsyncpa [#allocation3], 1
    %s2677 = scalar_lea.sflag [#allocation3], 1
    %2678 = vsyncpa %s2677, 1
    %2679 = vsyncpa [#allocation6], 1
    %2680 = vsyncpa [#allocation9], 1
    %2681 = vsyncpa [#allocation12], 1
    %2682 = vsyncpa [#allocation4], 1
    %s2683 = scalar_lea.sflag [#allocation4], 1
    %2684 = vsyncpa %s2683, 1

</llo_original>
